<compile_context>
chip_gen: v7x
topology: tpu7x:2x2x1
jax: 0.10.0
libtpu: 0.0.40
codegen_flags: <defaults>
</compile_context>

<pallas_src>
import functools

import numpy as np
import jax
import jax.numpy as jnp
from jax.experimental import pallas as pl
from jax.experimental.pallas import tpu as pltpu

K = 5          # self-attention kernel_size
PAD = 2        # self-attention padding
GROUPS = 4     # self-attention groups
EPS = 1e-5     # BatchNorm eps


# ---------------------------------------------------------------------------
# Window validity masks (compile-time constants)
# ---------------------------------------------------------------------------
def _window_masks(h, w):
    """(K*K, h*w) mask: 1.0 where the window tap lands inside the image."""
    hh = np.arange(h)[:, None]
    ww = np.arange(w)[None, :]
    rows = []
    for kh in range(K):
        for kw in range(K):
            dh, dw = kh - PAD, kw - PAD
            valid = ((hh + dh >= 0) & (hh + dh < h) &
                     (ww + dw >= 0) & (ww + dw < w))
            rows.append(valid.reshape(-1))
    return jnp.asarray(np.stack(rows, axis=0).astype(np.float32))


# ---------------------------------------------------------------------------
# Fused forward kernel (entire batch, one grid step)
# ---------------------------------------------------------------------------
def _fused_forward_kernel(x_ref, masks_ref, wx_ref, wqkv_ref, w3_ref,
                          consts_ref, emb_ref, o_ref, logits_sc, vvals_sc,
                          *, bn, width, c1, co, cout):
    f32 = jnp.float32
    bf16 = jnp.bfloat16
    x = x_ref[...]                                                # (Cin, B*N) bf16

    # Packed per-channel constants (single slab, column layout).
    b1 = consts_ref[0:c1, 0:1]         # BN1 shift (conv1 bias folded in)
    bd = consts_ref[0:cout, 1:2]       # BNd shift (downsample bias folded in)
    b3 = consts_ref[0:cout, 2:3]       # BN3 shift (conv3 bias folded in)
    s2 = consts_ref[0:co, 3:4]         # BN2 scale
    b2 = consts_ref[0:co, 4:5]         # BN2 shift

    # Fused [conv1 ; downsample] 1x1 convs that share the RHS x: one MXU pass.
    hx = jnp.dot(wx_ref[...], x, preferred_element_type=f32)     # (C1+Cout, B*N)
    h1 = jnp.maximum(hx[0:c1, :] + b1, 0.0)                      # conv1+BN1+ReLU
    skip = hx[c1:c1 + cout, :] + bd                              # downsample+BNd

    # Grouped bias-free q/k/v 1x1 convs -> one block-diagonal matmul.
    qkv = jnp.dot(wqkv_ref[...], h1.astype(bf16),
                  preferred_element_type=f32)                    # (3*Co, B*N)
    q = qkv[0:co, :]
    kv = qkv[co:3 * co, :]                                       # packed (k ; v)

    # --- two-pass softmax over the K*K local window ------------------------
    # Pass 1: roll + mask the packed kv ONCE per tap, compute logits, stash
    # per-tap logits and shifted values in VMEM scratch, track the running max.
    # Padded taps reproduce zero-padding of k/v exactly: k=0, v=0, logit=q*emb.
    m = None
    for kh in range(K):
        for kw in range(K):
            kk = kh * K + kw
            d = (kh - PAD) * width + (kw - PAD)
            if d == 0:                      # centre tap: no shift, all valid
                kv_s = kv
            else:
                kv_s = (pltpu.roll(kv, shift=(-d) % bn, axis=1)
                        * masks_ref[kk:kk + 1, :])
            k_s = kv_s[0:co, :]
            v_s = kv_s[co:2 * co, :]
            logit = q * (k_s + emb_ref[:, kk:kk + 1])            # (Co, B*N)
            logits_sc[kk] = logit
            vvals_sc[kk] = v_s
            m = logit if m is None else jnp.maximum(m, logit)

    # Pass 2: single exp per tap, accumulate denominator and weighted values
    # (no serial rescale chain).
    l = jnp.zeros_like(m)
    acc = jnp.zeros_like(m)
    for kk in range(K * K):
        p = jnp.exp(logits_sc[kk] - m)
        l = l + p
        acc = acc + p * vvals_sc[kk]
    attn = acc / l                                               # exact softmax

    # seq[4..5]: BN2 + ReLU
    h2 = jnp.maximum(attn * s2 + b2, 0.0)

    # seq[6..8]: conv3 + BN3 + ReLU, then add the downsample skip.
    main = jnp.maximum(
        jnp.dot(w3_ref[...], h2.astype(bf16), preferred_element_type=f32) + b3,
        0.0)
    o_ref[...] = main + skip


def _full_spec(arr):
    nd = arr.ndim
    return pl.BlockSpec(arr.shape, lambda i, _nd=nd: (0,) * _nd)


def attention_with_skip_forward(x_nchw, params):
    b, cin, h, w = x_nchw.shape
    n = h * w
    bn = b * n

    cout, co = params["w3T"].shape
    c1 = params["wqkvT"].shape[1]

    # Channels-first, lane-dense, whole batch packed into the lane axis.
    x = jnp.transpose(x_nchw, (1, 0, 2, 3)).reshape(cin, bn).astype(jnp.bfloat16)
    masks = jnp.tile(_window_masks(h, w), (1, b))                # (K*K, B*N)

    kernel = functools.partial(_fused_forward_kernel, bn=bn, width=w,
                               c1=c1, co=co, cout=cout)

    out = pl.pallas_call(
        kernel,
        out_shape=jax.ShapeDtypeStruct((cout, bn), jnp.float32),
        grid=(1,),
        in_specs=[_full_spec(x), _full_spec(masks), _full_spec(params["wxT"]),
                  _full_spec(params["wqkvT"]), _full_spec(params["w3T"]),
                  _full_spec(params["consts"]), _full_spec(params["emb"])],
        out_specs=pl.BlockSpec((cout, bn), lambda i: (0, 0)),
        scratch_shapes=[pltpu.VMEM((K * K, co, bn), jnp.float32),   # logits
                        pltpu.VMEM((K * K, co, bn), jnp.float32)],  # shifted v
        compiler_params=pltpu.CompilerParams(
            dimension_semantics=("arbitrary",)),
    )(x, masks, params["wxT"], params["wqkvT"], params["w3T"],
      params["consts"], params["emb"])

    out = out.reshape(cout, b, h, w)
    return jnp.transpose(out, (1, 0, 2, 3))                      # NCHW out


# ---------------------------------------------------------------------------
# Parameter construction (deterministic, synthetic; channels-first weights)
# ---------------------------------------------------------------------------
def init_params(key, in_, out):
    c1 = in_ // 4            # hidden channels before attention
    co = out // 4            # attention output channels
    cpg = co // GROUPS       # channels per group
    # dim checks from check_dims()
    assert co % 2 == 0 and co % GROUPS == 0 and c1 % GROUPS == 0 and cpg % 2 == 0
    assert in_ != out, "this script implements the downsample-skip branch"

    keys = iter(jax.random.split(key, 32))

    def nrm(shape, std=1.0):
        return std * jax.random.normal(next(keys), shape, jnp.float32)

    def bn_fold(c, conv_bias=None):
        gamma = 1.0 + 0.1 * nrm((c,))
        beta = 0.1 * nrm((c,))
        mean = 0.1 * nrm((c,))
        var = jnp.abs(nrm((c,))) + 0.5
        scale = gamma / jnp.sqrt(var + EPS)
        shift = beta - mean * scale
        if conv_bias is not None:
            shift = shift + conv_bias * scale
        return scale, shift

    p = {}

    # --- seq[0..2]: Conv2d(in_, in_//4, 1) + BN1 (scale folded into rows) ------
    w1 = nrm((c1, in_), (2.0 / in_) ** 0.5)
    b1 = 0.1 * nrm((c1,))
    s1, sh1 = bn_fold(c1, b1)
    w1f = w1 * s1[:, None]

    # --- downsample: Conv2d(in_, out, 1) + BNd ---------------------------------
    wd = nrm((out, in_), (2.0 / in_) ** 0.5)
    bd = 0.1 * nrm((out,))
    sd, shd = bn_fold(out, bd)
    wdf = wd * sd[:, None]

    # Fuse the two matmuls that share x into one weight matrix.
    p["wxT"] = jnp.concatenate([w1f, wdf], axis=0).astype(jnp.bfloat16)  # (C1+Cout, Cin)

    # --- SelfAttentionBlock: grouped bias-free 1x1 convs as block-diag mats ----
    cin_pg, cout_pg = c1 // GROUPS, co // GROUPS

    def group_dense_T():
        # PyTorch grouped-conv weight layout: (Cout, Cin/groups, 1, 1)
        wg = nrm((co, cin_pg), (2.0 / co) ** 0.5)
        dT = jnp.zeros((co, c1), jnp.float32)
        for g in range(GROUPS):
            dT = dT.at[g * cout_pg:(g + 1) * cout_pg,
                       g * cin_pg:(g + 1) * cin_pg].set(
                wg[g * cout_pg:(g + 1) * cout_pg, :])
        return dT

    p["wqkvT"] = jnp.concatenate(
        [group_dense_T(), group_dense_T(), group_dense_T()],
        axis=0).astype(jnp.bfloat16)                                    # (3Co, C1)

    # relative-position embeddings: cat(h_emb over kw, w_emb over kh), kk = kh*K+kw
    h_emb = nrm((GROUPS, cpg // 2, K))
    w_emb = nrm((GROUPS, cpg // 2, K))
    emb_h = jnp.broadcast_to(h_emb[:, :, :, None], (GROUPS, cpg // 2, K, K))
    emb_w = jnp.broadcast_to(w_emb[:, :, None, :], (GROUPS, cpg // 2, K, K))
    p["emb"] = jnp.concatenate([emb_h, emb_w], axis=1).reshape(co, K * K)  # (Co,K^2) f32

    # --- seq[4..5]: BN(out//4) -------------------------------------------------
    s2, sh2 = bn_fold(co)

    # --- seq[6..8]: Conv2d(out//4, out, 1) + BN3 -------------------------------
    w3 = nrm((out, co), (2.0 / co) ** 0.5)
    b3 = 0.1 * nrm((out,))
    s3, sh3 = bn_fold(out, b3)
    p["w3T"] = (w3 * s3[:, None]).astype(jnp.bfloat16)                  # (Cout, Co)

    # Pack the tiny per-channel constants into one slab (column layout):
    #   col 0: BN1 shift   col 1: BNd shift   col 2: BN3 shift
    #   col 3: BN2 scale   col 4: BN2 shift
    L = max(c1, co, out)
    consts = jnp.zeros((L, 8), jnp.float32)
    consts = consts.at[:c1, 0].set(sh1)
    consts = consts.at[:out, 1].set(shd)
    consts = consts.at[:out, 2].set(sh3)
    consts = consts.at[:co, 3].set(s2)
    consts = consts.at[:co, 4].set(sh2)
    p["consts"] = consts
    return p


# ---------------------------------------------------------------------------
if __name__ == "__main__":
    in_, out = 16, 32          # smallest dims satisfying check_dims constraints
    B, H, W = 2, 16, 16

    key = jax.random.PRNGKey(0)
    kx, kp = jax.random.split(key)
    x = jax.random.normal(kx, (B, in_, H, W), jnp.float32)   # NCHW, like PyTorch
    params = init_params(kp, in_, out)

    fwd = jax.jit(attention_with_skip_forward)
    y = jax.block_until_ready(fwd(x, params))
    assert y.shape == (B, out, H, W), y.shape
    assert bool(jnp.all(jnp.isfinite(y)))
    print("KERNEL_OK")
</pallas_src>

<mosaic_0001>
module attributes {stable_mosaic.version = 11 : i64} {
  func.func @_fused_forward_kernel(%arg0: i32, %arg1: memref<16x512xbf16, #tpu.memory_space<vmem>>, %arg2: memref<25x512xf32, #tpu.memory_space<vmem>>, %arg3: memref<36x16xbf16, #tpu.memory_space<vmem>>, %arg4: memref<24x4xbf16, #tpu.memory_space<vmem>>, %arg5: memref<32x8xbf16, #tpu.memory_space<vmem>>, %arg6: memref<32x8xf32, #tpu.memory_space<vmem>>, %arg7: memref<8x25xf32, #tpu.memory_space<vmem>>, %arg8: memref<32x512xf32, #tpu.memory_space<vmem>>, %arg9: memref<25x8x512xf32, #tpu.memory_space<vmem>>, %arg10: memref<25x8x512xf32, #tpu.memory_space<vmem>>) attributes {dimension_semantics = [#tpu.dimension_semantics<arbitrary>], iteration_bounds = array<i64: 1>, scalar_prefetch = 0 : i64, scratch_operands = 2 : i64, tpu.core_type = #tpu.core_type<tc>, window_params = [{pipeline_mode = #tpu.pipeline_mode<synchronous>, transform_indices = @transform_0, window_bounds = array<i64: 16, 512>}, {pipeline_mode = #tpu.pipeline_mode<synchronous>, transform_indices = @transform_1, window_bounds = array<i64: 25, 512>}, {pipeline_mode = #tpu.pipeline_mode<synchronous>, transform_indices = @transform_2, window_bounds = array<i64: 36, 16>}, {pipeline_mode = #tpu.pipeline_mode<synchronous>, transform_indices = @transform_3, window_bounds = array<i64: 24, 4>}, {pipeline_mode = #tpu.pipeline_mode<synchronous>, transform_indices = @transform_4, window_bounds = array<i64: 32, 8>}, {pipeline_mode = #tpu.pipeline_mode<synchronous>, transform_indices = @transform_5, window_bounds = array<i64: 32, 8>}, {pipeline_mode = #tpu.pipeline_mode<synchronous>, transform_indices = @transform_6, window_bounds = array<i64: 8, 25>}, {pipeline_mode = #tpu.pipeline_mode<synchronous>, transform_indices = @transform_7, window_bounds = array<i64: 32, 512>}]} {
    %c0 = arith.constant 0 : index
    %c0_0 = arith.constant 0 : index
    %0 = vector.load %arg1[%c0, %c0_0] : memref<16x512xbf16, #tpu.memory_space<vmem>>, vector<16x512xbf16>
    %c0_1 = arith.constant 0 : index
    %c0_2 = arith.constant 0 : index
    %1 = vector.load %arg6[%c0_1, %c0_2] : memref<32x8xf32, #tpu.memory_space<vmem>>, vector<4x1xf32>
    %c0_3 = arith.constant 0 : index
    %c1 = arith.constant 1 : index
    %2 = vector.load %arg6[%c0_3, %c1] : memref<32x8xf32, #tpu.memory_space<vmem>>, vector<32x1xf32>
    %c0_4 = arith.constant 0 : index
    %c2 = arith.constant 2 : index
    %3 = vector.load %arg6[%c0_4, %c2] : memref<32x8xf32, #tpu.memory_space<vmem>>, vector<32x1xf32>
    %c0_5 = arith.constant 0 : index
    %c3 = arith.constant 3 : index
    %4 = vector.load %arg6[%c0_5, %c3] : memref<32x8xf32, #tpu.memory_space<vmem>>, vector<8x1xf32>
    %c0_6 = arith.constant 0 : index
    %c4 = arith.constant 4 : index
    %5 = vector.load %arg6[%c0_6, %c4] : memref<32x8xf32, #tpu.memory_space<vmem>>, vector<8x1xf32>
    %c0_7 = arith.constant 0 : index
    %c0_8 = arith.constant 0 : index
    %6 = vector.load %arg3[%c0_7, %c0_8] : memref<36x16xbf16, #tpu.memory_space<vmem>>, vector<36x16xbf16>
    %cst = arith.constant dense<0.000000e+00> : vector<36x512xf32>
    %7 = tpu.matmul %6, %0, %cst {dimension_numbers = #tpu.dot_dimension_numbers<[1], [0], [0], [1], [0, 0, 1, 1], [], []>} : vector<36x16xbf16>, vector<16x512xbf16>, vector<36x512xf32> -> vector<36x512xf32>
    %8 = vector.extract_strided_slice %7 {offsets = [0, 0], sizes = [4, 512], strides = [1, 1]} : vector<36x512xf32> to vector<4x512xf32>
    %9 = vector.broadcast %1 : vector<4x1xf32> to vector<4x512xf32>
    %10 = arith.addf %8, %9 : vector<4x512xf32>
    %cst_9 = arith.constant 0.000000e+00 : f32
    %11 = vector.broadcast %cst_9 : f32 to vector<4x512xf32>
    %12 = arith.maximumf %10, %11 : vector<4x512xf32>
    %13 = vector.extract_strided_slice %7 {offsets = [4, 0], sizes = [32, 512], strides = [1, 1]} : vector<36x512xf32> to vector<32x512xf32>
    %14 = vector.broadcast %2 : vector<32x1xf32> to vector<32x512xf32>
    %15 = arith.addf %13, %14 : vector<32x512xf32>
    %c0_10 = arith.constant 0 : index
    %c0_11 = arith.constant 0 : index
    %16 = vector.load %arg4[%c0_10, %c0_11] : memref<24x4xbf16, #tpu.memory_space<vmem>>, vector<24x4xbf16>
    %17 = arith.truncf %12 : vector<4x512xf32> to vector<4x512xbf16>
    %cst_12 = arith.constant dense<0.000000e+00> : vector<24x512xf32>
    %18 = tpu.matmul %16, %17, %cst_12 {dimension_numbers = #tpu.dot_dimension_numbers<[1], [0], [0], [1], [0, 0, 1, 1], [], []>} : vector<24x4xbf16>, vector<4x512xbf16>, vector<24x512xf32> -> vector<24x512xf32>
    %19 = vector.extract_strided_slice %18 {offsets = [0, 0], sizes = [8, 512], strides = [1, 1]} : vector<24x512xf32> to vector<8x512xf32>
    %20 = vector.extract_strided_slice %18 {offsets = [8, 0], sizes = [16, 512], strides = [1, 1]} : vector<24x512xf32> to vector<16x512xf32>
    %c34_i32 = arith.constant 34 : i32
    %21 = tpu.dynamic_rotate %20 by %c34_i32 dim 1 : vector<16x512xf32>, i32 -> vector<16x512xf32>
    %c0_13 = arith.constant 0 : index
    %c0_14 = arith.constant 0 : index
    %22 = vector.load %arg2[%c0_13, %c0_14] : memref<25x512xf32, #tpu.memory_space<vmem>>, vector<1x512xf32>
    %23 = vector.broadcast %22 : vector<1x512xf32> to vector<16x512xf32>
    %24 = arith.mulf %21, %23 : vector<16x512xf32>
    %25 = vector.extract_strided_slice %24 {offsets = [0, 0], sizes = [8, 512], strides = [1, 1]} : vector<16x512xf32> to vector<8x512xf32>
    %26 = vector.extract_strided_slice %24 {offsets = [8, 0], sizes = [8, 512], strides = [1, 1]} : vector<16x512xf32> to vector<8x512xf32>
    %c0_15 = arith.constant 0 : index
    %c0_16 = arith.constant 0 : index
    %27 = vector.load %arg7[%c0_15, %c0_16] : memref<8x25xf32, #tpu.memory_space<vmem>>, vector<8x1xf32>
    %28 = vector.broadcast %27 : vector<8x1xf32> to vector<8x512xf32>
    %29 = arith.addf %25, %28 : vector<8x512xf32>
    %30 = arith.mulf %19, %29 : vector<8x512xf32>
    %c0_17 = arith.constant 0 : index
    %c0_18 = arith.constant 0 : index
    %c0_19 = arith.constant 0 : index
    %31 = vector.load %arg9[%c0_17, %c0_18, %c0_19] : memref<25x8x512xf32, #tpu.memory_space<vmem>>, vector<1x8x512xf32>
    %32 = vector.shape_cast %31 : vector<1x8x512xf32> to vector<8x512xf32>
    %33 = vector.shape_cast %30 : vector<8x512xf32> to vector<1x8x512xf32>
    tpu.vector_store %arg9[%c0_17, %c0_18, %c0_19], %33 {strides = array<i32>} : memref<25x8x512xf32, #tpu.memory_space<vmem>>, vector<1x8x512xf32>,
    %c0_20 = arith.constant 0 : index
    %c0_21 = arith.constant 0 : index
    %c0_22 = arith.constant 0 : index
    %34 = vector.load %arg10[%c0_20, %c0_21, %c0_22] : memref<25x8x512xf32, #tpu.memory_space<vmem>>, vector<1x8x512xf32>
    %35 = vector.shape_cast %34 : vector<1x8x512xf32> to vector<8x512xf32>
    %36 = vector.shape_cast %26 : vector<8x512xf32> to vector<1x8x512xf32>
    tpu.vector_store %arg10[%c0_20, %c0_21, %c0_22], %36 {strides = array<i32>} : memref<25x8x512xf32, #tpu.memory_space<vmem>>, vector<1x8x512xf32>,
    %c33_i32 = arith.constant 33 : i32
    %37 = tpu.dynamic_rotate %20 by %c33_i32 dim 1 : vector<16x512xf32>, i32 -> vector<16x512xf32>
    %c1_23 = arith.constant 1 : index
    %c0_24 = arith.constant 0 : index
    %38 = vector.load %arg2[%c1_23, %c0_24] : memref<25x512xf32, #tpu.memory_space<vmem>>, vector<1x512xf32>
    %39 = vector.broadcast %38 : vector<1x512xf32> to vector<16x512xf32>
    %40 = arith.mulf %37, %39 : vector<16x512xf32>
    %41 = vector.extract_strided_slice %40 {offsets = [0, 0], sizes = [8, 512], strides = [1, 1]} : vector<16x512xf32> to vector<8x512xf32>
    %42 = vector.extract_strided_slice %40 {offsets = [8, 0], sizes = [8, 512], strides = [1, 1]} : vector<16x512xf32> to vector<8x512xf32>
    %c0_25 = arith.constant 0 : index
    %c1_26 = arith.constant 1 : index
    %43 = vector.load %arg7[%c0_25, %c1_26] : memref<8x25xf32, #tpu.memory_space<vmem>>, vector<8x1xf32>
    %44 = vector.broadcast %43 : vector<8x1xf32> to vector<8x512xf32>
    %45 = arith.addf %41, %44 : vector<8x512xf32>
    %46 = arith.mulf %19, %45 : vector<8x512xf32>
    %c1_27 = arith.constant 1 : index
    %c0_28 = arith.constant 0 : index
    %c0_29 = arith.constant 0 : index
    %47 = vector.load %arg9[%c1_27, %c0_28, %c0_29] : memref<25x8x512xf32, #tpu.memory_space<vmem>>, vector<1x8x512xf32>
    %48 = vector.shape_cast %47 : vector<1x8x512xf32> to vector<8x512xf32>
    %49 = vector.shape_cast %46 : vector<8x512xf32> to vector<1x8x512xf32>
    tpu.vector_store %arg9[%c1_27, %c0_28, %c0_29], %49 {strides = array<i32>} : memref<25x8x512xf32, #tpu.memory_space<vmem>>, vector<1x8x512xf32>,
    %c1_30 = arith.constant 1 : index
    %c0_31 = arith.constant 0 : index
    %c0_32 = arith.constant 0 : index
    %50 = vector.load %arg10[%c1_30, %c0_31, %c0_32] : memref<25x8x512xf32, #tpu.memory_space<vmem>>, vector<1x8x512xf32>
    %51 = vector.shape_cast %50 : vector<1x8x512xf32> to vector<8x512xf32>
    %52 = vector.shape_cast %42 : vector<8x512xf32> to vector<1x8x512xf32>
    tpu.vector_store %arg10[%c1_30, %c0_31, %c0_32], %52 {strides = array<i32>} : memref<25x8x512xf32, #tpu.memory_space<vmem>>, vector<1x8x512xf32>,
    %53 = arith.maximumf %30, %46 : vector<8x512xf32>
    %c32_i32 = arith.constant 32 : i32
    %54 = tpu.dynamic_rotate %20 by %c32_i32 dim 1 : vector<16x512xf32>, i32 -> vector<16x512xf32>
    %c2_33 = arith.constant 2 : index
    %c0_34 = arith.constant 0 : index
    %55 = vector.load %arg2[%c2_33, %c0_34] : memref<25x512xf32, #tpu.memory_space<vmem>>, vector<1x512xf32>
    %56 = vector.broadcast %55 : vector<1x512xf32> to vector<16x512xf32>
    %57 = arith.mulf %54, %56 : vector<16x512xf32>
    %58 = vector.extract_strided_slice %57 {offsets = [0, 0], sizes = [8, 512], strides = [1, 1]} : vector<16x512xf32> to vector<8x512xf32>
    %59 = vector.extract_strided_slice %57 {offsets = [8, 0], sizes = [8, 512], strides = [1, 1]} : vector<16x512xf32> to vector<8x512xf32>
    %c0_35 = arith.constant 0 : index
    %c2_36 = arith.constant 2 : index
    %60 = vector.load %arg7[%c0_35, %c2_36] : memref<8x25xf32, #tpu.memory_space<vmem>>, vector<8x1xf32>
    %61 = vector.broadcast %60 : vector<8x1xf32> to vector<8x512xf32>
    %62 = arith.addf %58, %61 : vector<8x512xf32>
    %63 = arith.mulf %19, %62 : vector<8x512xf32>
    %c2_37 = arith.constant 2 : index
    %c0_38 = arith.constant 0 : index
    %c0_39 = arith.constant 0 : index
    %64 = vector.load %arg9[%c2_37, %c0_38, %c0_39] : memref<25x8x512xf32, #tpu.memory_space<vmem>>, vector<1x8x512xf32>
    %65 = vector.shape_cast %64 : vector<1x8x512xf32> to vector<8x512xf32>
    %66 = vector.shape_cast %63 : vector<8x512xf32> to vector<1x8x512xf32>
    tpu.vector_store %arg9[%c2_37, %c0_38, %c0_39], %66 {strides = array<i32>} : memref<25x8x512xf32, #tpu.memory_space<vmem>>, vector<1x8x512xf32>,
    %c2_40 = arith.constant 2 : index
    %c0_41 = arith.constant 0 : index
    %c0_42 = arith.constant 0 : index
    %67 = vector.load %arg10[%c2_40, %c0_41, %c0_42] : memref<25x8x512xf32, #tpu.memory_space<vmem>>, vector<1x8x512xf32>
    %68 = vector.shape_cast %67 : vector<1x8x512xf32> to vector<8x512xf32>
    %69 = vector.shape_cast %59 : vector<8x512xf32> to vector<1x8x512xf32>
    tpu.vector_store %arg10[%c2_40, %c0_41, %c0_42], %69 {strides = array<i32>} : memref<25x8x512xf32, #tpu.memory_space<vmem>>, vector<1x8x512xf32>,
    %70 = arith.maximumf %53, %63 : vector<8x512xf32>
    %c31_i32 = arith.constant 31 : i32
    %71 = tpu.dynamic_rotate %20 by %c31_i32 dim 1 : vector<16x512xf32>, i32 -> vector<16x512xf32>
    %c3_43 = arith.constant 3 : index
    %c0_44 = arith.constant 0 : index
    %72 = vector.load %arg2[%c3_43, %c0_44] : memref<25x512xf32, #tpu.memory_space<vmem>>, vector<1x512xf32>
    %73 = vector.broadcast %72 : vector<1x512xf32> to vector<16x512xf32>
    %74 = arith.mulf %71, %73 : vector<16x512xf32>
    %75 = vector.extract_strided_slice %74 {offsets = [0, 0], sizes = [8, 512], strides = [1, 1]} : vector<16x512xf32> to vector<8x512xf32>
    %76 = vector.extract_strided_slice %74 {offsets = [8, 0], sizes = [8, 512], strides = [1, 1]} : vector<16x512xf32> to vector<8x512xf32>
    %c0_45 = arith.constant 0 : index
    %c3_46 = arith.constant 3 : index
    %77 = vector.load %arg7[%c0_45, %c3_46] : memref<8x25xf32, #tpu.memory_space<vmem>>, vector<8x1xf32>
    %78 = vector.broadcast %77 : vector<8x1xf32> to vector<8x512xf32>
    %79 = arith.addf %75, %78 : vector<8x512xf32>
    %80 = arith.mulf %19, %79 : vector<8x512xf32>
    %c3_47 = arith.constant 3 : index
    %c0_48 = arith.constant 0 : index
    %c0_49 = arith.constant 0 : index
    %81 = vector.load %arg9[%c3_47, %c0_48, %c0_49] : memref<25x8x512xf32, #tpu.memory_space<vmem>>, vector<1x8x512xf32>
    %82 = vector.shape_cast %81 : vector<1x8x512xf32> to vector<8x512xf32>
    %83 = vector.shape_cast %80 : vector<8x512xf32> to vector<1x8x512xf32>
    tpu.vector_store %arg9[%c3_47, %c0_48, %c0_49], %83 {strides = array<i32>} : memref<25x8x512xf32, #tpu.memory_space<vmem>>, vector<1x8x512xf32>,
    %c3_50 = arith.constant 3 : index
    %c0_51 = arith.constant 0 : index
    %c0_52 = arith.constant 0 : index
    %84 = vector.load %arg10[%c3_50, %c0_51, %c0_52] : memref<25x8x512xf32, #tpu.memory_space<vmem>>, vector<1x8x512xf32>
    %85 = vector.shape_cast %84 : vector<1x8x512xf32> to vector<8x512xf32>
    %86 = vector.shape_cast %76 : vector<8x512xf32> to vector<1x8x512xf32>
    tpu.vector_store %arg10[%c3_50, %c0_51, %c0_52], %86 {strides = array<i32>} : memref<25x8x512xf32, #tpu.memory_space<vmem>>, vector<1x8x512xf32>,
    %87 = arith.maximumf %70, %80 : vector<8x512xf32>
    %c30_i32 = arith.constant 30 : i32
    %88 = tpu.dynamic_rotate %20 by %c30_i32 dim 1 : vector<16x512xf32>, i32 -> vector<16x512xf32>
    %c4_53 = arith.constant 4 : index
    %c0_54 = arith.constant 0 : index
    %89 = vector.load %arg2[%c4_53, %c0_54] : memref<25x512xf32, #tpu.memory_space<vmem>>, vector<1x512xf32>
    %90 = vector.broadcast %89 : vector<1x512xf32> to vector<16x512xf32>
    %91 = arith.mulf %88, %90 : vector<16x512xf32>
    %92 = vector.extract_strided_slice %91 {offsets = [0, 0], sizes = [8, 512], strides = [1, 1]} : vector<16x512xf32> to vector<8x512xf32>
    %93 = vector.extract_strided_slice %91 {offsets = [8, 0], sizes = [8, 512], strides = [1, 1]} : vector<16x512xf32> to vector<8x512xf32>
    %c0_55 = arith.constant 0 : index
    %c4_56 = arith.constant 4 : index
    %94 = vector.load %arg7[%c0_55, %c4_56] : memref<8x25xf32, #tpu.memory_space<vmem>>, vector<8x1xf32>
    %95 = vector.broadcast %94 : vector<8x1xf32> to vector<8x512xf32>
    %96 = arith.addf %92, %95 : vector<8x512xf32>
    %97 = arith.mulf %19, %96 : vector<8x512xf32>
    %c4_57 = arith.constant 4 : index
    %c0_58 = arith.constant 0 : index
    %c0_59 = arith.constant 0 : index
    %98 = vector.load %arg9[%c4_57, %c0_58, %c0_59] : memref<25x8x512xf32, #tpu.memory_space<vmem>>, vector<1x8x512xf32>
    %99 = vector.shape_cast %98 : vector<1x8x512xf32> to vector<8x512xf32>
    %100 = vector.shape_cast %97 : vector<8x512xf32> to vector<1x8x512xf32>
    tpu.vector_store %arg9[%c4_57, %c0_58, %c0_59], %100 {strides = array<i32>} : memref<25x8x512xf32, #tpu.memory_space<vmem>>, vector<1x8x512xf32>,
    %c4_60 = arith.constant 4 : index
    %c0_61 = arith.constant 0 : index
    %c0_62 = arith.constant 0 : index
    %101 = vector.load %arg10[%c4_60, %c0_61, %c0_62] : memref<25x8x512xf32, #tpu.memory_space<vmem>>, vector<1x8x512xf32>
    %102 = vector.shape_cast %101 : vector<1x8x512xf32> to vector<8x512xf32>
    %103 = vector.shape_cast %93 : vector<8x512xf32> to vector<1x8x512xf32>
    tpu.vector_store %arg10[%c4_60, %c0_61, %c0_62], %103 {strides = array<i32>} : memref<25x8x512xf32, #tpu.memory_space<vmem>>, vector<1x8x512xf32>,
    %104 = arith.maximumf %87, %97 : vector<8x512xf32>
    %c18_i32 = arith.constant 18 : i32
    %105 = tpu.dynamic_rotate %20 by %c18_i32 dim 1 : vector<16x512xf32>, i32 -> vector<16x512xf32>
    %c5 = arith.constant 5 : index
    %c0_63 = arith.constant 0 : index
    %106 = vector.load %arg2[%c5, %c0_63] : memref<25x512xf32, #tpu.memory_space<vmem>>, vector<1x512xf32>
    %107 = vector.broadcast %106 : vector<1x512xf32> to vector<16x512xf32>
    %108 = arith.mulf %105, %107 : vector<16x512xf32>
    %109 = vector.extract_strided_slice %108 {offsets = [0, 0], sizes = [8, 512], strides = [1, 1]} : vector<16x512xf32> to vector<8x512xf32>
    %110 = vector.extract_strided_slice %108 {offsets = [8, 0], sizes = [8, 512], strides = [1, 1]} : vector<16x512xf32> to vector<8x512xf32>
    %c0_64 = arith.constant 0 : index
    %c5_65 = arith.constant 5 : index
    %111 = vector.load %arg7[%c0_64, %c5_65] : memref<8x25xf32, #tpu.memory_space<vmem>>, vector<8x1xf32>
    %112 = vector.broadcast %111 : vector<8x1xf32> to vector<8x512xf32>
    %113 = arith.addf %109, %112 : vector<8x512xf32>
    %114 = arith.mulf %19, %113 : vector<8x512xf32>
    %c5_66 = arith.constant 5 : index
    %c0_67 = arith.constant 0 : index
    %c0_68 = arith.constant 0 : index
    %115 = vector.load %arg9[%c5_66, %c0_67, %c0_68] : memref<25x8x512xf32, #tpu.memory_space<vmem>>, vector<1x8x512xf32>
    %116 = vector.shape_cast %115 : vector<1x8x512xf32> to vector<8x512xf32>
    %117 = vector.shape_cast %114 : vector<8x512xf32> to vector<1x8x512xf32>
    tpu.vector_store %arg9[%c5_66, %c0_67, %c0_68], %117 {strides = array<i32>} : memref<25x8x512xf32, #tpu.memory_space<vmem>>, vector<1x8x512xf32>,
    %c5_69 = arith.constant 5 : index
    %c0_70 = arith.constant 0 : index
    %c0_71 = arith.constant 0 : index
    %118 = vector.load %arg10[%c5_69, %c0_70, %c0_71] : memref<25x8x512xf32, #tpu.memory_space<vmem>>, vector<1x8x512xf32>
    %119 = vector.shape_cast %118 : vector<1x8x512xf32> to vector<8x512xf32>
    %120 = vector.shape_cast %110 : vector<8x512xf32> to vector<1x8x512xf32>
    tpu.vector_store %arg10[%c5_69, %c0_70, %c0_71], %120 {strides = array<i32>} : memref<25x8x512xf32, #tpu.memory_space<vmem>>, vector<1x8x512xf32>,
    %121 = arith.maximumf %104, %114 : vector<8x512xf32>
    %c17_i32 = arith.constant 17 : i32
    %122 = tpu.dynamic_rotate %20 by %c17_i32 dim 1 : vector<16x512xf32>, i32 -> vector<16x512xf32>
    %c6 = arith.constant 6 : index
    %c0_72 = arith.constant 0 : index
    %123 = vector.load %arg2[%c6, %c0_72] : memref<25x512xf32, #tpu.memory_space<vmem>>, vector<1x512xf32>
    %124 = vector.broadcast %123 : vector<1x512xf32> to vector<16x512xf32>
    %125 = arith.mulf %122, %124 : vector<16x512xf32>
    %126 = vector.extract_strided_slice %125 {offsets = [0, 0], sizes = [8, 512], strides = [1, 1]} : vector<16x512xf32> to vector<8x512xf32>
    %127 = vector.extract_strided_slice %125 {offsets = [8, 0], sizes = [8, 512], strides = [1, 1]} : vector<16x512xf32> to vector<8x512xf32>
    %c0_73 = arith.constant 0 : index
    %c6_74 = arith.constant 6 : index
    %128 = vector.load %arg7[%c0_73, %c6_74] : memref<8x25xf32, #tpu.memory_space<vmem>>, vector<8x1xf32>
    %129 = vector.broadcast %128 : vector<8x1xf32> to vector<8x512xf32>
    %130 = arith.addf %126, %129 : vector<8x512xf32>
    %131 = arith.mulf %19, %130 : vector<8x512xf32>
    %c6_75 = arith.constant 6 : index
    %c0_76 = arith.constant 0 : index
    %c0_77 = arith.constant 0 : index
    %132 = vector.load %arg9[%c6_75, %c0_76, %c0_77] : memref<25x8x512xf32, #tpu.memory_space<vmem>>, vector<1x8x512xf32>
    %133 = vector.shape_cast %132 : vector<1x8x512xf32> to vector<8x512xf32>
    %134 = vector.shape_cast %131 : vector<8x512xf32> to vector<1x8x512xf32>
    tpu.vector_store %arg9[%c6_75, %c0_76, %c0_77], %134 {strides = array<i32>} : memref<25x8x512xf32, #tpu.memory_space<vmem>>, vector<1x8x512xf32>,
    %c6_78 = arith.constant 6 : index
    %c0_79 = arith.constant 0 : index
    %c0_80 = arith.constant 0 : index
    %135 = vector.load %arg10[%c6_78, %c0_79, %c0_80] : memref<25x8x512xf32, #tpu.memory_space<vmem>>, vector<1x8x512xf32>
    %136 = vector.shape_cast %135 : vector<1x8x512xf32> to vector<8x512xf32>
    %137 = vector.shape_cast %127 : vector<8x512xf32> to vector<1x8x512xf32>
    tpu.vector_store %arg10[%c6_78, %c0_79, %c0_80], %137 {strides = array<i32>} : memref<25x8x512xf32, #tpu.memory_space<vmem>>, vector<1x8x512xf32>,
    %138 = arith.maximumf %121, %131 : vector<8x512xf32>
    %c16_i32 = arith.constant 16 : i32
    %139 = tpu.dynamic_rotate %20 by %c16_i32 dim 1 : vector<16x512xf32>, i32 -> vector<16x512xf32>
    %c7 = arith.constant 7 : index
    %c0_81 = arith.constant 0 : index
    %140 = vector.load %arg2[%c7, %c0_81] : memref<25x512xf32, #tpu.memory_space<vmem>>, vector<1x512xf32>
    %141 = vector.broadcast %140 : vector<1x512xf32> to vector<16x512xf32>
    %142 = arith.mulf %139, %141 : vector<16x512xf32>
    %143 = vector.extract_strided_slice %142 {offsets = [0, 0], sizes = [8, 512], strides = [1, 1]} : vector<16x512xf32> to vector<8x512xf32>
    %144 = vector.extract_strided_slice %142 {offsets = [8, 0], sizes = [8, 512], strides = [1, 1]} : vector<16x512xf32> to vector<8x512xf32>
    %c0_82 = arith.constant 0 : index
    %c7_83 = arith.constant 7 : index
    %145 = vector.load %arg7[%c0_82, %c7_83] : memref<8x25xf32, #tpu.memory_space<vmem>>, vector<8x1xf32>
    %146 = vector.broadcast %145 : vector<8x1xf32> to vector<8x512xf32>
    %147 = arith.addf %143, %146 : vector<8x512xf32>
    %148 = arith.mulf %19, %147 : vector<8x512xf32>
    %c7_84 = arith.constant 7 : index
    %c0_85 = arith.constant 0 : index
    %c0_86 = arith.constant 0 : index
    %149 = vector.load %arg9[%c7_84, %c0_85, %c0_86] : memref<25x8x512xf32, #tpu.memory_space<vmem>>, vector<1x8x512xf32>
    %150 = vector.shape_cast %149 : vector<1x8x512xf32> to vector<8x512xf32>
    %151 = vector.shape_cast %148 : vector<8x512xf32> to vector<1x8x512xf32>
    tpu.vector_store %arg9[%c7_84, %c0_85, %c0_86], %151 {strides = array<i32>} : memref<25x8x512xf32, #tpu.memory_space<vmem>>, vector<1x8x512xf32>,
    %c7_87 = arith.constant 7 : index
    %c0_88 = arith.constant 0 : index
    %c0_89 = arith.constant 0 : index
    %152 = vector.load %arg10[%c7_87, %c0_88, %c0_89] : memref<25x8x512xf32, #tpu.memory_space<vmem>>, vector<1x8x512xf32>
    %153 = vector.shape_cast %152 : vector<1x8x512xf32> to vector<8x512xf32>
    %154 = vector.shape_cast %144 : vector<8x512xf32> to vector<1x8x512xf32>
    tpu.vector_store %arg10[%c7_87, %c0_88, %c0_89], %154 {strides = array<i32>} : memref<25x8x512xf32, #tpu.memory_space<vmem>>, vector<1x8x512xf32>,
    %155 = arith.maximumf %138, %148 : vector<8x512xf32>
    %c15_i32 = arith.constant 15 : i32
    %156 = tpu.dynamic_rotate %20 by %c15_i32 dim 1 : vector<16x512xf32>, i32 -> vector<16x512xf32>
    %c8 = arith.constant 8 : index
    %c0_90 = arith.constant 0 : index
    %157 = vector.load %arg2[%c8, %c0_90] : memref<25x512xf32, #tpu.memory_space<vmem>>, vector<1x512xf32>
    %158 = vector.broadcast %157 : vector<1x512xf32> to vector<16x512xf32>
    %159 = arith.mulf %156, %158 : vector<16x512xf32>
    %160 = vector.extract_strided_slice %159 {offsets = [0, 0], sizes = [8, 512], strides = [1, 1]} : vector<16x512xf32> to vector<8x512xf32>
    %161 = vector.extract_strided_slice %159 {offsets = [8, 0], sizes = [8, 512], strides = [1, 1]} : vector<16x512xf32> to vector<8x512xf32>
    %c0_91 = arith.constant 0 : index
    %c8_92 = arith.constant 8 : index
    %162 = vector.load %arg7[%c0_91, %c8_92] : memref<8x25xf32, #tpu.memory_space<vmem>>, vector<8x1xf32>
    %163 = vector.broadcast %162 : vector<8x1xf32> to vector<8x512xf32>
    %164 = arith.addf %160, %163 : vector<8x512xf32>
    %165 = arith.mulf %19, %164 : vector<8x512xf32>
    %c8_93 = arith.constant 8 : index
    %c0_94 = arith.constant 0 : index
    %c0_95 = arith.constant 0 : index
    %166 = vector.load %arg9[%c8_93, %c0_94, %c0_95] : memref<25x8x512xf32, #tpu.memory_space<vmem>>, vector<1x8x512xf32>
    %167 = vector.shape_cast %166 : vector<1x8x512xf32> to vector<8x512xf32>
    %168 = vector.shape_cast %165 : vector<8x512xf32> to vector<1x8x512xf32>
    tpu.vector_store %arg9[%c8_93, %c0_94, %c0_95], %168 {strides = array<i32>} : memref<25x8x512xf32, #tpu.memory_space<vmem>>, vector<1x8x512xf32>,
    %c8_96 = arith.constant 8 : index
    %c0_97 = arith.constant 0 : index
    %c0_98 = arith.constant 0 : index
    %169 = vector.load %arg10[%c8_96, %c0_97, %c0_98] : memref<25x8x512xf32, #tpu.memory_space<vmem>>, vector<1x8x512xf32>
    %170 = vector.shape_cast %169 : vector<1x8x512xf32> to vector<8x512xf32>
    %171 = vector.shape_cast %161 : vector<8x512xf32> to vector<1x8x512xf32>
    tpu.vector_store %arg10[%c8_96, %c0_97, %c0_98], %171 {strides = array<i32>} : memref<25x8x512xf32, #tpu.memory_space<vmem>>, vector<1x8x512xf32>,
    %172 = arith.maximumf %155, %165 : vector<8x512xf32>
    %c14_i32 = arith.constant 14 : i32
    %173 = tpu.dynamic_rotate %20 by %c14_i32 dim 1 : vector<16x512xf32>, i32 -> vector<16x512xf32>
    %c9 = arith.constant 9 : index
    %c0_99 = arith.constant 0 : index
    %174 = vector.load %arg2[%c9, %c0_99] : memref<25x512xf32, #tpu.memory_space<vmem>>, vector<1x512xf32>
    %175 = vector.broadcast %174 : vector<1x512xf32> to vector<16x512xf32>
    %176 = arith.mulf %173, %175 : vector<16x512xf32>
    %177 = vector.extract_strided_slice %176 {offsets = [0, 0], sizes = [8, 512], strides = [1, 1]} : vector<16x512xf32> to vector<8x512xf32>
    %178 = vector.extract_strided_slice %176 {offsets = [8, 0], sizes = [8, 512], strides = [1, 1]} : vector<16x512xf32> to vector<8x512xf32>
    %c0_100 = arith.constant 0 : index
    %c9_101 = arith.constant 9 : index
    %179 = vector.load %arg7[%c0_100, %c9_101] : memref<8x25xf32, #tpu.memory_space<vmem>>, vector<8x1xf32>
    %180 = vector.broadcast %179 : vector<8x1xf32> to vector<8x512xf32>
    %181 = arith.addf %177, %180 : vector<8x512xf32>
    %182 = arith.mulf %19, %181 : vector<8x512xf32>
    %c9_102 = arith.constant 9 : index
    %c0_103 = arith.constant 0 : index
    %c0_104 = arith.constant 0 : index
    %183 = vector.load %arg9[%c9_102, %c0_103, %c0_104] : memref<25x8x512xf32, #tpu.memory_space<vmem>>, vector<1x8x512xf32>
    %184 = vector.shape_cast %183 : vector<1x8x512xf32> to vector<8x512xf32>
    %185 = vector.shape_cast %182 : vector<8x512xf32> to vector<1x8x512xf32>
    tpu.vector_store %arg9[%c9_102, %c0_103, %c0_104], %185 {strides = array<i32>} : memref<25x8x512xf32, #tpu.memory_space<vmem>>, vector<1x8x512xf32>,
    %c9_105 = arith.constant 9 : index
    %c0_106 = arith.constant 0 : index
    %c0_107 = arith.constant 0 : index
    %186 = vector.load %arg10[%c9_105, %c0_106, %c0_107] : memref<25x8x512xf32, #tpu.memory_space<vmem>>, vector<1x8x512xf32>
    %187 = vector.shape_cast %186 : vector<1x8x512xf32> to vector<8x512xf32>
    %188 = vector.shape_cast %178 : vector<8x512xf32> to vector<1x8x512xf32>
    tpu.vector_store %arg10[%c9_105, %c0_106, %c0_107], %188 {strides = array<i32>} : memref<25x8x512xf32, #tpu.memory_space<vmem>>, vector<1x8x512xf32>,
    %189 = arith.maximumf %172, %182 : vector<8x512xf32>
    %c2_i32 = arith.constant 2 : i32
    %190 = tpu.dynamic_rotate %20 by %c2_i32 dim 1 : vector<16x512xf32>, i32 -> vector<16x512xf32>
    %c10 = arith.constant 10 : index
    %c0_108 = arith.constant 0 : index
    %191 = vector.load %arg2[%c10, %c0_108] : memref<25x512xf32, #tpu.memory_space<vmem>>, vector<1x512xf32>
    %192 = vector.broadcast %191 : vector<1x512xf32> to vector<16x512xf32>
    %193 = arith.mulf %190, %192 : vector<16x512xf32>
    %194 = vector.extract_strided_slice %193 {offsets = [0, 0], sizes = [8, 512], strides = [1, 1]} : vector<16x512xf32> to vector<8x512xf32>
    %195 = vector.extract_strided_slice %193 {offsets = [8, 0], sizes = [8, 512], strides = [1, 1]} : vector<16x512xf32> to vector<8x512xf32>
    %c0_109 = arith.constant 0 : index
    %c10_110 = arith.constant 10 : index
    %196 = vector.load %arg7[%c0_109, %c10_110] : memref<8x25xf32, #tpu.memory_space<vmem>>, vector<8x1xf32>
    %197 = vector.broadcast %196 : vector<8x1xf32> to vector<8x512xf32>
    %198 = arith.addf %194, %197 : vector<8x512xf32>
    %199 = arith.mulf %19, %198 : vector<8x512xf32>
    %c10_111 = arith.constant 10 : index
    %c0_112 = arith.constant 0 : index
    %c0_113 = arith.constant 0 : index
    %200 = vector.load %arg9[%c10_111, %c0_112, %c0_113] : memref<25x8x512xf32, #tpu.memory_space<vmem>>, vector<1x8x512xf32>
    %201 = vector.shape_cast %200 : vector<1x8x512xf32> to vector<8x512xf32>
    %202 = vector.shape_cast %199 : vector<8x512xf32> to vector<1x8x512xf32>
    tpu.vector_store %arg9[%c10_111, %c0_112, %c0_113], %202 {strides = array<i32>} : memref<25x8x512xf32, #tpu.memory_space<vmem>>, vector<1x8x512xf32>,
    %c10_114 = arith.constant 10 : index
    %c0_115 = arith.constant 0 : index
    %c0_116 = arith.constant 0 : index
    %203 = vector.load %arg10[%c10_114, %c0_115, %c0_116] : memref<25x8x512xf32, #tpu.memory_space<vmem>>, vector<1x8x512xf32>
    %204 = vector.shape_cast %203 : vector<1x8x512xf32> to vector<8x512xf32>
    %205 = vector.shape_cast %195 : vector<8x512xf32> to vector<1x8x512xf32>
    tpu.vector_store %arg10[%c10_114, %c0_115, %c0_116], %205 {strides = array<i32>} : memref<25x8x512xf32, #tpu.memory_space<vmem>>, vector<1x8x512xf32>,
    %206 = arith.maximumf %189, %199 : vector<8x512xf32>
    %c1_i32 = arith.constant 1 : i32
    %207 = tpu.dynamic_rotate %20 by %c1_i32 dim 1 : vector<16x512xf32>, i32 -> vector<16x512xf32>
    %c11 = arith.constant 11 : index
    %c0_117 = arith.constant 0 : index
    %208 = vector.load %arg2[%c11, %c0_117] : memref<25x512xf32, #tpu.memory_space<vmem>>, vector<1x512xf32>
    %209 = vector.broadcast %208 : vector<1x512xf32> to vector<16x512xf32>
    %210 = arith.mulf %207, %209 : vector<16x512xf32>
    %211 = vector.extract_strided_slice %210 {offsets = [0, 0], sizes = [8, 512], strides = [1, 1]} : vector<16x512xf32> to vector<8x512xf32>
    %212 = vector.extract_strided_slice %210 {offsets = [8, 0], sizes = [8, 512], strides = [1, 1]} : vector<16x512xf32> to vector<8x512xf32>
    %c0_118 = arith.constant 0 : index
    %c11_119 = arith.constant 11 : index
    %213 = vector.load %arg7[%c0_118, %c11_119] : memref<8x25xf32, #tpu.memory_space<vmem>>, vector<8x1xf32>
    %214 = vector.broadcast %213 : vector<8x1xf32> to vector<8x512xf32>
    %215 = arith.addf %211, %214 : vector<8x512xf32>
    %216 = arith.mulf %19, %215 : vector<8x512xf32>
    %c11_120 = arith.constant 11 : index
    %c0_121 = arith.constant 0 : index
    %c0_122 = arith.constant 0 : index
    %217 = vector.load %arg9[%c11_120, %c0_121, %c0_122] : memref<25x8x512xf32, #tpu.memory_space<vmem>>, vector<1x8x512xf32>
    %218 = vector.shape_cast %217 : vector<1x8x512xf32> to vector<8x512xf32>
    %219 = vector.shape_cast %216 : vector<8x512xf32> to vector<1x8x512xf32>
    tpu.vector_store %arg9[%c11_120, %c0_121, %c0_122], %219 {strides = array<i32>} : memref<25x8x512xf32, #tpu.memory_space<vmem>>, vector<1x8x512xf32>,
    %c11_123 = arith.constant 11 : index
    %c0_124 = arith.constant 0 : index
    %c0_125 = arith.constant 0 : index
    %220 = vector.load %arg10[%c11_123, %c0_124, %c0_125] : memref<25x8x512xf32, #tpu.memory_space<vmem>>, vector<1x8x512xf32>
    %221 = vector.shape_cast %220 : vector<1x8x512xf32> to vector<8x512xf32>
    %222 = vector.shape_cast %212 : vector<8x512xf32> to vector<1x8x512xf32>
    tpu.vector_store %arg10[%c11_123, %c0_124, %c0_125], %222 {strides = array<i32>} : memref<25x8x512xf32, #tpu.memory_space<vmem>>, vector<1x8x512xf32>,
    %223 = arith.maximumf %206, %216 : vector<8x512xf32>
    %224 = vector.extract_strided_slice %20 {offsets = [0, 0], sizes = [8, 512], strides = [1, 1]} : vector<16x512xf32> to vector<8x512xf32>
    %225 = vector.extract_strided_slice %20 {offsets = [8, 0], sizes = [8, 512], strides = [1, 1]} : vector<16x512xf32> to vector<8x512xf32>
    %c0_126 = arith.constant 0 : index
    %c12 = arith.constant 12 : index
    %226 = vector.load %arg7[%c0_126, %c12] : memref<8x25xf32, #tpu.memory_space<vmem>>, vector<8x1xf32>
    %227 = vector.broadcast %226 : vector<8x1xf32> to vector<8x512xf32>
    %228 = arith.addf %224, %227 : vector<8x512xf32>
    %229 = arith.mulf %19, %228 : vector<8x512xf32>
    %c12_127 = arith.constant 12 : index
    %c0_128 = arith.constant 0 : index
    %c0_129 = arith.constant 0 : index
    %230 = vector.load %arg9[%c12_127, %c0_128, %c0_129] : memref<25x8x512xf32, #tpu.memory_space<vmem>>, vector<1x8x512xf32>
    %231 = vector.shape_cast %230 : vector<1x8x512xf32> to vector<8x512xf32>
    %232 = vector.shape_cast %229 : vector<8x512xf32> to vector<1x8x512xf32>
    tpu.vector_store %arg9[%c12_127, %c0_128, %c0_129], %232 {strides = array<i32>} : memref<25x8x512xf32, #tpu.memory_space<vmem>>, vector<1x8x512xf32>,
    %c12_130 = arith.constant 12 : index
    %c0_131 = arith.constant 0 : index
    %c0_132 = arith.constant 0 : index
    %233 = vector.load %arg10[%c12_130, %c0_131, %c0_132] : memref<25x8x512xf32, #tpu.memory_space<vmem>>, vector<1x8x512xf32>
    %234 = vector.shape_cast %233 : vector<1x8x512xf32> to vector<8x512xf32>
    %235 = vector.shape_cast %225 : vector<8x512xf32> to vector<1x8x512xf32>
    tpu.vector_store %arg10[%c12_130, %c0_131, %c0_132], %235 {strides = array<i32>} : memref<25x8x512xf32, #tpu.memory_space<vmem>>, vector<1x8x512xf32>,
    %236 = arith.maximumf %223, %229 : vector<8x512xf32>
    %c511_i32 = arith.constant 511 : i32
    %237 = tpu.dynamic_rotate %20 by %c511_i32 dim 1 : vector<16x512xf32>, i32 -> vector<16x512xf32>
    %c13 = arith.constant 13 : index
    %c0_133 = arith.constant 0 : index
    %238 = vector.load %arg2[%c13, %c0_133] : memref<25x512xf32, #tpu.memory_space<vmem>>, vector<1x512xf32>
    %239 = vector.broadcast %238 : vector<1x512xf32> to vector<16x512xf32>
    %240 = arith.mulf %237, %239 : vector<16x512xf32>
    %241 = vector.extract_strided_slice %240 {offsets = [0, 0], sizes = [8, 512], strides = [1, 1]} : vector<16x512xf32> to vector<8x512xf32>
    %242 = vector.extract_strided_slice %240 {offsets = [8, 0], sizes = [8, 512], strides = [1, 1]} : vector<16x512xf32> to vector<8x512xf32>
    %c0_134 = arith.constant 0 : index
    %c13_135 = arith.constant 13 : index
    %243 = vector.load %arg7[%c0_134, %c13_135] : memref<8x25xf32, #tpu.memory_space<vmem>>, vector<8x1xf32>
    %244 = vector.broadcast %243 : vector<8x1xf32> to vector<8x512xf32>
    %245 = arith.addf %241, %244 : vector<8x512xf32>
    %246 = arith.mulf %19, %245 : vector<8x512xf32>
    %c13_136 = arith.constant 13 : index
    %c0_137 = arith.constant 0 : index
    %c0_138 = arith.constant 0 : index
    %247 = vector.load %arg9[%c13_136, %c0_137, %c0_138] : memref<25x8x512xf32, #tpu.memory_space<vmem>>, vector<1x8x512xf32>
    %248 = vector.shape_cast %247 : vector<1x8x512xf32> to vector<8x512xf32>
    %249 = vector.shape_cast %246 : vector<8x512xf32> to vector<1x8x512xf32>
    tpu.vector_store %arg9[%c13_136, %c0_137, %c0_138], %249 {strides = array<i32>} : memref<25x8x512xf32, #tpu.memory_space<vmem>>, vector<1x8x512xf32>,
    %c13_139 = arith.constant 13 : index
    %c0_140 = arith.constant 0 : index
    %c0_141 = arith.constant 0 : index
    %250 = vector.load %arg10[%c13_139, %c0_140, %c0_141] : memref<25x8x512xf32, #tpu.memory_space<vmem>>, vector<1x8x512xf32>
    %251 = vector.shape_cast %250 : vector<1x8x512xf32> to vector<8x512xf32>
    %252 = vector.shape_cast %242 : vector<8x512xf32> to vector<1x8x512xf32>
    tpu.vector_store %arg10[%c13_139, %c0_140, %c0_141], %252 {strides = array<i32>} : memref<25x8x512xf32, #tpu.memory_space<vmem>>, vector<1x8x512xf32>,
    %253 = arith.maximumf %236, %246 : vector<8x512xf32>
    %c510_i32 = arith.constant 510 : i32
    %254 = tpu.dynamic_rotate %20 by %c510_i32 dim 1 : vector<16x512xf32>, i32 -> vector<16x512xf32>
    %c14 = arith.constant 14 : index
    %c0_142 = arith.constant 0 : index
    %255 = vector.load %arg2[%c14, %c0_142] : memref<25x512xf32, #tpu.memory_space<vmem>>, vector<1x512xf32>
    %256 = vector.broadcast %255 : vector<1x512xf32> to vector<16x512xf32>
    %257 = arith.mulf %254, %256 : vector<16x512xf32>
    %258 = vector.extract_strided_slice %257 {offsets = [0, 0], sizes = [8, 512], strides = [1, 1]} : vector<16x512xf32> to vector<8x512xf32>
    %259 = vector.extract_strided_slice %257 {offsets = [8, 0], sizes = [8, 512], strides = [1, 1]} : vector<16x512xf32> to vector<8x512xf32>
    %c0_143 = arith.constant 0 : index
    %c14_144 = arith.constant 14 : index
    %260 = vector.load %arg7[%c0_143, %c14_144] : memref<8x25xf32, #tpu.memory_space<vmem>>, vector<8x1xf32>
    %261 = vector.broadcast %260 : vector<8x1xf32> to vector<8x512xf32>
    %262 = arith.addf %258, %261 : vector<8x512xf32>
    %263 = arith.mulf %19, %262 : vector<8x512xf32>
    %c14_145 = arith.constant 14 : index
    %c0_146 = arith.constant 0 : index
    %c0_147 = arith.constant 0 : index
    %264 = vector.load %arg9[%c14_145, %c0_146, %c0_147] : memref<25x8x512xf32, #tpu.memory_space<vmem>>, vector<1x8x512xf32>
    %265 = vector.shape_cast %264 : vector<1x8x512xf32> to vector<8x512xf32>
    %266 = vector.shape_cast %263 : vector<8x512xf32> to vector<1x8x512xf32>
    tpu.vector_store %arg9[%c14_145, %c0_146, %c0_147], %266 {strides = array<i32>} : memref<25x8x512xf32, #tpu.memory_space<vmem>>, vector<1x8x512xf32>,
    %c14_148 = arith.constant 14 : index
    %c0_149 = arith.constant 0 : index
    %c0_150 = arith.constant 0 : index
    %267 = vector.load %arg10[%c14_148, %c0_149, %c0_150] : memref<25x8x512xf32, #tpu.memory_space<vmem>>, vector<1x8x512xf32>
    %268 = vector.shape_cast %267 : vector<1x8x512xf32> to vector<8x512xf32>
    %269 = vector.shape_cast %259 : vector<8x512xf32> to vector<1x8x512xf32>
    tpu.vector_store %arg10[%c14_148, %c0_149, %c0_150], %269 {strides = array<i32>} : memref<25x8x512xf32, #tpu.memory_space<vmem>>, vector<1x8x512xf32>,
    %270 = arith.maximumf %253, %263 : vector<8x512xf32>
    %c498_i32 = arith.constant 498 : i32
    %271 = tpu.dynamic_rotate %20 by %c498_i32 dim 1 : vector<16x512xf32>, i32 -> vector<16x512xf32>
    %c15 = arith.constant 15 : index
    %c0_151 = arith.constant 0 : index
    %272 = vector.load %arg2[%c15, %c0_151] : memref<25x512xf32, #tpu.memory_space<vmem>>, vector<1x512xf32>
    %273 = vector.broadcast %272 : vector<1x512xf32> to vector<16x512xf32>
    %274 = arith.mulf %271, %273 : vector<16x512xf32>
    %275 = vector.extract_strided_slice %274 {offsets = [0, 0], sizes = [8, 512], strides = [1, 1]} : vector<16x512xf32> to vector<8x512xf32>
    %276 = vector.extract_strided_slice %274 {offsets = [8, 0], sizes = [8, 512], strides = [1, 1]} : vector<16x512xf32> to vector<8x512xf32>
    %c0_152 = arith.constant 0 : index
    %c15_153 = arith.constant 15 : index
    %277 = vector.load %arg7[%c0_152, %c15_153] : memref<8x25xf32, #tpu.memory_space<vmem>>, vector<8x1xf32>
    %278 = vector.broadcast %277 : vector<8x1xf32> to vector<8x512xf32>
    %279 = arith.addf %275, %278 : vector<8x512xf32>
    %280 = arith.mulf %19, %279 : vector<8x512xf32>
    %c15_154 = arith.constant 15 : index
    %c0_155 = arith.constant 0 : index
    %c0_156 = arith.constant 0 : index
    %281 = vector.load %arg9[%c15_154, %c0_155, %c0_156] : memref<25x8x512xf32, #tpu.memory_space<vmem>>, vector<1x8x512xf32>
    %282 = vector.shape_cast %281 : vector<1x8x512xf32> to vector<8x512xf32>
    %283 = vector.shape_cast %280 : vector<8x512xf32> to vector<1x8x512xf32>
    tpu.vector_store %arg9[%c15_154, %c0_155, %c0_156], %283 {strides = array<i32>} : memref<25x8x512xf32, #tpu.memory_space<vmem>>, vector<1x8x512xf32>,
    %c15_157 = arith.constant 15 : index
    %c0_158 = arith.constant 0 : index
    %c0_159 = arith.constant 0 : index
    %284 = vector.load %arg10[%c15_157, %c0_158, %c0_159] : memref<25x8x512xf32, #tpu.memory_space<vmem>>, vector<1x8x512xf32>
    %285 = vector.shape_cast %284 : vector<1x8x512xf32> to vector<8x512xf32>
    %286 = vector.shape_cast %276 : vector<8x512xf32> to vector<1x8x512xf32>
    tpu.vector_store %arg10[%c15_157, %c0_158, %c0_159], %286 {strides = array<i32>} : memref<25x8x512xf32, #tpu.memory_space<vmem>>, vector<1x8x512xf32>,
    %287 = arith.maximumf %270, %280 : vector<8x512xf32>
    %c497_i32 = arith.constant 497 : i32
    %288 = tpu.dynamic_rotate %20 by %c497_i32 dim 1 : vector<16x512xf32>, i32 -> vector<16x512xf32>
    %c16 = arith.constant 16 : index
    %c0_160 = arith.constant 0 : index
    %289 = vector.load %arg2[%c16, %c0_160] : memref<25x512xf32, #tpu.memory_space<vmem>>, vector<1x512xf32>
    %290 = vector.broadcast %289 : vector<1x512xf32> to vector<16x512xf32>
    %291 = arith.mulf %288, %290 : vector<16x512xf32>
    %292 = vector.extract_strided_slice %291 {offsets = [0, 0], sizes = [8, 512], strides = [1, 1]} : vector<16x512xf32> to vector<8x512xf32>
    %293 = vector.extract_strided_slice %291 {offsets = [8, 0], sizes = [8, 512], strides = [1, 1]} : vector<16x512xf32> to vector<8x512xf32>
    %c0_161 = arith.constant 0 : index
    %c16_162 = arith.constant 16 : index
    %294 = vector.load %arg7[%c0_161, %c16_162] : memref<8x25xf32, #tpu.memory_space<vmem>>, vector<8x1xf32>
    %295 = vector.broadcast %294 : vector<8x1xf32> to vector<8x512xf32>
    %296 = arith.addf %292, %295 : vector<8x512xf32>
    %297 = arith.mulf %19, %296 : vector<8x512xf32>
    %c16_163 = arith.constant 16 : index
    %c0_164 = arith.constant 0 : index
    %c0_165 = arith.constant 0 : index
    %298 = vector.load %arg9[%c16_163, %c0_164, %c0_165] : memref<25x8x512xf32, #tpu.memory_space<vmem>>, vector<1x8x512xf32>
    %299 = vector.shape_cast %298 : vector<1x8x512xf32> to vector<8x512xf32>
    %300 = vector.shape_cast %297 : vector<8x512xf32> to vector<1x8x512xf32>
    tpu.vector_store %arg9[%c16_163, %c0_164, %c0_165], %300 {strides = array<i32>} : memref<25x8x512xf32, #tpu.memory_space<vmem>>, vector<1x8x512xf32>,
    %c16_166 = arith.constant 16 : index
    %c0_167 = arith.constant 0 : index
    %c0_168 = arith.constant 0 : index
    %301 = vector.load %arg10[%c16_166, %c0_167, %c0_168] : memref<25x8x512xf32, #tpu.memory_space<vmem>>, vector<1x8x512xf32>
    %302 = vector.shape_cast %301 : vector<1x8x512xf32> to vector<8x512xf32>
    %303 = vector.shape_cast %293 : vector<8x512xf32> to vector<1x8x512xf32>
    tpu.vector_store %arg10[%c16_166, %c0_167, %c0_168], %303 {strides = array<i32>} : memref<25x8x512xf32, #tpu.memory_space<vmem>>, vector<1x8x512xf32>,
    %304 = arith.maximumf %287, %297 : vector<8x512xf32>
    %c496_i32 = arith.constant 496 : i32
    %305 = tpu.dynamic_rotate %20 by %c496_i32 dim 1 : vector<16x512xf32>, i32 -> vector<16x512xf32>
    %c17 = arith.constant 17 : index
    %c0_169 = arith.constant 0 : index
    %306 = vector.load %arg2[%c17, %c0_169] : memref<25x512xf32, #tpu.memory_space<vmem>>, vector<1x512xf32>
    %307 = vector.broadcast %306 : vector<1x512xf32> to vector<16x512xf32>
    %308 = arith.mulf %305, %307 : vector<16x512xf32>
    %309 = vector.extract_strided_slice %308 {offsets = [0, 0], sizes = [8, 512], strides = [1, 1]} : vector<16x512xf32> to vector<8x512xf32>
    %310 = vector.extract_strided_slice %308 {offsets = [8, 0], sizes = [8, 512], strides = [1, 1]} : vector<16x512xf32> to vector<8x512xf32>
    %c0_170 = arith.constant 0 : index
    %c17_171 = arith.constant 17 : index
    %311 = vector.load %arg7[%c0_170, %c17_171] : memref<8x25xf32, #tpu.memory_space<vmem>>, vector<8x1xf32>
    %312 = vector.broadcast %311 : vector<8x1xf32> to vector<8x512xf32>
    %313 = arith.addf %309, %312 : vector<8x512xf32>
    %314 = arith.mulf %19, %313 : vector<8x512xf32>
    %c17_172 = arith.constant 17 : index
    %c0_173 = arith.constant 0 : index
    %c0_174 = arith.constant 0 : index
    %315 = vector.load %arg9[%c17_172, %c0_173, %c0_174] : memref<25x8x512xf32, #tpu.memory_space<vmem>>, vector<1x8x512xf32>
    %316 = vector.shape_cast %315 : vector<1x8x512xf32> to vector<8x512xf32>
    %317 = vector.shape_cast %314 : vector<8x512xf32> to vector<1x8x512xf32>
    tpu.vector_store %arg9[%c17_172, %c0_173, %c0_174], %317 {strides = array<i32>} : memref<25x8x512xf32, #tpu.memory_space<vmem>>, vector<1x8x512xf32>,
    %c17_175 = arith.constant 17 : index
    %c0_176 = arith.constant 0 : index
    %c0_177 = arith.constant 0 : index
    %318 = vector.load %arg10[%c17_175, %c0_176, %c0_177] : memref<25x8x512xf32, #tpu.memory_space<vmem>>, vector<1x8x512xf32>
    %319 = vector.shape_cast %318 : vector<1x8x512xf32> to vector<8x512xf32>
    %320 = vector.shape_cast %310 : vector<8x512xf32> to vector<1x8x512xf32>
    tpu.vector_store %arg10[%c17_175, %c0_176, %c0_177], %320 {strides = array<i32>} : memref<25x8x512xf32, #tpu.memory_space<vmem>>, vector<1x8x512xf32>,
    %321 = arith.maximumf %304, %314 : vector<8x512xf32>
    %c495_i32 = arith.constant 495 : i32
    %322 = tpu.dynamic_rotate %20 by %c495_i32 dim 1 : vector<16x512xf32>, i32 -> vector<16x512xf32>
    %c18 = arith.constant 18 : index
    %c0_178 = arith.constant 0 : index
    %323 = vector.load %arg2[%c18, %c0_178] : memref<25x512xf32, #tpu.memory_space<vmem>>, vector<1x512xf32>
    %324 = vector.broadcast %323 : vector<1x512xf32> to vector<16x512xf32>
    %325 = arith.mulf %322, %324 : vector<16x512xf32>
    %326 = vector.extract_strided_slice %325 {offsets = [0, 0], sizes = [8, 512], strides = [1, 1]} : vector<16x512xf32> to vector<8x512xf32>
    %327 = vector.extract_strided_slice %325 {offsets = [8, 0], sizes = [8, 512], strides = [1, 1]} : vector<16x512xf32> to vector<8x512xf32>
    %c0_179 = arith.constant 0 : index
    %c18_180 = arith.constant 18 : index
    %328 = vector.load %arg7[%c0_179, %c18_180] : memref<8x25xf32, #tpu.memory_space<vmem>>, vector<8x1xf32>
    %329 = vector.broadcast %328 : vector<8x1xf32> to vector<8x512xf32>
    %330 = arith.addf %326, %329 : vector<8x512xf32>
    %331 = arith.mulf %19, %330 : vector<8x512xf32>
    %c18_181 = arith.constant 18 : index
    %c0_182 = arith.constant 0 : index
    %c0_183 = arith.constant 0 : index
    %332 = vector.load %arg9[%c18_181, %c0_182, %c0_183] : memref<25x8x512xf32, #tpu.memory_space<vmem>>, vector<1x8x512xf32>
    %333 = vector.shape_cast %332 : vector<1x8x512xf32> to vector<8x512xf32>
    %334 = vector.shape_cast %331 : vector<8x512xf32> to vector<1x8x512xf32>
    tpu.vector_store %arg9[%c18_181, %c0_182, %c0_183], %334 {strides = array<i32>} : memref<25x8x512xf32, #tpu.memory_space<vmem>>, vector<1x8x512xf32>,
    %c18_184 = arith.constant 18 : index
    %c0_185 = arith.constant 0 : index
    %c0_186 = arith.constant 0 : index
    %335 = vector.load %arg10[%c18_184, %c0_185, %c0_186] : memref<25x8x512xf32, #tpu.memory_space<vmem>>, vector<1x8x512xf32>
    %336 = vector.shape_cast %335 : vector<1x8x512xf32> to vector<8x512xf32>
    %337 = vector.shape_cast %327 : vector<8x512xf32> to vector<1x8x512xf32>
    tpu.vector_store %arg10[%c18_184, %c0_185, %c0_186], %337 {strides = array<i32>} : memref<25x8x512xf32, #tpu.memory_space<vmem>>, vector<1x8x512xf32>,
    %338 = arith.maximumf %321, %331 : vector<8x512xf32>
    %c494_i32 = arith.constant 494 : i32
    %339 = tpu.dynamic_rotate %20 by %c494_i32 dim 1 : vector<16x512xf32>, i32 -> vector<16x512xf32>
    %c19 = arith.constant 19 : index
    %c0_187 = arith.constant 0 : index
    %340 = vector.load %arg2[%c19, %c0_187] : memref<25x512xf32, #tpu.memory_space<vmem>>, vector<1x512xf32>
    %341 = vector.broadcast %340 : vector<1x512xf32> to vector<16x512xf32>
    %342 = arith.mulf %339, %341 : vector<16x512xf32>
    %343 = vector.extract_strided_slice %342 {offsets = [0, 0], sizes = [8, 512], strides = [1, 1]} : vector<16x512xf32> to vector<8x512xf32>
    %344 = vector.extract_strided_slice %342 {offsets = [8, 0], sizes = [8, 512], strides = [1, 1]} : vector<16x512xf32> to vector<8x512xf32>
    %c0_188 = arith.constant 0 : index
    %c19_189 = arith.constant 19 : index
    %345 = vector.load %arg7[%c0_188, %c19_189] : memref<8x25xf32, #tpu.memory_space<vmem>>, vector<8x1xf32>
    %346 = vector.broadcast %345 : vector<8x1xf32> to vector<8x512xf32>
    %347 = arith.addf %343, %346 : vector<8x512xf32>
    %348 = arith.mulf %19, %347 : vector<8x512xf32>
    %c19_190 = arith.constant 19 : index
    %c0_191 = arith.constant 0 : index
    %c0_192 = arith.constant 0 : index
    %349 = vector.load %arg9[%c19_190, %c0_191, %c0_192] : memref<25x8x512xf32, #tpu.memory_space<vmem>>, vector<1x8x512xf32>
    %350 = vector.shape_cast %349 : vector<1x8x512xf32> to vector<8x512xf32>
    %351 = vector.shape_cast %348 : vector<8x512xf32> to vector<1x8x512xf32>
    tpu.vector_store %arg9[%c19_190, %c0_191, %c0_192], %351 {strides = array<i32>} : memref<25x8x512xf32, #tpu.memory_space<vmem>>, vector<1x8x512xf32>,
    %c19_193 = arith.constant 19 : index
    %c0_194 = arith.constant 0 : index
    %c0_195 = arith.constant 0 : index
    %352 = vector.load %arg10[%c19_193, %c0_194, %c0_195] : memref<25x8x512xf32, #tpu.memory_space<vmem>>, vector<1x8x512xf32>
    %353 = vector.shape_cast %352 : vector<1x8x512xf32> to vector<8x512xf32>
    %354 = vector.shape_cast %344 : vector<8x512xf32> to vector<1x8x512xf32>
    tpu.vector_store %arg10[%c19_193, %c0_194, %c0_195], %354 {strides = array<i32>} : memref<25x8x512xf32, #tpu.memory_space<vmem>>, vector<1x8x512xf32>,
    %355 = arith.maximumf %338, %348 : vector<8x512xf32>
    %c482_i32 = arith.constant 482 : i32
    %356 = tpu.dynamic_rotate %20 by %c482_i32 dim 1 : vector<16x512xf32>, i32 -> vector<16x512xf32>
    %c20 = arith.constant 20 : index
    %c0_196 = arith.constant 0 : index
    %357 = vector.load %arg2[%c20, %c0_196] : memref<25x512xf32, #tpu.memory_space<vmem>>, vector<1x512xf32>
    %358 = vector.broadcast %357 : vector<1x512xf32> to vector<16x512xf32>
    %359 = arith.mulf %356, %358 : vector<16x512xf32>
    %360 = vector.extract_strided_slice %359 {offsets = [0, 0], sizes = [8, 512], strides = [1, 1]} : vector<16x512xf32> to vector<8x512xf32>
    %361 = vector.extract_strided_slice %359 {offsets = [8, 0], sizes = [8, 512], strides = [1, 1]} : vector<16x512xf32> to vector<8x512xf32>
    %c0_197 = arith.constant 0 : index
    %c20_198 = arith.constant 20 : index
    %362 = vector.load %arg7[%c0_197, %c20_198] : memref<8x25xf32, #tpu.memory_space<vmem>>, vector<8x1xf32>
    %363 = vector.broadcast %362 : vector<8x1xf32> to vector<8x512xf32>
    %364 = arith.addf %360, %363 : vector<8x512xf32>
    %365 = arith.mulf %19, %364 : vector<8x512xf32>
    %c20_199 = arith.constant 20 : index
    %c0_200 = arith.constant 0 : index
    %c0_201 = arith.constant 0 : index
    %366 = vector.load %arg9[%c20_199, %c0_200, %c0_201] : memref<25x8x512xf32, #tpu.memory_space<vmem>>, vector<1x8x512xf32>
    %367 = vector.shape_cast %366 : vector<1x8x512xf32> to vector<8x512xf32>
    %368 = vector.shape_cast %365 : vector<8x512xf32> to vector<1x8x512xf32>
    tpu.vector_store %arg9[%c20_199, %c0_200, %c0_201], %368 {strides = array<i32>} : memref<25x8x512xf32, #tpu.memory_space<vmem>>, vector<1x8x512xf32>,
    %c20_202 = arith.constant 20 : index
    %c0_203 = arith.constant 0 : index
    %c0_204 = arith.constant 0 : index
    %369 = vector.load %arg10[%c20_202, %c0_203, %c0_204] : memref<25x8x512xf32, #tpu.memory_space<vmem>>, vector<1x8x512xf32>
    %370 = vector.shape_cast %369 : vector<1x8x512xf32> to vector<8x512xf32>
    %371 = vector.shape_cast %361 : vector<8x512xf32> to vector<1x8x512xf32>
    tpu.vector_store %arg10[%c20_202, %c0_203, %c0_204], %371 {strides = array<i32>} : memref<25x8x512xf32, #tpu.memory_space<vmem>>, vector<1x8x512xf32>,
    %372 = arith.maximumf %355, %365 : vector<8x512xf32>
    %c481_i32 = arith.constant 481 : i32
    %373 = tpu.dynamic_rotate %20 by %c481_i32 dim 1 : vector<16x512xf32>, i32 -> vector<16x512xf32>
    %c21 = arith.constant 21 : index
    %c0_205 = arith.constant 0 : index
    %374 = vector.load %arg2[%c21, %c0_205] : memref<25x512xf32, #tpu.memory_space<vmem>>, vector<1x512xf32>
    %375 = vector.broadcast %374 : vector<1x512xf32> to vector<16x512xf32>
    %376 = arith.mulf %373, %375 : vector<16x512xf32>
    %377 = vector.extract_strided_slice %376 {offsets = [0, 0], sizes = [8, 512], strides = [1, 1]} : vector<16x512xf32> to vector<8x512xf32>
    %378 = vector.extract_strided_slice %376 {offsets = [8, 0], sizes = [8, 512], strides = [1, 1]} : vector<16x512xf32> to vector<8x512xf32>
    %c0_206 = arith.constant 0 : index
    %c21_207 = arith.constant 21 : index
    %379 = vector.load %arg7[%c0_206, %c21_207] : memref<8x25xf32, #tpu.memory_space<vmem>>, vector<8x1xf32>
    %380 = vector.broadcast %379 : vector<8x1xf32> to vector<8x512xf32>
    %381 = arith.addf %377, %380 : vector<8x512xf32>
    %382 = arith.mulf %19, %381 : vector<8x512xf32>
    %c21_208 = arith.constant 21 : index
    %c0_209 = arith.constant 0 : index
    %c0_210 = arith.constant 0 : index
    %383 = vector.load %arg9[%c21_208, %c0_209, %c0_210] : memref<25x8x512xf32, #tpu.memory_space<vmem>>, vector<1x8x512xf32>
    %384 = vector.shape_cast %383 : vector<1x8x512xf32> to vector<8x512xf32>
    %385 = vector.shape_cast %382 : vector<8x512xf32> to vector<1x8x512xf32>
    tpu.vector_store %arg9[%c21_208, %c0_209, %c0_210], %385 {strides = array<i32>} : memref<25x8x512xf32, #tpu.memory_space<vmem>>, vector<1x8x512xf32>,
    %c21_211 = arith.constant 21 : index
    %c0_212 = arith.constant 0 : index
    %c0_213 = arith.constant 0 : index
    %386 = vector.load %arg10[%c21_211, %c0_212, %c0_213] : memref<25x8x512xf32, #tpu.memory_space<vmem>>, vector<1x8x512xf32>
    %387 = vector.shape_cast %386 : vector<1x8x512xf32> to vector<8x512xf32>
    %388 = vector.shape_cast %378 : vector<8x512xf32> to vector<1x8x512xf32>
    tpu.vector_store %arg10[%c21_211, %c0_212, %c0_213], %388 {strides = array<i32>} : memref<25x8x512xf32, #tpu.memory_space<vmem>>, vector<1x8x512xf32>,
    %389 = arith.maximumf %372, %382 : vector<8x512xf32>
    %c480_i32 = arith.constant 480 : i32
    %390 = tpu.dynamic_rotate %20 by %c480_i32 dim 1 : vector<16x512xf32>, i32 -> vector<16x512xf32>
    %c22 = arith.constant 22 : index
    %c0_214 = arith.constant 0 : index
    %391 = vector.load %arg2[%c22, %c0_214] : memref<25x512xf32, #tpu.memory_space<vmem>>, vector<1x512xf32>
    %392 = vector.broadcast %391 : vector<1x512xf32> to vector<16x512xf32>
    %393 = arith.mulf %390, %392 : vector<16x512xf32>
    %394 = vector.extract_strided_slice %393 {offsets = [0, 0], sizes = [8, 512], strides = [1, 1]} : vector<16x512xf32> to vector<8x512xf32>
    %395 = vector.extract_strided_slice %393 {offsets = [8, 0], sizes = [8, 512], strides = [1, 1]} : vector<16x512xf32> to vector<8x512xf32>
    %c0_215 = arith.constant 0 : index
    %c22_216 = arith.constant 22 : index
    %396 = vector.load %arg7[%c0_215, %c22_216] : memref<8x25xf32, #tpu.memory_space<vmem>>, vector<8x1xf32>
    %397 = vector.broadcast %396 : vector<8x1xf32> to vector<8x512xf32>
    %398 = arith.addf %394, %397 : vector<8x512xf32>
    %399 = arith.mulf %19, %398 : vector<8x512xf32>
    %c22_217 = arith.constant 22 : index
    %c0_218 = arith.constant 0 : index
    %c0_219 = arith.constant 0 : index
    %400 = vector.load %arg9[%c22_217, %c0_218, %c0_219] : memref<25x8x512xf32, #tpu.memory_space<vmem>>, vector<1x8x512xf32>
    %401 = vector.shape_cast %400 : vector<1x8x512xf32> to vector<8x512xf32>
    %402 = vector.shape_cast %399 : vector<8x512xf32> to vector<1x8x512xf32>
    tpu.vector_store %arg9[%c22_217, %c0_218, %c0_219], %402 {strides = array<i32>} : memref<25x8x512xf32, #tpu.memory_space<vmem>>, vector<1x8x512xf32>,
    %c22_220 = arith.constant 22 : index
    %c0_221 = arith.constant 0 : index
    %c0_222 = arith.constant 0 : index
    %403 = vector.load %arg10[%c22_220, %c0_221, %c0_222] : memref<25x8x512xf32, #tpu.memory_space<vmem>>, vector<1x8x512xf32>
    %404 = vector.shape_cast %403 : vector<1x8x512xf32> to vector<8x512xf32>
    %405 = vector.shape_cast %395 : vector<8x512xf32> to vector<1x8x512xf32>
    tpu.vector_store %arg10[%c22_220, %c0_221, %c0_222], %405 {strides = array<i32>} : memref<25x8x512xf32, #tpu.memory_space<vmem>>, vector<1x8x512xf32>,
    %406 = arith.maximumf %389, %399 : vector<8x512xf32>
    %c479_i32 = arith.constant 479 : i32
    %407 = tpu.dynamic_rotate %20 by %c479_i32 dim 1 : vector<16x512xf32>, i32 -> vector<16x512xf32>
    %c23 = arith.constant 23 : index
    %c0_223 = arith.constant 0 : index
    %408 = vector.load %arg2[%c23, %c0_223] : memref<25x512xf32, #tpu.memory_space<vmem>>, vector<1x512xf32>
    %409 = vector.broadcast %408 : vector<1x512xf32> to vector<16x512xf32>
    %410 = arith.mulf %407, %409 : vector<16x512xf32>
    %411 = vector.extract_strided_slice %410 {offsets = [0, 0], sizes = [8, 512], strides = [1, 1]} : vector<16x512xf32> to vector<8x512xf32>
    %412 = vector.extract_strided_slice %410 {offsets = [8, 0], sizes = [8, 512], strides = [1, 1]} : vector<16x512xf32> to vector<8x512xf32>
    %c0_224 = arith.constant 0 : index
    %c23_225 = arith.constant 23 : index
    %413 = vector.load %arg7[%c0_224, %c23_225] : memref<8x25xf32, #tpu.memory_space<vmem>>, vector<8x1xf32>
    %414 = vector.broadcast %413 : vector<8x1xf32> to vector<8x512xf32>
    %415 = arith.addf %411, %414 : vector<8x512xf32>
    %416 = arith.mulf %19, %415 : vector<8x512xf32>
    %c23_226 = arith.constant 23 : index
    %c0_227 = arith.constant 0 : index
    %c0_228 = arith.constant 0 : index
    %417 = vector.load %arg9[%c23_226, %c0_227, %c0_228] : memref<25x8x512xf32, #tpu.memory_space<vmem>>, vector<1x8x512xf32>
    %418 = vector.shape_cast %417 : vector<1x8x512xf32> to vector<8x512xf32>
    %419 = vector.shape_cast %416 : vector<8x512xf32> to vector<1x8x512xf32>
    tpu.vector_store %arg9[%c23_226, %c0_227, %c0_228], %419 {strides = array<i32>} : memref<25x8x512xf32, #tpu.memory_space<vmem>>, vector<1x8x512xf32>,
    %c23_229 = arith.constant 23 : index
    %c0_230 = arith.constant 0 : index
    %c0_231 = arith.constant 0 : index
    %420 = vector.load %arg10[%c23_229, %c0_230, %c0_231] : memref<25x8x512xf32, #tpu.memory_space<vmem>>, vector<1x8x512xf32>
    %421 = vector.shape_cast %420 : vector<1x8x512xf32> to vector<8x512xf32>
    %422 = vector.shape_cast %412 : vector<8x512xf32> to vector<1x8x512xf32>
    tpu.vector_store %arg10[%c23_229, %c0_230, %c0_231], %422 {strides = array<i32>} : memref<25x8x512xf32, #tpu.memory_space<vmem>>, vector<1x8x512xf32>,
    %423 = arith.maximumf %406, %416 : vector<8x512xf32>
    %c478_i32 = arith.constant 478 : i32
    %424 = tpu.dynamic_rotate %20 by %c478_i32 dim 1 : vector<16x512xf32>, i32 -> vector<16x512xf32>
    %c24 = arith.constant 24 : index
    %c0_232 = arith.constant 0 : index
    %425 = vector.load %arg2[%c24, %c0_232] : memref<25x512xf32, #tpu.memory_space<vmem>>, vector<1x512xf32>
    %426 = vector.broadcast %425 : vector<1x512xf32> to vector<16x512xf32>
    %427 = arith.mulf %424, %426 : vector<16x512xf32>
    %428 = vector.extract_strided_slice %427 {offsets = [0, 0], sizes = [8, 512], strides = [1, 1]} : vector<16x512xf32> to vector<8x512xf32>
    %429 = vector.extract_strided_slice %427 {offsets = [8, 0], sizes = [8, 512], strides = [1, 1]} : vector<16x512xf32> to vector<8x512xf32>
    %c0_233 = arith.constant 0 : index
    %c24_234 = arith.constant 24 : index
    %430 = vector.load %arg7[%c0_233, %c24_234] : memref<8x25xf32, #tpu.memory_space<vmem>>, vector<8x1xf32>
    %431 = vector.broadcast %430 : vector<8x1xf32> to vector<8x512xf32>
    %432 = arith.addf %428, %431 : vector<8x512xf32>
    %433 = arith.mulf %19, %432 : vector<8x512xf32>
    %c24_235 = arith.constant 24 : index
    %c0_236 = arith.constant 0 : index
    %c0_237 = arith.constant 0 : index
    %434 = vector.load %arg9[%c24_235, %c0_236, %c0_237] : memref<25x8x512xf32, #tpu.memory_space<vmem>>, vector<1x8x512xf32>
    %435 = vector.shape_cast %434 : vector<1x8x512xf32> to vector<8x512xf32>
    %436 = vector.shape_cast %433 : vector<8x512xf32> to vector<1x8x512xf32>
    tpu.vector_store %arg9[%c24_235, %c0_236, %c0_237], %436 {strides = array<i32>} : memref<25x8x512xf32, #tpu.memory_space<vmem>>, vector<1x8x512xf32>,
    %c24_238 = arith.constant 24 : index
    %c0_239 = arith.constant 0 : index
    %c0_240 = arith.constant 0 : index
    %437 = vector.load %arg10[%c24_238, %c0_239, %c0_240] : memref<25x8x512xf32, #tpu.memory_space<vmem>>, vector<1x8x512xf32>
    %438 = vector.shape_cast %437 : vector<1x8x512xf32> to vector<8x512xf32>
    %439 = vector.shape_cast %429 : vector<8x512xf32> to vector<1x8x512xf32>
    tpu.vector_store %arg10[%c24_238, %c0_239, %c0_240], %439 {strides = array<i32>} : memref<25x8x512xf32, #tpu.memory_space<vmem>>, vector<1x8x512xf32>,
    %440 = arith.maximumf %423, %433 : vector<8x512xf32>
    %cst_241 = arith.constant 0.000000e+00 : f32
    %441 = vector.broadcast %cst_241 : f32 to vector<8x512xf32>
    %cst_242 = arith.constant 0.000000e+00 : f32
    %442 = vector.broadcast %cst_242 : f32 to vector<8x512xf32>
    %c0_243 = arith.constant 0 : index
    %c0_244 = arith.constant 0 : index
    %c0_245 = arith.constant 0 : index
    %443 = vector.load %arg9[%c0_243, %c0_244, %c0_245] : memref<25x8x512xf32, #tpu.memory_space<vmem>>, vector<1x8x512xf32>
    %444 = vector.shape_cast %443 : vector<1x8x512xf32> to vector<8x512xf32>
    %445 = arith.subf %444, %440 : vector<8x512xf32>
    %446 = math.exp %445 : vector<8x512xf32>
    %447 = arith.addf %441, %446 : vector<8x512xf32>
    %c0_246 = arith.constant 0 : index
    %c0_247 = arith.constant 0 : index
    %c0_248 = arith.constant 0 : index
    %448 = vector.load %arg10[%c0_246, %c0_247, %c0_248] : memref<25x8x512xf32, #tpu.memory_space<vmem>>, vector<1x8x512xf32>
    %449 = vector.shape_cast %448 : vector<1x8x512xf32> to vector<8x512xf32>
    %450 = arith.mulf %446, %449 : vector<8x512xf32>
    %451 = arith.addf %442, %450 : vector<8x512xf32>
    %c1_249 = arith.constant 1 : index
    %c0_250 = arith.constant 0 : index
    %c0_251 = arith.constant 0 : index
    %452 = vector.load %arg9[%c1_249, %c0_250, %c0_251] : memref<25x8x512xf32, #tpu.memory_space<vmem>>, vector<1x8x512xf32>
    %453 = vector.shape_cast %452 : vector<1x8x512xf32> to vector<8x512xf32>
    %454 = arith.subf %453, %440 : vector<8x512xf32>
    %455 = math.exp %454 : vector<8x512xf32>
    %456 = arith.addf %447, %455 : vector<8x512xf32>
    %c1_252 = arith.constant 1 : index
    %c0_253 = arith.constant 0 : index
    %c0_254 = arith.constant 0 : index
    %457 = vector.load %arg10[%c1_252, %c0_253, %c0_254] : memref<25x8x512xf32, #tpu.memory_space<vmem>>, vector<1x8x512xf32>
    %458 = vector.shape_cast %457 : vector<1x8x512xf32> to vector<8x512xf32>
    %459 = arith.mulf %455, %458 : vector<8x512xf32>
    %460 = arith.addf %451, %459 : vector<8x512xf32>
    %c2_255 = arith.constant 2 : index
    %c0_256 = arith.constant 0 : index
    %c0_257 = arith.constant 0 : index
    %461 = vector.load %arg9[%c2_255, %c0_256, %c0_257] : memref<25x8x512xf32, #tpu.memory_space<vmem>>, vector<1x8x512xf32>
    %462 = vector.shape_cast %461 : vector<1x8x512xf32> to vector<8x512xf32>
    %463 = arith.subf %462, %440 : vector<8x512xf32>
    %464 = math.exp %463 : vector<8x512xf32>
    %465 = arith.addf %456, %464 : vector<8x512xf32>
    %c2_258 = arith.constant 2 : index
    %c0_259 = arith.constant 0 : index
    %c0_260 = arith.constant 0 : index
    %466 = vector.load %arg10[%c2_258, %c0_259, %c0_260] : memref<25x8x512xf32, #tpu.memory_space<vmem>>, vector<1x8x512xf32>
    %467 = vector.shape_cast %466 : vector<1x8x512xf32> to vector<8x512xf32>
    %468 = arith.mulf %464, %467 : vector<8x512xf32>
    %469 = arith.addf %460, %468 : vector<8x512xf32>
    %c3_261 = arith.constant 3 : index
    %c0_262 = arith.constant 0 : index
    %c0_263 = arith.constant 0 : index
    %470 = vector.load %arg9[%c3_261, %c0_262, %c0_263] : memref<25x8x512xf32, #tpu.memory_space<vmem>>, vector<1x8x512xf32>
    %471 = vector.shape_cast %470 : vector<1x8x512xf32> to vector<8x512xf32>
    %472 = arith.subf %471, %440 : vector<8x512xf32>
    %473 = math.exp %472 : vector<8x512xf32>
    %474 = arith.addf %465, %473 : vector<8x512xf32>
    %c3_264 = arith.constant 3 : index
    %c0_265 = arith.constant 0 : index
    %c0_266 = arith.constant 0 : index
    %475 = vector.load %arg10[%c3_264, %c0_265, %c0_266] : memref<25x8x512xf32, #tpu.memory_space<vmem>>, vector<1x8x512xf32>
    %476 = vector.shape_cast %475 : vector<1x8x512xf32> to vector<8x512xf32>
    %477 = arith.mulf %473, %476 : vector<8x512xf32>
    %478 = arith.addf %469, %477 : vector<8x512xf32>
    %c4_267 = arith.constant 4 : index
    %c0_268 = arith.constant 0 : index
    %c0_269 = arith.constant 0 : index
    %479 = vector.load %arg9[%c4_267, %c0_268, %c0_269] : memref<25x8x512xf32, #tpu.memory_space<vmem>>, vector<1x8x512xf32>
    %480 = vector.shape_cast %479 : vector<1x8x512xf32> to vector<8x512xf32>
    %481 = arith.subf %480, %440 : vector<8x512xf32>
    %482 = math.exp %481 : vector<8x512xf32>
    %483 = arith.addf %474, %482 : vector<8x512xf32>
    %c4_270 = arith.constant 4 : index
    %c0_271 = arith.constant 0 : index
    %c0_272 = arith.constant 0 : index
    %484 = vector.load %arg10[%c4_270, %c0_271, %c0_272] : memref<25x8x512xf32, #tpu.memory_space<vmem>>, vector<1x8x512xf32>
    %485 = vector.shape_cast %484 : vector<1x8x512xf32> to vector<8x512xf32>
    %486 = arith.mulf %482, %485 : vector<8x512xf32>
    %487 = arith.addf %478, %486 : vector<8x512xf32>
    %c5_273 = arith.constant 5 : index
    %c0_274 = arith.constant 0 : index
    %c0_275 = arith.constant 0 : index
    %488 = vector.load %arg9[%c5_273, %c0_274, %c0_275] : memref<25x8x512xf32, #tpu.memory_space<vmem>>, vector<1x8x512xf32>
    %489 = vector.shape_cast %488 : vector<1x8x512xf32> to vector<8x512xf32>
    %490 = arith.subf %489, %440 : vector<8x512xf32>
    %491 = math.exp %490 : vector<8x512xf32>
    %492 = arith.addf %483, %491 : vector<8x512xf32>
    %c5_276 = arith.constant 5 : index
    %c0_277 = arith.constant 0 : index
    %c0_278 = arith.constant 0 : index
    %493 = vector.load %arg10[%c5_276, %c0_277, %c0_278] : memref<25x8x512xf32, #tpu.memory_space<vmem>>, vector<1x8x512xf32>
    %494 = vector.shape_cast %493 : vector<1x8x512xf32> to vector<8x512xf32>
    %495 = arith.mulf %491, %494 : vector<8x512xf32>
    %496 = arith.addf %487, %495 : vector<8x512xf32>
    %c6_279 = arith.constant 6 : index
    %c0_280 = arith.constant 0 : index
    %c0_281 = arith.constant 0 : index
    %497 = vector.load %arg9[%c6_279, %c0_280, %c0_281] : memref<25x8x512xf32, #tpu.memory_space<vmem>>, vector<1x8x512xf32>
    %498 = vector.shape_cast %497 : vector<1x8x512xf32> to vector<8x512xf32>
    %499 = arith.subf %498, %440 : vector<8x512xf32>
    %500 = math.exp %499 : vector<8x512xf32>
    %501 = arith.addf %492, %500 : vector<8x512xf32>
    %c6_282 = arith.constant 6 : index
    %c0_283 = arith.constant 0 : index
    %c0_284 = arith.constant 0 : index
    %502 = vector.load %arg10[%c6_282, %c0_283, %c0_284] : memref<25x8x512xf32, #tpu.memory_space<vmem>>, vector<1x8x512xf32>
    %503 = vector.shape_cast %502 : vector<1x8x512xf32> to vector<8x512xf32>
    %504 = arith.mulf %500, %503 : vector<8x512xf32>
    %505 = arith.addf %496, %504 : vector<8x512xf32>
    %c7_285 = arith.constant 7 : index
    %c0_286 = arith.constant 0 : index
    %c0_287 = arith.constant 0 : index
    %506 = vector.load %arg9[%c7_285, %c0_286, %c0_287] : memref<25x8x512xf32, #tpu.memory_space<vmem>>, vector<1x8x512xf32>
    %507 = vector.shape_cast %506 : vector<1x8x512xf32> to vector<8x512xf32>
    %508 = arith.subf %507, %440 : vector<8x512xf32>
    %509 = math.exp %508 : vector<8x512xf32>
    %510 = arith.addf %501, %509 : vector<8x512xf32>
    %c7_288 = arith.constant 7 : index
    %c0_289 = arith.constant 0 : index
    %c0_290 = arith.constant 0 : index
    %511 = vector.load %arg10[%c7_288, %c0_289, %c0_290] : memref<25x8x512xf32, #tpu.memory_space<vmem>>, vector<1x8x512xf32>
    %512 = vector.shape_cast %511 : vector<1x8x512xf32> to vector<8x512xf32>
    %513 = arith.mulf %509, %512 : vector<8x512xf32>
    %514 = arith.addf %505, %513 : vector<8x512xf32>
    %c8_291 = arith.constant 8 : index
    %c0_292 = arith.constant 0 : index
    %c0_293 = arith.constant 0 : index
    %515 = vector.load %arg9[%c8_291, %c0_292, %c0_293] : memref<25x8x512xf32, #tpu.memory_space<vmem>>, vector<1x8x512xf32>
    %516 = vector.shape_cast %515 : vector<1x8x512xf32> to vector<8x512xf32>
    %517 = arith.subf %516, %440 : vector<8x512xf32>
    %518 = math.exp %517 : vector<8x512xf32>
    %519 = arith.addf %510, %518 : vector<8x512xf32>
    %c8_294 = arith.constant 8 : index
    %c0_295 = arith.constant 0 : index
    %c0_296 = arith.constant 0 : index
    %520 = vector.load %arg10[%c8_294, %c0_295, %c0_296] : memref<25x8x512xf32, #tpu.memory_space<vmem>>, vector<1x8x512xf32>
    %521 = vector.shape_cast %520 : vector<1x8x512xf32> to vector<8x512xf32>
    %522 = arith.mulf %518, %521 : vector<8x512xf32>
    %523 = arith.addf %514, %522 : vector<8x512xf32>
    %c9_297 = arith.constant 9 : index
    %c0_298 = arith.constant 0 : index
    %c0_299 = arith.constant 0 : index
    %524 = vector.load %arg9[%c9_297, %c0_298, %c0_299] : memref<25x8x512xf32, #tpu.memory_space<vmem>>, vector<1x8x512xf32>
    %525 = vector.shape_cast %524 : vector<1x8x512xf32> to vector<8x512xf32>
    %526 = arith.subf %525, %440 : vector<8x512xf32>
    %527 = math.exp %526 : vector<8x512xf32>
    %528 = arith.addf %519, %527 : vector<8x512xf32>
    %c9_300 = arith.constant 9 : index
    %c0_301 = arith.constant 0 : index
    %c0_302 = arith.constant 0 : index
    %529 = vector.load %arg10[%c9_300, %c0_301, %c0_302] : memref<25x8x512xf32, #tpu.memory_space<vmem>>, vector<1x8x512xf32>
    %530 = vector.shape_cast %529 : vector<1x8x512xf32> to vector<8x512xf32>
    %531 = arith.mulf %527, %530 : vector<8x512xf32>
    %532 = arith.addf %523, %531 : vector<8x512xf32>
    %c10_303 = arith.constant 10 : index
    %c0_304 = arith.constant 0 : index
    %c0_305 = arith.constant 0 : index
    %533 = vector.load %arg9[%c10_303, %c0_304, %c0_305] : memref<25x8x512xf32, #tpu.memory_space<vmem>>, vector<1x8x512xf32>
    %534 = vector.shape_cast %533 : vector<1x8x512xf32> to vector<8x512xf32>
    %535 = arith.subf %534, %440 : vector<8x512xf32>
    %536 = math.exp %535 : vector<8x512xf32>
    %537 = arith.addf %528, %536 : vector<8x512xf32>
    %c10_306 = arith.constant 10 : index
    %c0_307 = arith.constant 0 : index
    %c0_308 = arith.constant 0 : index
    %538 = vector.load %arg10[%c10_306, %c0_307, %c0_308] : memref<25x8x512xf32, #tpu.memory_space<vmem>>, vector<1x8x512xf32>
    %539 = vector.shape_cast %538 : vector<1x8x512xf32> to vector<8x512xf32>
    %540 = arith.mulf %536, %539 : vector<8x512xf32>
    %541 = arith.addf %532, %540 : vector<8x512xf32>
    %c11_309 = arith.constant 11 : index
    %c0_310 = arith.constant 0 : index
    %c0_311 = arith.constant 0 : index
    %542 = vector.load %arg9[%c11_309, %c0_310, %c0_311] : memref<25x8x512xf32, #tpu.memory_space<vmem>>, vector<1x8x512xf32>
    %543 = vector.shape_cast %542 : vector<1x8x512xf32> to vector<8x512xf32>
    %544 = arith.subf %543, %440 : vector<8x512xf32>
    %545 = math.exp %544 : vector<8x512xf32>
    %546 = arith.addf %537, %545 : vector<8x512xf32>
    %c11_312 = arith.constant 11 : index
    %c0_313 = arith.constant 0 : index
    %c0_314 = arith.constant 0 : index
    %547 = vector.load %arg10[%c11_312, %c0_313, %c0_314] : memref<25x8x512xf32, #tpu.memory_space<vmem>>, vector<1x8x512xf32>
    %548 = vector.shape_cast %547 : vector<1x8x512xf32> to vector<8x512xf32>
    %549 = arith.mulf %545, %548 : vector<8x512xf32>
    %550 = arith.addf %541, %549 : vector<8x512xf32>
    %c12_315 = arith.constant 12 : index
    %c0_316 = arith.constant 0 : index
    %c0_317 = arith.constant 0 : index
    %551 = vector.load %arg9[%c12_315, %c0_316, %c0_317] : memref<25x8x512xf32, #tpu.memory_space<vmem>>, vector<1x8x512xf32>
    %552 = vector.shape_cast %551 : vector<1x8x512xf32> to vector<8x512xf32>
    %553 = arith.subf %552, %440 : vector<8x512xf32>
    %554 = math.exp %553 : vector<8x512xf32>
    %555 = arith.addf %546, %554 : vector<8x512xf32>
    %c12_318 = arith.constant 12 : index
    %c0_319 = arith.constant 0 : index
    %c0_320 = arith.constant 0 : index
    %556 = vector.load %arg10[%c12_318, %c0_319, %c0_320] : memref<25x8x512xf32, #tpu.memory_space<vmem>>, vector<1x8x512xf32>
    %557 = vector.shape_cast %556 : vector<1x8x512xf32> to vector<8x512xf32>
    %558 = arith.mulf %554, %557 : vector<8x512xf32>
    %559 = arith.addf %550, %558 : vector<8x512xf32>
    %c13_321 = arith.constant 13 : index
    %c0_322 = arith.constant 0 : index
    %c0_323 = arith.constant 0 : index
    %560 = vector.load %arg9[%c13_321, %c0_322, %c0_323] : memref<25x8x512xf32, #tpu.memory_space<vmem>>, vector<1x8x512xf32>
    %561 = vector.shape_cast %560 : vector<1x8x512xf32> to vector<8x512xf32>
    %562 = arith.subf %561, %440 : vector<8x512xf32>
    %563 = math.exp %562 : vector<8x512xf32>
    %564 = arith.addf %555, %563 : vector<8x512xf32>
    %c13_324 = arith.constant 13 : index
    %c0_325 = arith.constant 0 : index
    %c0_326 = arith.constant 0 : index
    %565 = vector.load %arg10[%c13_324, %c0_325, %c0_326] : memref<25x8x512xf32, #tpu.memory_space<vmem>>, vector<1x8x512xf32>
    %566 = vector.shape_cast %565 : vector<1x8x512xf32> to vector<8x512xf32>
    %567 = arith.mulf %563, %566 : vector<8x512xf32>
    %568 = arith.addf %559, %567 : vector<8x512xf32>
    %c14_327 = arith.constant 14 : index
    %c0_328 = arith.constant 0 : index
    %c0_329 = arith.constant 0 : index
    %569 = vector.load %arg9[%c14_327, %c0_328, %c0_329] : memref<25x8x512xf32, #tpu.memory_space<vmem>>, vector<1x8x512xf32>
    %570 = vector.shape_cast %569 : vector<1x8x512xf32> to vector<8x512xf32>
    %571 = arith.subf %570, %440 : vector<8x512xf32>
    %572 = math.exp %571 : vector<8x512xf32>
    %573 = arith.addf %564, %572 : vector<8x512xf32>
    %c14_330 = arith.constant 14 : index
    %c0_331 = arith.constant 0 : index
    %c0_332 = arith.constant 0 : index
    %574 = vector.load %arg10[%c14_330, %c0_331, %c0_332] : memref<25x8x512xf32, #tpu.memory_space<vmem>>, vector<1x8x512xf32>
    %575 = vector.shape_cast %574 : vector<1x8x512xf32> to vector<8x512xf32>
    %576 = arith.mulf %572, %575 : vector<8x512xf32>
    %577 = arith.addf %568, %576 : vector<8x512xf32>
    %c15_333 = arith.constant 15 : index
    %c0_334 = arith.constant 0 : index
    %c0_335 = arith.constant 0 : index
    %578 = vector.load %arg9[%c15_333, %c0_334, %c0_335] : memref<25x8x512xf32, #tpu.memory_space<vmem>>, vector<1x8x512xf32>
    %579 = vector.shape_cast %578 : vector<1x8x512xf32> to vector<8x512xf32>
    %580 = arith.subf %579, %440 : vector<8x512xf32>
    %581 = math.exp %580 : vector<8x512xf32>
    %582 = arith.addf %573, %581 : vector<8x512xf32>
    %c15_336 = arith.constant 15 : index
    %c0_337 = arith.constant 0 : index
    %c0_338 = arith.constant 0 : index
    %583 = vector.load %arg10[%c15_336, %c0_337, %c0_338] : memref<25x8x512xf32, #tpu.memory_space<vmem>>, vector<1x8x512xf32>
    %584 = vector.shape_cast %583 : vector<1x8x512xf32> to vector<8x512xf32>
    %585 = arith.mulf %581, %584 : vector<8x512xf32>
    %586 = arith.addf %577, %585 : vector<8x512xf32>
    %c16_339 = arith.constant 16 : index
    %c0_340 = arith.constant 0 : index
    %c0_341 = arith.constant 0 : index
    %587 = vector.load %arg9[%c16_339, %c0_340, %c0_341] : memref<25x8x512xf32, #tpu.memory_space<vmem>>, vector<1x8x512xf32>
    %588 = vector.shape_cast %587 : vector<1x8x512xf32> to vector<8x512xf32>
    %589 = arith.subf %588, %440 : vector<8x512xf32>
    %590 = math.exp %589 : vector<8x512xf32>
    %591 = arith.addf %582, %590 : vector<8x512xf32>
    %c16_342 = arith.constant 16 : index
    %c0_343 = arith.constant 0 : index
    %c0_344 = arith.constant 0 : index
    %592 = vector.load %arg10[%c16_342, %c0_343, %c0_344] : memref<25x8x512xf32, #tpu.memory_space<vmem>>, vector<1x8x512xf32>
    %593 = vector.shape_cast %592 : vector<1x8x512xf32> to vector<8x512xf32>
    %594 = arith.mulf %590, %593 : vector<8x512xf32>
    %595 = arith.addf %586, %594 : vector<8x512xf32>
    %c17_345 = arith.constant 17 : index
    %c0_346 = arith.constant 0 : index
    %c0_347 = arith.constant 0 : index
    %596 = vector.load %arg9[%c17_345, %c0_346, %c0_347] : memref<25x8x512xf32, #tpu.memory_space<vmem>>, vector<1x8x512xf32>
    %597 = vector.shape_cast %596 : vector<1x8x512xf32> to vector<8x512xf32>
    %598 = arith.subf %597, %440 : vector<8x512xf32>
    %599 = math.exp %598 : vector<8x512xf32>
    %600 = arith.addf %591, %599 : vector<8x512xf32>
    %c17_348 = arith.constant 17 : index
    %c0_349 = arith.constant 0 : index
    %c0_350 = arith.constant 0 : index
    %601 = vector.load %arg10[%c17_348, %c0_349, %c0_350] : memref<25x8x512xf32, #tpu.memory_space<vmem>>, vector<1x8x512xf32>
    %602 = vector.shape_cast %601 : vector<1x8x512xf32> to vector<8x512xf32>
    %603 = arith.mulf %599, %602 : vector<8x512xf32>
    %604 = arith.addf %595, %603 : vector<8x512xf32>
    %c18_351 = arith.constant 18 : index
    %c0_352 = arith.constant 0 : index
    %c0_353 = arith.constant 0 : index
    %605 = vector.load %arg9[%c18_351, %c0_352, %c0_353] : memref<25x8x512xf32, #tpu.memory_space<vmem>>, vector<1x8x512xf32>
    %606 = vector.shape_cast %605 : vector<1x8x512xf32> to vector<8x512xf32>
    %607 = arith.subf %606, %440 : vector<8x512xf32>
    %608 = math.exp %607 : vector<8x512xf32>
    %609 = arith.addf %600, %608 : vector<8x512xf32>
    %c18_354 = arith.constant 18 : index
    %c0_355 = arith.constant 0 : index
    %c0_356 = arith.constant 0 : index
    %610 = vector.load %arg10[%c18_354, %c0_355, %c0_356] : memref<25x8x512xf32, #tpu.memory_space<vmem>>, vector<1x8x512xf32>
    %611 = vector.shape_cast %610 : vector<1x8x512xf32> to vector<8x512xf32>
    %612 = arith.mulf %608, %611 : vector<8x512xf32>
    %613 = arith.addf %604, %612 : vector<8x512xf32>
    %c19_357 = arith.constant 19 : index
    %c0_358 = arith.constant 0 : index
    %c0_359 = arith.constant 0 : index
    %614 = vector.load %arg9[%c19_357, %c0_358, %c0_359] : memref<25x8x512xf32, #tpu.memory_space<vmem>>, vector<1x8x512xf32>
    %615 = vector.shape_cast %614 : vector<1x8x512xf32> to vector<8x512xf32>
    %616 = arith.subf %615, %440 : vector<8x512xf32>
    %617 = math.exp %616 : vector<8x512xf32>
    %618 = arith.addf %609, %617 : vector<8x512xf32>
    %c19_360 = arith.constant 19 : index
    %c0_361 = arith.constant 0 : index
    %c0_362 = arith.constant 0 : index
    %619 = vector.load %arg10[%c19_360, %c0_361, %c0_362] : memref<25x8x512xf32, #tpu.memory_space<vmem>>, vector<1x8x512xf32>
    %620 = vector.shape_cast %619 : vector<1x8x512xf32> to vector<8x512xf32>
    %621 = arith.mulf %617, %620 : vector<8x512xf32>
    %622 = arith.addf %613, %621 : vector<8x512xf32>
    %c20_363 = arith.constant 20 : index
    %c0_364 = arith.constant 0 : index
    %c0_365 = arith.constant 0 : index
    %623 = vector.load %arg9[%c20_363, %c0_364, %c0_365] : memref<25x8x512xf32, #tpu.memory_space<vmem>>, vector<1x8x512xf32>
    %624 = vector.shape_cast %623 : vector<1x8x512xf32> to vector<8x512xf32>
    %625 = arith.subf %624, %440 : vector<8x512xf32>
    %626 = math.exp %625 : vector<8x512xf32>
    %627 = arith.addf %618, %626 : vector<8x512xf32>
    %c20_366 = arith.constant 20 : index
    %c0_367 = arith.constant 0 : index
    %c0_368 = arith.constant 0 : index
    %628 = vector.load %arg10[%c20_366, %c0_367, %c0_368] : memref<25x8x512xf32, #tpu.memory_space<vmem>>, vector<1x8x512xf32>
    %629 = vector.shape_cast %628 : vector<1x8x512xf32> to vector<8x512xf32>
    %630 = arith.mulf %626, %629 : vector<8x512xf32>
    %631 = arith.addf %622, %630 : vector<8x512xf32>
    %c21_369 = arith.constant 21 : index
    %c0_370 = arith.constant 0 : index
    %c0_371 = arith.constant 0 : index
    %632 = vector.load %arg9[%c21_369, %c0_370, %c0_371] : memref<25x8x512xf32, #tpu.memory_space<vmem>>, vector<1x8x512xf32>
    %633 = vector.shape_cast %632 : vector<1x8x512xf32> to vector<8x512xf32>
    %634 = arith.subf %633, %440 : vector<8x512xf32>
    %635 = math.exp %634 : vector<8x512xf32>
    %636 = arith.addf %627, %635 : vector<8x512xf32>
    %c21_372 = arith.constant 21 : index
    %c0_373 = arith.constant 0 : index
    %c0_374 = arith.constant 0 : index
    %637 = vector.load %arg10[%c21_372, %c0_373, %c0_374] : memref<25x8x512xf32, #tpu.memory_space<vmem>>, vector<1x8x512xf32>
    %638 = vector.shape_cast %637 : vector<1x8x512xf32> to vector<8x512xf32>
    %639 = arith.mulf %635, %638 : vector<8x512xf32>
    %640 = arith.addf %631, %639 : vector<8x512xf32>
    %c22_375 = arith.constant 22 : index
    %c0_376 = arith.constant 0 : index
    %c0_377 = arith.constant 0 : index
    %641 = vector.load %arg9[%c22_375, %c0_376, %c0_377] : memref<25x8x512xf32, #tpu.memory_space<vmem>>, vector<1x8x512xf32>
    %642 = vector.shape_cast %641 : vector<1x8x512xf32> to vector<8x512xf32>
    %643 = arith.subf %642, %440 : vector<8x512xf32>
    %644 = math.exp %643 : vector<8x512xf32>
    %645 = arith.addf %636, %644 : vector<8x512xf32>
    %c22_378 = arith.constant 22 : index
    %c0_379 = arith.constant 0 : index
    %c0_380 = arith.constant 0 : index
    %646 = vector.load %arg10[%c22_378, %c0_379, %c0_380] : memref<25x8x512xf32, #tpu.memory_space<vmem>>, vector<1x8x512xf32>
    %647 = vector.shape_cast %646 : vector<1x8x512xf32> to vector<8x512xf32>
    %648 = arith.mulf %644, %647 : vector<8x512xf32>
    %649 = arith.addf %640, %648 : vector<8x512xf32>
    %c23_381 = arith.constant 23 : index
    %c0_382 = arith.constant 0 : index
    %c0_383 = arith.constant 0 : index
    %650 = vector.load %arg9[%c23_381, %c0_382, %c0_383] : memref<25x8x512xf32, #tpu.memory_space<vmem>>, vector<1x8x512xf32>
    %651 = vector.shape_cast %650 : vector<1x8x512xf32> to vector<8x512xf32>
    %652 = arith.subf %651, %440 : vector<8x512xf32>
    %653 = math.exp %652 : vector<8x512xf32>
    %654 = arith.addf %645, %653 : vector<8x512xf32>
    %c23_384 = arith.constant 23 : index
    %c0_385 = arith.constant 0 : index
    %c0_386 = arith.constant 0 : index
    %655 = vector.load %arg10[%c23_384, %c0_385, %c0_386] : memref<25x8x512xf32, #tpu.memory_space<vmem>>, vector<1x8x512xf32>
    %656 = vector.shape_cast %655 : vector<1x8x512xf32> to vector<8x512xf32>
    %657 = arith.mulf %653, %656 : vector<8x512xf32>
    %658 = arith.addf %649, %657 : vector<8x512xf32>
    %c24_387 = arith.constant 24 : index
    %c0_388 = arith.constant 0 : index
    %c0_389 = arith.constant 0 : index
    %659 = vector.load %arg9[%c24_387, %c0_388, %c0_389] : memref<25x8x512xf32, #tpu.memory_space<vmem>>, vector<1x8x512xf32>
    %660 = vector.shape_cast %659 : vector<1x8x512xf32> to vector<8x512xf32>
    %661 = arith.subf %660, %440 : vector<8x512xf32>
    %662 = math.exp %661 : vector<8x512xf32>
    %663 = arith.addf %654, %662 : vector<8x512xf32>
    %c24_390 = arith.constant 24 : index
    %c0_391 = arith.constant 0 : index
    %c0_392 = arith.constant 0 : index
    %664 = vector.load %arg10[%c24_390, %c0_391, %c0_392] : memref<25x8x512xf32, #tpu.memory_space<vmem>>, vector<1x8x512xf32>
    %665 = vector.shape_cast %664 : vector<1x8x512xf32> to vector<8x512xf32>
    %666 = arith.mulf %662, %665 : vector<8x512xf32>
    %667 = arith.addf %658, %666 : vector<8x512xf32>
    %668 = arith.divf %667, %663 : vector<8x512xf32>
    %669 = vector.broadcast %4 : vector<8x1xf32> to vector<8x512xf32>
    %670 = arith.mulf %668, %669 : vector<8x512xf32>
    %671 = vector.broadcast %5 : vector<8x1xf32> to vector<8x512xf32>
    %672 = arith.addf %670, %671 : vector<8x512xf32>
    %cst_393 = arith.constant 0.000000e+00 : f32
    %673 = vector.broadcast %cst_393 : f32 to vector<8x512xf32>
    %674 = arith.maximumf %672, %673 : vector<8x512xf32>
    %c0_394 = arith.constant 0 : index
    %c0_395 = arith.constant 0 : index
    %675 = vector.load %arg5[%c0_394, %c0_395] : memref<32x8xbf16, #tpu.memory_space<vmem>>, vector<32x8xbf16>
    %676 = arith.truncf %674 : vector<8x512xf32> to vector<8x512xbf16>
    %cst_396 = arith.constant dense<0.000000e+00> : vector<32x512xf32>
    %677 = tpu.matmul %675, %676, %cst_396 {dimension_numbers = #tpu.dot_dimension_numbers<[1], [0], [0], [1], [0, 0, 1, 1], [], []>} : vector<32x8xbf16>, vector<8x512xbf16>, vector<32x512xf32> -> vector<32x512xf32>
    %678 = vector.broadcast %3 : vector<32x1xf32> to vector<32x512xf32>
    %679 = arith.addf %677, %678 : vector<32x512xf32>
    %cst_397 = arith.constant 0.000000e+00 : f32
    %680 = vector.broadcast %cst_397 : f32 to vector<32x512xf32>
    %681 = arith.maximumf %679, %680 : vector<32x512xf32>
    %682 = arith.addf %681, %15 : vector<32x512xf32>
    %c0_398 = arith.constant 0 : index
    %c0_399 = arith.constant 0 : index
    %683 = vector.load %arg8[%c0_398, %c0_399] : memref<32x512xf32, #tpu.memory_space<vmem>>, vector<32x512xf32>
    tpu.vector_store %arg8[%c0_398, %c0_399], %682 {strides = array<i32>} : memref<32x512xf32, #tpu.memory_space<vmem>>, vector<32x512xf32>,
    return
  }
  func.func @transform_0(%arg0: i32) -> (i32, i32) {
    %c0_i32 = arith.constant 0 : i32
    %c0_i32_0 = arith.constant 0 : i32
    %c0_i32_1 = arith.constant 0 : i32
    return %c0_i32, %c0_i32_0 : i32, i32
  }
  func.func @transform_1(%arg0: i32) -> (i32, i32) {
    %c0_i32 = arith.constant 0 : i32
    %c0_i32_0 = arith.constant 0 : i32
    %c0_i32_1 = arith.constant 0 : i32
    return %c0_i32, %c0_i32_0 : i32, i32
  }
  func.func @transform_2(%arg0: i32) -> (i32, i32) {
    %c0_i32 = arith.constant 0 : i32
    %c0_i32_0 = arith.constant 0 : i32
    %c0_i32_1 = arith.constant 0 : i32
    return %c0_i32, %c0_i32_0 : i32, i32
  }
  func.func @transform_3(%arg0: i32) -> (i32, i32) {
    %c0_i32 = arith.constant 0 : i32
    %c0_i32_0 = arith.constant 0 : i32
    %c0_i32_1 = arith.constant 0 : i32
    return %c0_i32, %c0_i32_0 : i32, i32
  }
  func.func @transform_4(%arg0: i32) -> (i32, i32) {
    %c0_i32 = arith.constant 0 : i32
    %c0_i32_0 = arith.constant 0 : i32
    %c0_i32_1 = arith.constant 0 : i32
    return %c0_i32, %c0_i32_0 : i32, i32
  }
  func.func @transform_5(%arg0: i32) -> (i32, i32) {
    %c0_i32 = arith.constant 0 : i32
    %c0_i32_0 = arith.constant 0 : i32
    %c0_i32_1 = arith.constant 0 : i32
    return %c0_i32, %c0_i32_0 : i32, i32
  }
  func.func @transform_6(%arg0: i32) -> (i32, i32) {
    %c0_i32 = arith.constant 0 : i32
    %c0_i32_0 = arith.constant 0 : i32
    %c0_i32_1 = arith.constant 0 : i32
    return %c0_i32, %c0_i32_0 : i32, i32
  }
  func.func @transform_7(%arg0: i32) -> (i32, i32) {
    %c0_i32 = arith.constant 0 : i32
    %c0_i32_0 = arith.constant 0 : i32
    %c0_i32_1 = arith.constant 0 : i32
    return %c0_i32, %c0_i32_0 : i32, i32
  }
}

</mosaic_0001>

<llo_original>
// kernel: attention_with_skip_forward.1
$region0: #{attention_with_skip_forward.1}
  #allocation0 [shape = 'u32[]', space=smem, size = 0x4, offset = 0x4, fixed_abs, tag = 'smem constant byte address 0x4 - core index']
  #allocation1 [shape = 'u32[144,128]{1,0:T(1,128)}', space=vmem, size = 0x12000, scoped, tag = 'internal scratch']
  #allocation2 [shape = 'f32[25,8,512]{2,1,0:T(8,128)}', space=vmem, size = 0x64000, scoped, tag = 'scratch operand']
  #allocation3 [shape = 'f32[25,8,512]{2,1,0:T(8,128)}', space=vmem, size = 0x64000, scoped, tag = 'scratch operand']
  %s0 = inlined_call_operand.vmem [shape: bf16[16,512], index: 0, kind: input, shape index: {}]
  %s1 = inlined_call_operand.vmem [shape: f32[25,512], index: 1, kind: input, shape index: {}]
  %s2 = inlined_call_operand.vmem [shape: bf16[36,16], index: 2, kind: input, shape index: {}]
  %s3 = inlined_call_operand.vmem [shape: bf16[24,4], index: 3, kind: input, shape index: {}]
  %s4 = inlined_call_operand.vmem [shape: bf16[32,8], index: 4, kind: input, shape index: {}]
  %s5 = inlined_call_operand.vmem [shape: f32[32,8], index: 5, kind: input, shape index: {}]
  %s6 = inlined_call_operand.vmem [shape: f32[8,25], index: 6, kind: input, shape index: {}]
  %s7 = inlined_call_operand.vmem [shape: f32[32,512], index: 7, kind: output, shape index: {}]
  %s8 = sld [smem:[#allocation0]]
  $region38: #{attention_with_skip_forward.1} parent=0
    _
  %s10 = ssub.s32 1, %s8
  %s11 = scalar_select 0, %s10, %s8
  // Predicated region
  $region2: #{attention_with_skip_forward.1} parent=0 // pred_check
    _
  $region3: #{attention_with_skip_forward.1} parent=0 // pred_check_branch
    %13 = sbr.rel (0) target = $region5
  $region4: #{attention_with_skip_forward.1} parent=0 // pred_region
    _
  $region5: #{attention_with_skip_forward.1} parent=0 // pred_fallthru
    _
  // Predicated region
  $region6: #{attention_with_skip_forward.1} parent=0 // pred_check
    _
  $region7: #{attention_with_skip_forward.1} parent=0 // pred_check_branch
    %15 = sbr.rel (0) target = $region9
  $region8: #{attention_with_skip_forward.1} parent=0 // pred_region
    _
  $region9: #{attention_with_skip_forward.1} parent=0 // pred_fallthru
    _
  // Predicated region
  $region10: #{attention_with_skip_forward.1} parent=0 // pred_check
    _
  $region11: #{attention_with_skip_forward.1} parent=0 // pred_check_branch
    %17 = sbr.rel (0) target = $region13
  $region12: #{attention_with_skip_forward.1} parent=0 // pred_region
    _
  $region13: #{attention_with_skip_forward.1} parent=0 // pred_fallthru
    _
  // Predicated region
  $region14: #{attention_with_skip_forward.1} parent=0 // pred_check
    _
  $region15: #{attention_with_skip_forward.1} parent=0 // pred_check_branch
    %19 = sbr.rel (0) target = $region17
  $region16: #{attention_with_skip_forward.1} parent=0 // pred_region
    _
  $region17: #{attention_with_skip_forward.1} parent=0 // pred_fallthru
    _
  // Predicated region
  $region18: #{attention_with_skip_forward.1} parent=0 // pred_check
    _
  $region19: #{attention_with_skip_forward.1} parent=0 // pred_check_branch
    %21 = sbr.rel (0) target = $region21
  $region20: #{attention_with_skip_forward.1} parent=0 // pred_region
    _
  $region21: #{attention_with_skip_forward.1} parent=0 // pred_fallthru
    _
  // Predicated region
  $region22: #{attention_with_skip_forward.1} parent=0 // pred_check
    _
  $region23: #{attention_with_skip_forward.1} parent=0 // pred_check_branch
    %23 = sbr.rel (0) target = $region25
  $region24: #{attention_with_skip_forward.1} parent=0 // pred_region
    _
  $region25: #{attention_with_skip_forward.1} parent=0 // pred_fallthru
    _
  // Predicated region
  $region26: #{attention_with_skip_forward.1} parent=0 // pred_check
    _
  $region27: #{attention_with_skip_forward.1} parent=0 // pred_check_branch
    %25 = sbr.rel (0) target = $region29
  $region28: #{attention_with_skip_forward.1} parent=0 // pred_region
    _
  $region29: #{attention_with_skip_forward.1} parent=0 // pred_fallthru
    _
  %v27 = vld [vmem:[%s0] sm:$0xff]
  %v28 = vld [vmem:[%s0 + $0x8] sm:$0xff]
  %v29 = vld [vmem:[%s0 + $0x10] sm:$0xff]
  %v30 = vld [vmem:[%s0 + $0x18] sm:$0xff]
  %v31 = vld [vmem:[%s5] sm:$0xf]
  %v32 = vld [vmem:[%s5] sm:$0xff]
  %v33 = vld [vmem:[%s5 + $0x8] sm:$0xff]
  %v34 = vld [vmem:[%s5 + $0x10] sm:$0xff]
  %v35 = vld [vmem:[%s5 + $0x18] sm:$0xff]
  %v36 = vld [vmem:[%s2] sm:$0xf]
  %v37 = vld [vmem:[%s2 + $0x4] sm:$0xf]
  %v38 = vld [vmem:[%s2 + $0x8] sm:$0xf]
  %v39 = vld [vmem:[%s2 + $0xc] sm:$0xf]
  %v40 = vld [vmem:[%s2 + $0x10] sm:$0x3]
  %v46 = vunpack.c.l.b16 %v36
  %v47 = vunpack.c.l.b16 %v37
  %v48 = vunpack.c.l.b16 %v38
  %v49 = vunpack.c.l.b16 %v39
  %v50 = vunpack.c.l.b16 %v40
  %v51 = vpack.c.b16 %v47, %v46
  %v52 = vpack.c.b16 %v49, %v48
  %v53 = vpack.c.b16 %v50, %v50
  %v58 = vunpack.c.l.b16 %v27
  %v59 = vunpack.c.h.b16 %v27
  %v60 = vunpack.c.l.b16 %v28
  %v61 = vunpack.c.h.b16 %v28
  %v62 = vunpack.c.l.b16 %v29
  %v63 = vunpack.c.h.b16 %v29
  %v64 = vunpack.c.l.b16 %v30
  %v65 = vunpack.c.h.b16 %v30
  %v66 = vpack.c.b16 %v62, %v58
  %v67 = vpack.c.b16 %v63, %v59
  %v68 = vpack.c.b16 %v64, %v60
  %v69 = vpack.c.b16 %v65, %v61
  %vm74 = vcmask 130048
  %v76 = vsel %vm74, %v51, 0
  %v79 = vsel %vm74, %v52, 0
  %v82 = vsel %vm74, %v53, 0
  %84 = vmatprep.subr.bf16.mxu0 %v67
  %85 = vmatpush1.bf16.msra.mxu0 %v66
  %86 = vmatprep.subr.bf16.mxu0 0
  %87 = vmatpush1.bf16.msra.mxu0 0
  %88 = vmatprep.subr.bf16.mxu0 0
  %89 = vmatpush1.bf16.msra.mxu0 0
  %90 = vmatprep.subr.bf16.mxu0 0
  %91 = vmatpush1.bf16.msra.mxu0 0
  %92 = vmatprep.subr.bf16.mxu0 0
  %93 = vmatpush1.bf16.msra.mxu0 0
  %94 = vmatprep.subr.bf16.mxu0 0
  %95 = vmatpush1.bf16.msra.mxu0 0
  %96 = vmatprep.subr.bf16.mxu0 0
  %97 = vmatpush1.bf16.msra.mxu0 0
  %98 = vmatprep.subr.bf16.mxu0 0
  %99 = vmatpush1.bf16.msra.mxu0 0
  %100 = vmatprep.subr.bf16.mxu0 0
  %101 = vmatpush1.bf16.msra.mxu0 0
  %102 = vmatprep.subr.bf16.mxu0 0
  %103 = vmatpush1.bf16.msra.mxu0 0
  %104 = vmatprep.subr.bf16.mxu0 0
  %105 = vmatpush1.bf16.msra.mxu0 0
  %106 = vmatprep.subr.bf16.mxu0 0
  %107 = vmatpush1.bf16.msra.mxu0 0
  %108 = vmatprep.subr.bf16.mxu0 0
  %109 = vmatpush1.bf16.msra.mxu0 0
  %110 = vmatprep.subr.bf16.mxu0 0
  %111 = vmatpush1.bf16.msra.mxu0 0
  %112 = vmatprep.subr.bf16.mxu0 0
  %113 = vmatpush1.bf16.msra.mxu0 0
  %114 = vmatprep.subr.bf16.mxu0 0
  %115 = vmatpush1.bf16.msra.mxu0 0
  %116 = vmatprep.mubr.bf16.mxu0 0
  %117 = vmatmul.mubr.bf16.gmra.mrb[0].mxu0 %v76
  %v118 = vpop.f32.mrb[0].mxu0
  %v119 = vadd.f32 0.0, %v118
  %v120 = vpop.f32.mrb[0].mxu0
  %v121 = vadd.f32 0.0, %v120
  %v122 = vpop.f32.mrb[0].mxu0
  %v123 = vadd.f32 0.0, %v122
  %v124 = vpop.f32.mrb[0].mxu0
  %v125 = vadd.f32 0.0, %v124
  %126 = vmatprep.mubr.bf16.mxu0 0
  %127 = vmatmul.mubr.bf16.gmra.mrb[0].mxu0 %v79
  %v128 = vpop.f32.mrb[0].mxu0
  %v129 = vadd.f32 0.0, %v128
  %v130 = vpop.f32.mrb[0].mxu0
  %v131 = vadd.f32 0.0, %v130
  %v132 = vpop.f32.mrb[0].mxu0
  %v133 = vadd.f32 0.0, %v132
  %v134 = vpop.f32.mrb[0].mxu0
  %v135 = vadd.f32 0.0, %v134
  %136 = vmatprep.mubr.bf16.mxu0 0
  %137 = vmatmul.mubr.bf16.gmra.mrb[0].mxu0 %v82
  %v138 = vpop.f32.mrb[0].mxu0
  %v139 = vadd.f32 0.0, %v138
  %v140 = vpop.f32.mrb[0].mxu0
  %v141 = vadd.f32 0.0, %v140
  %v142 = vpop.f32.mrb[0].mxu0
  %v143 = vpop.f32.mrb[0].mxu0
  %144 = vdwg.mxu0
  %145 = vmatprep.subr.bf16.mxu0 %v69
  %146 = vmatpush1.bf16.msra.mxu0 %v68
  %147 = vmatprep.subr.bf16.mxu0 0
  %148 = vmatpush1.bf16.msra.mxu0 0
  %149 = vmatprep.subr.bf16.mxu0 0
  %150 = vmatpush1.bf16.msra.mxu0 0
  %151 = vmatprep.subr.bf16.mxu0 0
  %152 = vmatpush1.bf16.msra.mxu0 0
  %153 = vmatprep.subr.bf16.mxu0 0
  %154 = vmatpush1.bf16.msra.mxu0 0
  %155 = vmatprep.subr.bf16.mxu0 0
  %156 = vmatpush1.bf16.msra.mxu0 0
  %157 = vmatprep.subr.bf16.mxu0 0
  %158 = vmatpush1.bf16.msra.mxu0 0
  %159 = vmatprep.subr.bf16.mxu0 0
  %160 = vmatpush1.bf16.msra.mxu0 0
  %161 = vmatprep.subr.bf16.mxu0 0
  %162 = vmatpush1.bf16.msra.mxu0 0
  %163 = vmatprep.subr.bf16.mxu0 0
  %164 = vmatpush1.bf16.msra.mxu0 0
  %165 = vmatprep.subr.bf16.mxu0 0
  %166 = vmatpush1.bf16.msra.mxu0 0
  %167 = vmatprep.subr.bf16.mxu0 0
  %168 = vmatpush1.bf16.msra.mxu0 0
  %169 = vmatprep.subr.bf16.mxu0 0
  %170 = vmatpush1.bf16.msra.mxu0 0
  %171 = vmatprep.subr.bf16.mxu0 0
  %172 = vmatpush1.bf16.msra.mxu0 0
  %173 = vmatprep.subr.bf16.mxu0 0
  %174 = vmatpush1.bf16.msra.mxu0 0
  %175 = vmatprep.subr.bf16.mxu0 0
  %176 = vmatpush1.bf16.msra.mxu0 0
  %177 = vmatprep.mubr.bf16.mxu0 0
  %178 = vmatmul.mubr.bf16.gmra.mrb[0].mxu0 %v76
  %v179 = vpop.f32.mrb[0].mxu0
  %v180 = vadd.f32 0.0, %v179
  %v181 = vpop.f32.mrb[0].mxu0
  %v182 = vadd.f32 0.0, %v181
  %v183 = vpop.f32.mrb[0].mxu0
  %v184 = vadd.f32 0.0, %v183
  %v185 = vpop.f32.mrb[0].mxu0
  %v186 = vadd.f32 0.0, %v185
  %187 = vmatprep.mubr.bf16.mxu0 0
  %188 = vmatmul.mubr.bf16.gmra.mrb[0].mxu0 %v79
  %v189 = vpop.f32.mrb[0].mxu0
  %v190 = vadd.f32 0.0, %v189
  %v191 = vpop.f32.mrb[0].mxu0
  %v192 = vadd.f32 0.0, %v191
  %v193 = vpop.f32.mrb[0].mxu0
  %v194 = vadd.f32 0.0, %v193
  %v195 = vpop.f32.mrb[0].mxu0
  %v196 = vadd.f32 0.0, %v195
  %197 = vmatprep.mubr.bf16.mxu0 0
  %198 = vmatmul.mubr.bf16.gmra.mrb[0].mxu0 %v82
  %v199 = vpop.f32.mrb[0].mxu0
  %v200 = vadd.f32 0.0, %v199
  %v201 = vpop.f32.mrb[0].mxu0
  %v202 = vadd.f32 0.0, %v201
  %v203 = vpop.f32.mrb[0].mxu0
  %v204 = vpop.f32.mrb[0].mxu0
  %205 = vdwg.mxu0
  %207 = vset.pattern.permute.xlu0 0
  %208 = vperm.xlu0 %207, %v31
  %v209 = vpop.permute.xlu0 %208
  %v211 = vadd.f32 %v119, %v209
  %v212 = vadd.f32 %v121, %v209
  %v213 = vadd.f32 %v180, %v209
  %v214 = vadd.f32 %v182, %v209
  %v215 = vmax.f32 %v211, 0.0
  %v216 = vmax.f32 %v212, 0.0
  %v217 = vmax.f32 %v213, 0.0
  %v218 = vmax.f32 %v214, 0.0
  %220 = vset.pattern.permute.xlu0 1
  %221 = vperm.xlu0 %220, %v32
  %v222 = vpop.permute.xlu0 %221
  %224 = vset.pattern.permute.xlu0 1
  %225 = vperm.xlu0 %224, %v33
  %v226 = vpop.permute.xlu0 %225
  %228 = vset.pattern.permute.xlu0 1
  %229 = vperm.xlu0 %228, %v34
  %v230 = vpop.permute.xlu0 %229
  %232 = vset.pattern.permute.xlu0 1
  %233 = vperm.xlu0 %232, %v35
  %v234 = vpop.permute.xlu0 %233
  %vm235 = vcmask 1043456
  %v236 = vrot.slane %v222, 4
  %v237 = vrot.slane %v226, 4
  %v238 = vsel %vm235, %v236, %v237
  %v239 = vrot.slane %v230, 4
  %v240 = vsel %vm235, %v237, %v239
  %v241 = vrot.slane %v234, 4
  %v242 = vsel %vm235, %v239, %v241
  %v248 = vadd.f32 %v119, %v236
  %v249 = vadd.f32 %v121, %v236
  %v250 = vadd.f32 %v180, %v236
  %v251 = vadd.f32 %v182, %v236
  %v252 = vadd.f32 %v123, %v238
  %v253 = vadd.f32 %v125, %v238
  %v254 = vadd.f32 %v184, %v238
  %v255 = vadd.f32 %v186, %v238
  %v256 = vadd.f32 %v129, %v240
  %v257 = vadd.f32 %v131, %v240
  %v258 = vadd.f32 %v190, %v240
  %v259 = vadd.f32 %v192, %v240
  %v260 = vadd.f32 %v133, %v242
  %v261 = vadd.f32 %v135, %v242
  %v262 = vadd.f32 %v194, %v242
  %v263 = vadd.f32 %v196, %v242
  %v264 = vadd.f32 %v139, %v241
  %v265 = vadd.f32 %v141, %v241
  %v266 = vadd.f32 %v200, %v241
  %v267 = vadd.f32 %v202, %v241
  %v268 = vld [vmem:[%s3] sm:$0xf]
  %v269 = vld [vmem:[%s3 + $0x4] sm:$0xf]
  %v270 = vld [vmem:[%s3 + $0x8] sm:$0xf]
  %v271 = vpack.c.bf16 %v215, %v215
  %v272 = vpack.c.bf16 %v216, %v216
  %v273 = vpack.c.bf16 %v217, %v217
  %v274 = vpack.c.bf16 %v218, %v218
  %v278 = vunpack.c.l.b16 %v268
  %v279 = vunpack.c.l.b16 %v269
  %v280 = vunpack.c.l.b16 %v270
  %v281 = vpack.c.b16 %v279, %v278
  %v282 = vpack.c.b16 %v280, %v280
  %vm283 = vcmask 31744
  %v285 = vsel %vm283, %v281, 0
  %v288 = vsel %vm283, %v282, 0
  %vm290 = vcmask 1041408
  %v292 = vsel %vm290, %v271, 0
  %v295 = vsel %vm290, %v272, 0
  %v298 = vsel %vm290, %v273, 0
  %v301 = vsel %vm290, %v274, 0
  %303 = vmatprep.subr.bf16.mxu0 %v295
  %304 = vmatpush1.bf16.msra.mxu0 %v292
  %305 = vmatprep.subr.bf16.mxu0 0
  %306 = vmatpush1.bf16.msra.mxu0 0
  %307 = vmatprep.subr.bf16.mxu0 0
  %308 = vmatpush1.bf16.msra.mxu0 0
  %309 = vmatprep.subr.bf16.mxu0 0
  %310 = vmatpush1.bf16.msra.mxu0 0
  %311 = vmatprep.subr.bf16.mxu0 0
  %312 = vmatpush1.bf16.msra.mxu0 0
  %313 = vmatprep.subr.bf16.mxu0 0
  %314 = vmatpush1.bf16.msra.mxu0 0
  %315 = vmatprep.subr.bf16.mxu0 0
  %316 = vmatpush1.bf16.msra.mxu0 0
  %317 = vmatprep.subr.bf16.mxu0 0
  %318 = vmatpush1.bf16.msra.mxu0 0
  %319 = vmatprep.subr.bf16.mxu0 0
  %320 = vmatpush1.bf16.msra.mxu0 0
  %321 = vmatprep.subr.bf16.mxu0 0
  %322 = vmatpush1.bf16.msra.mxu0 0
  %323 = vmatprep.subr.bf16.mxu0 0
  %324 = vmatpush1.bf16.msra.mxu0 0
  %325 = vmatprep.subr.bf16.mxu0 0
  %326 = vmatpush1.bf16.msra.mxu0 0
  %327 = vmatprep.subr.bf16.mxu0 0
  %328 = vmatpush1.bf16.msra.mxu0 0
  %329 = vmatprep.subr.bf16.mxu0 0
  %330 = vmatpush1.bf16.msra.mxu0 0
  %331 = vmatprep.subr.bf16.mxu0 0
  %332 = vmatpush1.bf16.msra.mxu0 0
  %333 = vmatprep.subr.bf16.mxu0 0
  %334 = vmatpush1.bf16.msra.mxu0 0
  %335 = vmatprep.mubr.bf16.mxu0 0
  %336 = vmatmul.mubr.bf16.gmra.mrb[0].mxu0 %v285
  %v337 = vpop.f32.mrb[0].mxu0
  %v338 = vadd.f32 0.0, %v337
  %v339 = vpop.f32.mrb[0].mxu0
  %v340 = vadd.f32 0.0, %v339
  %v341 = vpop.f32.mrb[0].mxu0
  %v342 = vadd.f32 0.0, %v341
  %v343 = vpop.f32.mrb[0].mxu0
  %v344 = vadd.f32 0.0, %v343
  %345 = vmatprep.mubr.bf16.mxu0 0
  %346 = vmatmul.mubr.bf16.gmra.mrb[0].mxu0 %v288
  %v347 = vpop.f32.mrb[0].mxu0
  %v348 = vadd.f32 0.0, %v347
  %v349 = vpop.f32.mrb[0].mxu0
  %v350 = vadd.f32 0.0, %v349
  %v351 = vpop.f32.mrb[0].mxu0
  %v352 = vpop.f32.mrb[0].mxu0
  %353 = vdwg.mxu0
  %354 = vmatprep.subr.bf16.mxu0 %v301
  %355 = vmatpush1.bf16.msra.mxu0 %v298
  %356 = vmatprep.subr.bf16.mxu0 0
  %357 = vmatpush1.bf16.msra.mxu0 0
  %358 = vmatprep.subr.bf16.mxu0 0
  %359 = vmatpush1.bf16.msra.mxu0 0
  %360 = vmatprep.subr.bf16.mxu0 0
  %361 = vmatpush1.bf16.msra.mxu0 0
  %362 = vmatprep.subr.bf16.mxu0 0
  %363 = vmatpush1.bf16.msra.mxu0 0
  %364 = vmatprep.subr.bf16.mxu0 0
  %365 = vmatpush1.bf16.msra.mxu0 0
  %366 = vmatprep.subr.bf16.mxu0 0
  %367 = vmatpush1.bf16.msra.mxu0 0
  %368 = vmatprep.subr.bf16.mxu0 0
  %369 = vmatpush1.bf16.msra.mxu0 0
  %370 = vmatprep.subr.bf16.mxu0 0
  %371 = vmatpush1.bf16.msra.mxu0 0
  %372 = vmatprep.subr.bf16.mxu0 0
  %373 = vmatpush1.bf16.msra.mxu0 0
  %374 = vmatprep.subr.bf16.mxu0 0
  %375 = vmatpush1.bf16.msra.mxu0 0
  %376 = vmatprep.subr.bf16.mxu0 0
  %377 = vmatpush1.bf16.msra.mxu0 0
  %378 = vmatprep.subr.bf16.mxu0 0
  %379 = vmatpush1.bf16.msra.mxu0 0
  %380 = vmatprep.subr.bf16.mxu0 0
  %381 = vmatpush1.bf16.msra.mxu0 0
  %382 = vmatprep.subr.bf16.mxu0 0
  %383 = vmatpush1.bf16.msra.mxu0 0
  %384 = vmatprep.subr.bf16.mxu0 0
  %385 = vmatpush1.bf16.msra.mxu0 0
  %386 = vmatprep.mubr.bf16.mxu0 0
  %387 = vmatmul.mubr.bf16.gmra.mrb[0].mxu0 %v285
  %v388 = vpop.f32.mrb[0].mxu0
  %v389 = vadd.f32 0.0, %v388
  %v390 = vpop.f32.mrb[0].mxu0
  %v391 = vadd.f32 0.0, %v390
  %v392 = vpop.f32.mrb[0].mxu0
  %v393 = vadd.f32 0.0, %v392
  %v394 = vpop.f32.mrb[0].mxu0
  %v395 = vadd.f32 0.0, %v394
  %396 = vmatprep.mubr.bf16.mxu0 0
  %397 = vmatmul.mubr.bf16.gmra.mrb[0].mxu0 %v288
  %v398 = vpop.f32.mrb[0].mxu0
  %v399 = vadd.f32 0.0, %v398
  %v400 = vpop.f32.mrb[0].mxu0
  %v401 = vadd.f32 0.0, %v400
  %v402 = vpop.f32.mrb[0].mxu0
  %v403 = vpop.f32.mrb[0].mxu0
  %404 = vdwg.mxu0
  %405 = vrot.lane.b32.xlu0 %v342, 34
  %v406 = vpop.permute.xlu0 %405
  %407 = vrot.lane.b32.xlu0 %v348, 34
  %v408 = vpop.permute.xlu0 %407
  %409 = vrot.lane.b32.xlu0 %v344, 34
  %v410 = vpop.permute.xlu0 %409
  %411 = vrot.lane.b32.xlu0 %v350, 34
  %v412 = vpop.permute.xlu0 %411
  %413 = vrot.lane.b32.xlu0 %v393, 34
  %v414 = vpop.permute.xlu0 %413
  %415 = vrot.lane.b32.xlu0 %v399, 34
  %v416 = vpop.permute.xlu0 %415
  %417 = vrot.lane.b32.xlu0 %v395, 34
  %v418 = vpop.permute.xlu0 %417
  %419 = vrot.lane.b32.xlu0 %v401, 34
  %v420 = vpop.permute.xlu0 %419
  %v421 = vlaneseq
  %v422 = vand.u32 %v421, 127
  %vm423 = vcmp.lt.s32.totalorder %v422, 34
  %v424 = vsel %vm423, %v414, %v418
  %v425 = vsel %vm423, %v416, %v420
  %v426 = vsel %vm423, %v410, %v414
  %v427 = vsel %vm423, %v412, %v416
  %v428 = vsel %vm423, %v406, %v410
  %v429 = vsel %vm423, %v408, %v412
  %v430 = vsel %vm423, %v418, %v406
  %v431 = vsel %vm423, %v420, %v408
  %v432 = vld [vmem:[%s1] ss:$8 sm:$0xf]
  %v434 = vlaneseq
  %v435 = vshrl.u32 %v434, 7
  %v436 = vsub.s32 0, %v435
  %v437 = vrot.slane %v432, %v436
  %v438 = vlaneseq
  %v439 = vshrl.u32 %v438, 7
  %v440 = vsub.s32 1, %v439
  %v441 = vrot.slane %v432, %v440
  %v442 = vlaneseq
  %v443 = vshrl.u32 %v442, 7
  %v444 = vsub.s32 2, %v443
  %v445 = vrot.slane %v432, %v444
  %v446 = vlaneseq
  %v447 = vshrl.u32 %v446, 7
  %v448 = vsub.s32 3, %v447
  %v449 = vrot.slane %v432, %v448
  %v454 = vmul.f32 %v430, %v437
  %v455 = vmul.f32 %v428, %v441
  %v456 = vmul.f32 %v426, %v445
  %v457 = vmul.f32 %v424, %v449
  %v458 = vmul.f32 %v431, %v437
  %v459 = vmul.f32 %v429, %v441
  %v460 = vmul.f32 %v427, %v445
  %v461 = vmul.f32 %v425, %v449
  %v462 = vld [vmem:[%s6] sm:$0xff]
  %464 = vset.pattern.permute.xlu0 0
  %465 = vperm.xlu0 %464, %v462
  %v466 = vpop.permute.xlu0 %465
  %v468 = vadd.f32 %v454, %v466
  %v469 = vadd.f32 %v455, %v466
  %v470 = vadd.f32 %v456, %v466
  %v471 = vadd.f32 %v457, %v466
  %v472 = vmul.f32 %v338, %v468
  %v473 = vmul.f32 %v340, %v469
  %v474 = vmul.f32 %v389, %v470
  %v475 = vmul.f32 %v391, %v471
  %476 = vst [vmem:[#allocation2] sm:$0xff] %v472
  %477 = vst [vmem:[#allocation2 + $0x8] sm:$0xff] %v473
  %478 = vst [vmem:[#allocation2 + $0x10] sm:$0xff] %v474
  %479 = vst [vmem:[#allocation2 + $0x18] sm:$0xff] %v475
  %480 = vst [vmem:[#allocation3] sm:$0xff] %v458
  %481 = vst [vmem:[#allocation3 + $0x8] sm:$0xff] %v459
  %482 = vst [vmem:[#allocation3 + $0x10] sm:$0xff] %v460
  %483 = vst [vmem:[#allocation3 + $0x18] sm:$0xff] %v461
  %484 = vrot.lane.b32.xlu0 %v342, 33
  %v485 = vpop.permute.xlu0 %484
  %486 = vrot.lane.b32.xlu0 %v348, 33
  %v487 = vpop.permute.xlu0 %486
  %488 = vrot.lane.b32.xlu0 %v344, 33
  %v489 = vpop.permute.xlu0 %488
  %490 = vrot.lane.b32.xlu0 %v350, 33
  %v491 = vpop.permute.xlu0 %490
  %492 = vrot.lane.b32.xlu0 %v393, 33
  %v493 = vpop.permute.xlu0 %492
  %494 = vrot.lane.b32.xlu0 %v399, 33
  %v495 = vpop.permute.xlu0 %494
  %496 = vrot.lane.b32.xlu0 %v395, 33
  %v497 = vpop.permute.xlu0 %496
  %498 = vrot.lane.b32.xlu0 %v401, 33
  %v499 = vpop.permute.xlu0 %498
  %vm500 = vcmp.lt.s32.totalorder %v422, 33
  %v501 = vsel %vm500, %v493, %v497
  %v502 = vsel %vm500, %v495, %v499
  %v503 = vsel %vm500, %v489, %v493
  %v504 = vsel %vm500, %v491, %v495
  %v505 = vsel %vm500, %v485, %v489
  %v506 = vsel %vm500, %v487, %v491
  %v507 = vsel %vm500, %v497, %v485
  %v508 = vsel %vm500, %v499, %v487
  %s509 = scalar_lea.vmem %s1, 1
  %v510 = vld [vmem:[%s509] ss:$8 sm:$0xf]
  %v512 = vlaneseq
  %v513 = vshrl.u32 %v512, 7
  %v514 = vsub.s32 0, %v513
  %v515 = vrot.slane %v510, %v514
  %v516 = vlaneseq
  %v517 = vshrl.u32 %v516, 7
  %v518 = vsub.s32 1, %v517
  %v519 = vrot.slane %v510, %v518
  %v520 = vlaneseq
  %v521 = vshrl.u32 %v520, 7
  %v522 = vsub.s32 2, %v521
  %v523 = vrot.slane %v510, %v522
  %v524 = vlaneseq
  %v525 = vshrl.u32 %v524, 7
  %v526 = vsub.s32 3, %v525
  %v527 = vrot.slane %v510, %v526
  %v532 = vmul.f32 %v507, %v515
  %v533 = vmul.f32 %v505, %v519
  %v534 = vmul.f32 %v503, %v523
  %v535 = vmul.f32 %v501, %v527
  %v536 = vmul.f32 %v508, %v515
  %v537 = vmul.f32 %v506, %v519
  %v538 = vmul.f32 %v504, %v523
  %v539 = vmul.f32 %v502, %v527
  %v540 = vld [vmem:[%s6] sm:$0xff]
  %542 = vset.pattern.permute.xlu0 1
  %543 = vperm.xlu0 %542, %v540
  %v544 = vpop.permute.xlu0 %543
  %v546 = vadd.f32 %v532, %v544
  %v547 = vadd.f32 %v533, %v544
  %v548 = vadd.f32 %v534, %v544
  %v549 = vadd.f32 %v535, %v544
  %v550 = vmul.f32 %v338, %v546
  %v551 = vmul.f32 %v340, %v547
  %v552 = vmul.f32 %v389, %v548
  %v553 = vmul.f32 %v391, %v549
  %s554 = scalar_lea.vmem [#allocation2], 32
  %555 = vst [vmem:[%s554] sm:$0xff] %v550
  %556 = vst [vmem:[%s554 + $0x8] sm:$0xff] %v551
  %557 = vst [vmem:[%s554 + $0x10] sm:$0xff] %v552
  %558 = vst [vmem:[%s554 + $0x18] sm:$0xff] %v553
  %s559 = scalar_lea.vmem [#allocation3], 32
  %560 = vst [vmem:[%s559] sm:$0xff] %v536
  %561 = vst [vmem:[%s559 + $0x8] sm:$0xff] %v537
  %562 = vst [vmem:[%s559 + $0x10] sm:$0xff] %v538
  %563 = vst [vmem:[%s559 + $0x18] sm:$0xff] %v539
  %v564 = vmax.f32 %v472, %v550
  %v565 = vmax.f32 %v473, %v551
  %v566 = vmax.f32 %v474, %v552
  %v567 = vmax.f32 %v475, %v553
  %568 = vrot.lane.b32.xlu0 %v342, 32
  %v569 = vpop.permute.xlu0 %568
  %570 = vrot.lane.b32.xlu0 %v348, 32
  %v571 = vpop.permute.xlu0 %570
  %572 = vrot.lane.b32.xlu0 %v344, 32
  %v573 = vpop.permute.xlu0 %572
  %574 = vrot.lane.b32.xlu0 %v350, 32
  %v575 = vpop.permute.xlu0 %574
  %576 = vrot.lane.b32.xlu0 %v393, 32
  %v577 = vpop.permute.xlu0 %576
  %578 = vrot.lane.b32.xlu0 %v399, 32
  %v579 = vpop.permute.xlu0 %578
  %580 = vrot.lane.b32.xlu0 %v395, 32
  %v581 = vpop.permute.xlu0 %580
  %582 = vrot.lane.b32.xlu0 %v401, 32
  %v583 = vpop.permute.xlu0 %582
  %vm584 = vcmp.lt.s32.totalorder %v422, 32
  %v585 = vsel %vm584, %v577, %v581
  %v586 = vsel %vm584, %v579, %v583
  %v587 = vsel %vm584, %v573, %v577
  %v588 = vsel %vm584, %v575, %v579
  %v589 = vsel %vm584, %v569, %v573
  %v590 = vsel %vm584, %v571, %v575
  %v591 = vsel %vm584, %v581, %v569
  %v592 = vsel %vm584, %v583, %v571
  %s593 = scalar_lea.vmem %s1, 2
  %v594 = vld [vmem:[%s593] ss:$8 sm:$0xf]
  %v596 = vlaneseq
  %v597 = vshrl.u32 %v596, 7
  %v598 = vsub.s32 0, %v597
  %v599 = vrot.slane %v594, %v598
  %v600 = vlaneseq
  %v601 = vshrl.u32 %v600, 7
  %v602 = vsub.s32 1, %v601
  %v603 = vrot.slane %v594, %v602
  %v604 = vlaneseq
  %v605 = vshrl.u32 %v604, 7
  %v606 = vsub.s32 2, %v605
  %v607 = vrot.slane %v594, %v606
  %v608 = vlaneseq
  %v609 = vshrl.u32 %v608, 7
  %v610 = vsub.s32 3, %v609
  %v611 = vrot.slane %v594, %v610
  %v616 = vmul.f32 %v591, %v599
  %v617 = vmul.f32 %v589, %v603
  %v618 = vmul.f32 %v587, %v607
  %v619 = vmul.f32 %v585, %v611
  %v620 = vmul.f32 %v592, %v599
  %v621 = vmul.f32 %v590, %v603
  %v622 = vmul.f32 %v588, %v607
  %v623 = vmul.f32 %v586, %v611
  %v624 = vld [vmem:[%s6] sm:$0xff]
  %626 = vset.pattern.permute.xlu0 2
  %627 = vperm.xlu0 %626, %v624
  %v628 = vpop.permute.xlu0 %627
  %v630 = vadd.f32 %v616, %v628
  %v631 = vadd.f32 %v617, %v628
  %v632 = vadd.f32 %v618, %v628
  %v633 = vadd.f32 %v619, %v628
  %v634 = vmul.f32 %v338, %v630
  %v635 = vmul.f32 %v340, %v631
  %v636 = vmul.f32 %v389, %v632
  %v637 = vmul.f32 %v391, %v633
  %s638 = scalar_lea.vmem [#allocation2], 64
  %639 = vst [vmem:[%s638] sm:$0xff] %v634
  %640 = vst [vmem:[%s638 + $0x8] sm:$0xff] %v635
  %641 = vst [vmem:[%s638 + $0x10] sm:$0xff] %v636
  %642 = vst [vmem:[%s638 + $0x18] sm:$0xff] %v637
  %s643 = scalar_lea.vmem [#allocation3], 64
  %644 = vst [vmem:[%s643] sm:$0xff] %v620
  %645 = vst [vmem:[%s643 + $0x8] sm:$0xff] %v621
  %646 = vst [vmem:[%s643 + $0x10] sm:$0xff] %v622
  %647 = vst [vmem:[%s643 + $0x18] sm:$0xff] %v623
  %v648 = vmax.f32 %v564, %v634
  %v649 = vmax.f32 %v565, %v635
  %v650 = vmax.f32 %v566, %v636
  %v651 = vmax.f32 %v567, %v637
  %652 = vrot.lane.b32.xlu0 %v342, 31
  %v653 = vpop.permute.xlu0 %652
  %654 = vrot.lane.b32.xlu0 %v348, 31
  %v655 = vpop.permute.xlu0 %654
  %656 = vrot.lane.b32.xlu0 %v344, 31
  %v657 = vpop.permute.xlu0 %656
  %658 = vrot.lane.b32.xlu0 %v350, 31
  %v659 = vpop.permute.xlu0 %658
  %660 = vrot.lane.b32.xlu0 %v393, 31
  %v661 = vpop.permute.xlu0 %660
  %662 = vrot.lane.b32.xlu0 %v399, 31
  %v663 = vpop.permute.xlu0 %662
  %664 = vrot.lane.b32.xlu0 %v395, 31
  %v665 = vpop.permute.xlu0 %664
  %666 = vrot.lane.b32.xlu0 %v401, 31
  %v667 = vpop.permute.xlu0 %666
  %vm668 = vcmp.lt.s32.totalorder %v422, 31
  %v669 = vsel %vm668, %v661, %v665
  %v670 = vsel %vm668, %v663, %v667
  %v671 = vsel %vm668, %v657, %v661
  %v672 = vsel %vm668, %v659, %v663
  %v673 = vsel %vm668, %v653, %v657
  %v674 = vsel %vm668, %v655, %v659
  %v675 = vsel %vm668, %v665, %v653
  %v676 = vsel %vm668, %v667, %v655
  %s677 = scalar_lea.vmem %s1, 3
  %v678 = vld [vmem:[%s677] ss:$8 sm:$0xf]
  %v680 = vlaneseq
  %v681 = vshrl.u32 %v680, 7
  %v682 = vsub.s32 0, %v681
  %v683 = vrot.slane %v678, %v682
  %v684 = vlaneseq
  %v685 = vshrl.u32 %v684, 7
  %v686 = vsub.s32 1, %v685
  %v687 = vrot.slane %v678, %v686
  %v688 = vlaneseq
  %v689 = vshrl.u32 %v688, 7
  %v690 = vsub.s32 2, %v689
  %v691 = vrot.slane %v678, %v690
  %v692 = vlaneseq
  %v693 = vshrl.u32 %v692, 7
  %v694 = vsub.s32 3, %v693
  %v695 = vrot.slane %v678, %v694
  %v700 = vmul.f32 %v675, %v683
  %v701 = vmul.f32 %v673, %v687
  %v702 = vmul.f32 %v671, %v691
  %v703 = vmul.f32 %v669, %v695
  %v704 = vmul.f32 %v676, %v683
  %v705 = vmul.f32 %v674, %v687
  %v706 = vmul.f32 %v672, %v691
  %v707 = vmul.f32 %v670, %v695
  %v708 = vld [vmem:[%s6] sm:$0xff]
  %710 = vset.pattern.permute.xlu0 3
  %711 = vperm.xlu0 %710, %v708
  %v712 = vpop.permute.xlu0 %711
  %v714 = vadd.f32 %v700, %v712
  %v715 = vadd.f32 %v701, %v712
  %v716 = vadd.f32 %v702, %v712
  %v717 = vadd.f32 %v703, %v712
  %v718 = vmul.f32 %v338, %v714
  %v719 = vmul.f32 %v340, %v715
  %v720 = vmul.f32 %v389, %v716
  %v721 = vmul.f32 %v391, %v717
  %s722 = scalar_lea.vmem [#allocation2], 96
  %723 = vst [vmem:[%s722] sm:$0xff] %v718
  %724 = vst [vmem:[%s722 + $0x8] sm:$0xff] %v719
  %725 = vst [vmem:[%s722 + $0x10] sm:$0xff] %v720
  %726 = vst [vmem:[%s722 + $0x18] sm:$0xff] %v721
  %s727 = scalar_lea.vmem [#allocation3], 96
  %728 = vst [vmem:[%s727] sm:$0xff] %v704
  %729 = vst [vmem:[%s727 + $0x8] sm:$0xff] %v705
  %730 = vst [vmem:[%s727 + $0x10] sm:$0xff] %v706
  %731 = vst [vmem:[%s727 + $0x18] sm:$0xff] %v707
  %v732 = vmax.f32 %v648, %v718
  %v733 = vmax.f32 %v649, %v719
  %v734 = vmax.f32 %v650, %v720
  %v735 = vmax.f32 %v651, %v721
  %736 = vrot.lane.b32.xlu0 %v342, 30
  %v737 = vpop.permute.xlu0 %736
  %738 = vrot.lane.b32.xlu0 %v348, 30
  %v739 = vpop.permute.xlu0 %738
  %740 = vrot.lane.b32.xlu0 %v344, 30
  %v741 = vpop.permute.xlu0 %740
  %742 = vrot.lane.b32.xlu0 %v350, 30
  %v743 = vpop.permute.xlu0 %742
  %744 = vrot.lane.b32.xlu0 %v393, 30
  %v745 = vpop.permute.xlu0 %744
  %746 = vrot.lane.b32.xlu0 %v399, 30
  %v747 = vpop.permute.xlu0 %746
  %748 = vrot.lane.b32.xlu0 %v395, 30
  %v749 = vpop.permute.xlu0 %748
  %750 = vrot.lane.b32.xlu0 %v401, 30
  %v751 = vpop.permute.xlu0 %750
  %vm752 = vcmp.lt.s32.totalorder %v422, 30
  %v753 = vsel %vm752, %v745, %v749
  %v754 = vsel %vm752, %v747, %v751
  %v755 = vsel %vm752, %v741, %v745
  %v756 = vsel %vm752, %v743, %v747
  %v757 = vsel %vm752, %v737, %v741
  %v758 = vsel %vm752, %v739, %v743
  %v759 = vsel %vm752, %v749, %v737
  %v760 = vsel %vm752, %v751, %v739
  %s761 = scalar_lea.vmem %s1, 4
  %v762 = vld [vmem:[%s761] ss:$8 sm:$0xf]
  %v764 = vlaneseq
  %v765 = vshrl.u32 %v764, 7
  %v766 = vsub.s32 0, %v765
  %v767 = vrot.slane %v762, %v766
  %v768 = vlaneseq
  %v769 = vshrl.u32 %v768, 7
  %v770 = vsub.s32 1, %v769
  %v771 = vrot.slane %v762, %v770
  %v772 = vlaneseq
  %v773 = vshrl.u32 %v772, 7
  %v774 = vsub.s32 2, %v773
  %v775 = vrot.slane %v762, %v774
  %v776 = vlaneseq
  %v777 = vshrl.u32 %v776, 7
  %v778 = vsub.s32 3, %v777
  %v779 = vrot.slane %v762, %v778
  %v784 = vmul.f32 %v759, %v767
  %v785 = vmul.f32 %v757, %v771
  %v786 = vmul.f32 %v755, %v775
  %v787 = vmul.f32 %v753, %v779
  %v788 = vmul.f32 %v760, %v767
  %v789 = vmul.f32 %v758, %v771
  %v790 = vmul.f32 %v756, %v775
  %v791 = vmul.f32 %v754, %v779
  %v792 = vld [vmem:[%s6] sm:$0xff]
  %794 = vset.pattern.permute.xlu0 4
  %795 = vperm.xlu0 %794, %v792
  %v796 = vpop.permute.xlu0 %795
  %v798 = vadd.f32 %v784, %v796
  %v799 = vadd.f32 %v785, %v796
  %v800 = vadd.f32 %v786, %v796
  %v801 = vadd.f32 %v787, %v796
  %v802 = vmul.f32 %v338, %v798
  %v803 = vmul.f32 %v340, %v799
  %v804 = vmul.f32 %v389, %v800
  %v805 = vmul.f32 %v391, %v801
  %s806 = scalar_lea.vmem [#allocation2], 128
  %807 = vst [vmem:[%s806] sm:$0xff] %v802
  %808 = vst [vmem:[%s806 + $0x8] sm:$0xff] %v803
  %809 = vst [vmem:[%s806 + $0x10] sm:$0xff] %v804
  %810 = vst [vmem:[%s806 + $0x18] sm:$0xff] %v805
  %s811 = scalar_lea.vmem [#allocation3], 128
  %812 = vst [vmem:[%s811] sm:$0xff] %v788
  %813 = vst [vmem:[%s811 + $0x8] sm:$0xff] %v789
  %814 = vst [vmem:[%s811 + $0x10] sm:$0xff] %v790
  %815 = vst [vmem:[%s811 + $0x18] sm:$0xff] %v791
  %v816 = vmax.f32 %v732, %v802
  %v817 = vmax.f32 %v733, %v803
  %v818 = vmax.f32 %v734, %v804
  %v819 = vmax.f32 %v735, %v805
  %820 = vrot.lane.b32.xlu0 %v342, 18
  %v821 = vpop.permute.xlu0 %820
  %822 = vrot.lane.b32.xlu0 %v348, 18
  %v823 = vpop.permute.xlu0 %822
  %824 = vrot.lane.b32.xlu0 %v344, 18
  %v825 = vpop.permute.xlu0 %824
  %826 = vrot.lane.b32.xlu0 %v350, 18
  %v827 = vpop.permute.xlu0 %826
  %828 = vrot.lane.b32.xlu0 %v393, 18
  %v829 = vpop.permute.xlu0 %828
  %830 = vrot.lane.b32.xlu0 %v399, 18
  %v831 = vpop.permute.xlu0 %830
  %832 = vrot.lane.b32.xlu0 %v395, 18
  %v833 = vpop.permute.xlu0 %832
  %834 = vrot.lane.b32.xlu0 %v401, 18
  %v835 = vpop.permute.xlu0 %834
  %vm836 = vcmp.lt.s32.totalorder %v422, 18
  %v837 = vsel %vm836, %v829, %v833
  %v838 = vsel %vm836, %v831, %v835
  %v839 = vsel %vm836, %v825, %v829
  %v840 = vsel %vm836, %v827, %v831
  %v841 = vsel %vm836, %v821, %v825
  %v842 = vsel %vm836, %v823, %v827
  %v843 = vsel %vm836, %v833, %v821
  %v844 = vsel %vm836, %v835, %v823
  %s845 = scalar_lea.vmem %s1, 5
  %v846 = vld [vmem:[%s845] ss:$8 sm:$0xf]
  %v848 = vlaneseq
  %v849 = vshrl.u32 %v848, 7
  %v850 = vsub.s32 0, %v849
  %v851 = vrot.slane %v846, %v850
  %v852 = vlaneseq
  %v853 = vshrl.u32 %v852, 7
  %v854 = vsub.s32 1, %v853
  %v855 = vrot.slane %v846, %v854
  %v856 = vlaneseq
  %v857 = vshrl.u32 %v856, 7
  %v858 = vsub.s32 2, %v857
  %v859 = vrot.slane %v846, %v858
  %v860 = vlaneseq
  %v861 = vshrl.u32 %v860, 7
  %v862 = vsub.s32 3, %v861
  %v863 = vrot.slane %v846, %v862
  %v868 = vmul.f32 %v843, %v851
  %v869 = vmul.f32 %v841, %v855
  %v870 = vmul.f32 %v839, %v859
  %v871 = vmul.f32 %v837, %v863
  %v872 = vmul.f32 %v844, %v851
  %v873 = vmul.f32 %v842, %v855
  %v874 = vmul.f32 %v840, %v859
  %v875 = vmul.f32 %v838, %v863
  %v876 = vld [vmem:[%s6] sm:$0xff]
  %878 = vset.pattern.permute.xlu0 5
  %879 = vperm.xlu0 %878, %v876
  %v880 = vpop.permute.xlu0 %879
  %v882 = vadd.f32 %v868, %v880
  %v883 = vadd.f32 %v869, %v880
  %v884 = vadd.f32 %v870, %v880
  %v885 = vadd.f32 %v871, %v880
  %v886 = vmul.f32 %v338, %v882
  %v887 = vmul.f32 %v340, %v883
  %v888 = vmul.f32 %v389, %v884
  %v889 = vmul.f32 %v391, %v885
  %s890 = scalar_lea.vmem [#allocation2], 160
  %891 = vst [vmem:[%s890] sm:$0xff] %v886
  %892 = vst [vmem:[%s890 + $0x8] sm:$0xff] %v887
  %893 = vst [vmem:[%s890 + $0x10] sm:$0xff] %v888
  %894 = vst [vmem:[%s890 + $0x18] sm:$0xff] %v889
  %s895 = scalar_lea.vmem [#allocation3], 160
  %896 = vst [vmem:[%s895] sm:$0xff] %v872
  %897 = vst [vmem:[%s895 + $0x8] sm:$0xff] %v873
  %898 = vst [vmem:[%s895 + $0x10] sm:$0xff] %v874
  %899 = vst [vmem:[%s895 + $0x18] sm:$0xff] %v875
  %v900 = vmax.f32 %v816, %v886
  %v901 = vmax.f32 %v817, %v887
  %v902 = vmax.f32 %v818, %v888
  %v903 = vmax.f32 %v819, %v889
  %904 = vrot.lane.b32.xlu0 %v342, 17
  %v905 = vpop.permute.xlu0 %904
  %906 = vrot.lane.b32.xlu0 %v348, 17
  %v907 = vpop.permute.xlu0 %906
  %908 = vrot.lane.b32.xlu0 %v344, 17
  %v909 = vpop.permute.xlu0 %908
  %910 = vrot.lane.b32.xlu0 %v350, 17
  %v911 = vpop.permute.xlu0 %910
  %912 = vrot.lane.b32.xlu0 %v393, 17
  %v913 = vpop.permute.xlu0 %912
  %914 = vrot.lane.b32.xlu0 %v399, 17
  %v915 = vpop.permute.xlu0 %914
  %916 = vrot.lane.b32.xlu0 %v395, 17
  %v917 = vpop.permute.xlu0 %916
  %918 = vrot.lane.b32.xlu0 %v401, 17
  %v919 = vpop.permute.xlu0 %918
  %vm920 = vcmp.lt.s32.totalorder %v422, 17
  %v921 = vsel %vm920, %v913, %v917
  %v922 = vsel %vm920, %v915, %v919
  %v923 = vsel %vm920, %v909, %v913
  %v924 = vsel %vm920, %v911, %v915
  %v925 = vsel %vm920, %v905, %v909
  %v926 = vsel %vm920, %v907, %v911
  %v927 = vsel %vm920, %v917, %v905
  %v928 = vsel %vm920, %v919, %v907
  %s929 = scalar_lea.vmem %s1, 6
  %v930 = vld [vmem:[%s929] ss:$8 sm:$0xf]
  %v932 = vlaneseq
  %v933 = vshrl.u32 %v932, 7
  %v934 = vsub.s32 0, %v933
  %v935 = vrot.slane %v930, %v934
  %v936 = vlaneseq
  %v937 = vshrl.u32 %v936, 7
  %v938 = vsub.s32 1, %v937
  %v939 = vrot.slane %v930, %v938
  %v940 = vlaneseq
  %v941 = vshrl.u32 %v940, 7
  %v942 = vsub.s32 2, %v941
  %v943 = vrot.slane %v930, %v942
  %v944 = vlaneseq
  %v945 = vshrl.u32 %v944, 7
  %v946 = vsub.s32 3, %v945
  %v947 = vrot.slane %v930, %v946
  %v952 = vmul.f32 %v927, %v935
  %v953 = vmul.f32 %v925, %v939
  %v954 = vmul.f32 %v923, %v943
  %v955 = vmul.f32 %v921, %v947
  %v956 = vmul.f32 %v928, %v935
  %v957 = vmul.f32 %v926, %v939
  %v958 = vmul.f32 %v924, %v943
  %v959 = vmul.f32 %v922, %v947
  %v960 = vld [vmem:[%s6] sm:$0xff]
  %962 = vset.pattern.permute.xlu0 6
  %963 = vperm.xlu0 %962, %v960
  %v964 = vpop.permute.xlu0 %963
  %v966 = vadd.f32 %v952, %v964
  %v967 = vadd.f32 %v953, %v964
  %v968 = vadd.f32 %v954, %v964
  %v969 = vadd.f32 %v955, %v964
  %v970 = vmul.f32 %v338, %v966
  %v971 = vmul.f32 %v340, %v967
  %v972 = vmul.f32 %v389, %v968
  %v973 = vmul.f32 %v391, %v969
  %s974 = scalar_lea.vmem [#allocation2], 192
  %975 = vst [vmem:[%s974] sm:$0xff] %v970
  %976 = vst [vmem:[%s974 + $0x8] sm:$0xff] %v971
  %977 = vst [vmem:[%s974 + $0x10] sm:$0xff] %v972
  %978 = vst [vmem:[%s974 + $0x18] sm:$0xff] %v973
  %s979 = scalar_lea.vmem [#allocation3], 192
  %980 = vst [vmem:[%s979] sm:$0xff] %v956
  %981 = vst [vmem:[%s979 + $0x8] sm:$0xff] %v957
  %982 = vst [vmem:[%s979 + $0x10] sm:$0xff] %v958
  %983 = vst [vmem:[%s979 + $0x18] sm:$0xff] %v959
  %v984 = vmax.f32 %v900, %v970
  %v985 = vmax.f32 %v901, %v971
  %v986 = vmax.f32 %v902, %v972
  %v987 = vmax.f32 %v903, %v973
  %988 = vrot.lane.b32.xlu0 %v342, 16
  %v989 = vpop.permute.xlu0 %988
  %990 = vrot.lane.b32.xlu0 %v348, 16
  %v991 = vpop.permute.xlu0 %990
  %992 = vrot.lane.b32.xlu0 %v344, 16
  %v993 = vpop.permute.xlu0 %992
  %994 = vrot.lane.b32.xlu0 %v350, 16
  %v995 = vpop.permute.xlu0 %994
  %996 = vrot.lane.b32.xlu0 %v393, 16
  %v997 = vpop.permute.xlu0 %996
  %998 = vrot.lane.b32.xlu0 %v399, 16
  %v999 = vpop.permute.xlu0 %998
  %1000 = vrot.lane.b32.xlu0 %v395, 16
  %v1001 = vpop.permute.xlu0 %1000
  %1002 = vrot.lane.b32.xlu0 %v401, 16
  %v1003 = vpop.permute.xlu0 %1002
  %vm1004 = vcmp.lt.s32.totalorder %v422, 16
  %v1005 = vsel %vm1004, %v997, %v1001
  %v1006 = vsel %vm1004, %v999, %v1003
  %v1007 = vsel %vm1004, %v993, %v997
  %v1008 = vsel %vm1004, %v995, %v999
  %v1009 = vsel %vm1004, %v989, %v993
  %v1010 = vsel %vm1004, %v991, %v995
  %v1011 = vsel %vm1004, %v1001, %v989
  %v1012 = vsel %vm1004, %v1003, %v991
  %s1013 = scalar_lea.vmem %s1, 7
  %v1014 = vld [vmem:[%s1013] ss:$8 sm:$0xf]
  %v1016 = vlaneseq
  %v1017 = vshrl.u32 %v1016, 7
  %v1018 = vsub.s32 0, %v1017
  %v1019 = vrot.slane %v1014, %v1018
  %v1020 = vlaneseq
  %v1021 = vshrl.u32 %v1020, 7
  %v1022 = vsub.s32 1, %v1021
  %v1023 = vrot.slane %v1014, %v1022
  %v1024 = vlaneseq
  %v1025 = vshrl.u32 %v1024, 7
  %v1026 = vsub.s32 2, %v1025
  %v1027 = vrot.slane %v1014, %v1026
  %v1028 = vlaneseq
  %v1029 = vshrl.u32 %v1028, 7
  %v1030 = vsub.s32 3, %v1029
  %v1031 = vrot.slane %v1014, %v1030
  %v1036 = vmul.f32 %v1011, %v1019
  %v1037 = vmul.f32 %v1009, %v1023
  %v1038 = vmul.f32 %v1007, %v1027
  %v1039 = vmul.f32 %v1005, %v1031
  %v1040 = vmul.f32 %v1012, %v1019
  %v1041 = vmul.f32 %v1010, %v1023
  %v1042 = vmul.f32 %v1008, %v1027
  %v1043 = vmul.f32 %v1006, %v1031
  %v1044 = vld [vmem:[%s6] sm:$0xff]
  %1046 = vset.pattern.permute.xlu0 7
  %1047 = vperm.xlu0 %1046, %v1044
  %v1048 = vpop.permute.xlu0 %1047
  %v1050 = vadd.f32 %v1036, %v1048
  %v1051 = vadd.f32 %v1037, %v1048
  %v1052 = vadd.f32 %v1038, %v1048
  %v1053 = vadd.f32 %v1039, %v1048
  %v1054 = vmul.f32 %v338, %v1050
  %v1055 = vmul.f32 %v340, %v1051
  %v1056 = vmul.f32 %v389, %v1052
  %v1057 = vmul.f32 %v391, %v1053
  %s1058 = scalar_lea.vmem [#allocation2], 224
  %1059 = vst [vmem:[%s1058] sm:$0xff] %v1054
  %1060 = vst [vmem:[%s1058 + $0x8] sm:$0xff] %v1055
  %1061 = vst [vmem:[%s1058 + $0x10] sm:$0xff] %v1056
  %1062 = vst [vmem:[%s1058 + $0x18] sm:$0xff] %v1057
  %s1063 = scalar_lea.vmem [#allocation3], 224
  %1064 = vst [vmem:[%s1063] sm:$0xff] %v1040
  %1065 = vst [vmem:[%s1063 + $0x8] sm:$0xff] %v1041
  %1066 = vst [vmem:[%s1063 + $0x10] sm:$0xff] %v1042
  %1067 = vst [vmem:[%s1063 + $0x18] sm:$0xff] %v1043
  %v1068 = vmax.f32 %v984, %v1054
  %v1069 = vmax.f32 %v985, %v1055
  %v1070 = vmax.f32 %v986, %v1056
  %v1071 = vmax.f32 %v987, %v1057
  %1072 = vrot.lane.b32.xlu0 %v342, 15
  %v1073 = vpop.permute.xlu0 %1072
  %1074 = vrot.lane.b32.xlu0 %v348, 15
  %v1075 = vpop.permute.xlu0 %1074
  %1076 = vrot.lane.b32.xlu0 %v344, 15
  %v1077 = vpop.permute.xlu0 %1076
  %1078 = vrot.lane.b32.xlu0 %v350, 15
  %v1079 = vpop.permute.xlu0 %1078
  %1080 = vrot.lane.b32.xlu0 %v393, 15
  %v1081 = vpop.permute.xlu0 %1080
  %1082 = vrot.lane.b32.xlu0 %v399, 15
  %v1083 = vpop.permute.xlu0 %1082
  %1084 = vrot.lane.b32.xlu0 %v395, 15
  %v1085 = vpop.permute.xlu0 %1084
  %1086 = vrot.lane.b32.xlu0 %v401, 15
  %v1087 = vpop.permute.xlu0 %1086
  %vm1088 = vcmp.lt.s32.totalorder %v422, 15
  %v1089 = vsel %vm1088, %v1081, %v1085
  %v1090 = vsel %vm1088, %v1083, %v1087
  %v1091 = vsel %vm1088, %v1077, %v1081
  %v1092 = vsel %vm1088, %v1079, %v1083
  %v1093 = vsel %vm1088, %v1073, %v1077
  %v1094 = vsel %vm1088, %v1075, %v1079
  %v1095 = vsel %vm1088, %v1085, %v1073
  %v1096 = vsel %vm1088, %v1087, %v1075
  %s1097 = scalar_lea.vmem %s1, 32
  %v1098 = vld [vmem:[%s1097] ss:$8 sm:$0xf]
  %v1100 = vlaneseq
  %v1101 = vshrl.u32 %v1100, 7
  %v1102 = vsub.s32 0, %v1101
  %v1103 = vrot.slane %v1098, %v1102
  %v1104 = vlaneseq
  %v1105 = vshrl.u32 %v1104, 7
  %v1106 = vsub.s32 1, %v1105
  %v1107 = vrot.slane %v1098, %v1106
  %v1108 = vlaneseq
  %v1109 = vshrl.u32 %v1108, 7
  %v1110 = vsub.s32 2, %v1109
  %v1111 = vrot.slane %v1098, %v1110
  %v1112 = vlaneseq
  %v1113 = vshrl.u32 %v1112, 7
  %v1114 = vsub.s32 3, %v1113
  %v1115 = vrot.slane %v1098, %v1114
  %v1120 = vmul.f32 %v1095, %v1103
  %v1121 = vmul.f32 %v1093, %v1107
  %v1122 = vmul.f32 %v1091, %v1111
  %v1123 = vmul.f32 %v1089, %v1115
  %v1124 = vmul.f32 %v1096, %v1103
  %v1125 = vmul.f32 %v1094, %v1107
  %v1126 = vmul.f32 %v1092, %v1111
  %v1127 = vmul.f32 %v1090, %v1115
  %v1128 = vld [vmem:[%s6] sm:$0xff]
  %1130 = vset.pattern.permute.xlu0 8
  %1131 = vperm.xlu0 %1130, %v1128
  %v1132 = vpop.permute.xlu0 %1131
  %v1134 = vadd.f32 %v1120, %v1132
  %v1135 = vadd.f32 %v1121, %v1132
  %v1136 = vadd.f32 %v1122, %v1132
  %v1137 = vadd.f32 %v1123, %v1132
  %v1138 = vmul.f32 %v338, %v1134
  %v1139 = vmul.f32 %v340, %v1135
  %v1140 = vmul.f32 %v389, %v1136
  %v1141 = vmul.f32 %v391, %v1137
  %s1142 = scalar_lea.vmem [#allocation2], 256
  %1143 = vst [vmem:[%s1142] sm:$0xff] %v1138
  %1144 = vst [vmem:[%s1142 + $0x8] sm:$0xff] %v1139
  %1145 = vst [vmem:[%s1142 + $0x10] sm:$0xff] %v1140
  %1146 = vst [vmem:[%s1142 + $0x18] sm:$0xff] %v1141
  %s1147 = scalar_lea.vmem [#allocation3], 256
  %1148 = vst [vmem:[%s1147] sm:$0xff] %v1124
  %1149 = vst [vmem:[%s1147 + $0x8] sm:$0xff] %v1125
  %1150 = vst [vmem:[%s1147 + $0x10] sm:$0xff] %v1126
  %1151 = vst [vmem:[%s1147 + $0x18] sm:$0xff] %v1127
  %v1152 = vmax.f32 %v1068, %v1138
  %v1153 = vmax.f32 %v1069, %v1139
  %v1154 = vmax.f32 %v1070, %v1140
  %v1155 = vmax.f32 %v1071, %v1141
  %1156 = vrot.lane.b32.xlu0 %v342, 14
  %v1157 = vpop.permute.xlu0 %1156
  %1158 = vrot.lane.b32.xlu0 %v348, 14
  %v1159 = vpop.permute.xlu0 %1158
  %1160 = vrot.lane.b32.xlu0 %v344, 14
  %v1161 = vpop.permute.xlu0 %1160
  %1162 = vrot.lane.b32.xlu0 %v350, 14
  %v1163 = vpop.permute.xlu0 %1162
  %1164 = vrot.lane.b32.xlu0 %v393, 14
  %v1165 = vpop.permute.xlu0 %1164
  %1166 = vrot.lane.b32.xlu0 %v399, 14
  %v1167 = vpop.permute.xlu0 %1166
  %1168 = vrot.lane.b32.xlu0 %v395, 14
  %v1169 = vpop.permute.xlu0 %1168
  %1170 = vrot.lane.b32.xlu0 %v401, 14
  %v1171 = vpop.permute.xlu0 %1170
  %vm1172 = vcmp.lt.s32.totalorder %v422, 14
  %v1173 = vsel %vm1172, %v1165, %v1169
  %v1174 = vsel %vm1172, %v1167, %v1171
  %v1175 = vsel %vm1172, %v1161, %v1165
  %v1176 = vsel %vm1172, %v1163, %v1167
  %v1177 = vsel %vm1172, %v1157, %v1161
  %v1178 = vsel %vm1172, %v1159, %v1163
  %v1179 = vsel %vm1172, %v1169, %v1157
  %v1180 = vsel %vm1172, %v1171, %v1159
  %s1181 = scalar_lea.vmem %s1, 33
  %v1182 = vld [vmem:[%s1181] ss:$8 sm:$0xf]
  %v1184 = vlaneseq
  %v1185 = vshrl.u32 %v1184, 7
  %v1186 = vsub.s32 0, %v1185
  %v1187 = vrot.slane %v1182, %v1186
  %v1188 = vlaneseq
  %v1189 = vshrl.u32 %v1188, 7
  %v1190 = vsub.s32 1, %v1189
  %v1191 = vrot.slane %v1182, %v1190
  %v1192 = vlaneseq
  %v1193 = vshrl.u32 %v1192, 7
  %v1194 = vsub.s32 2, %v1193
  %v1195 = vrot.slane %v1182, %v1194
  %v1196 = vlaneseq
  %v1197 = vshrl.u32 %v1196, 7
  %v1198 = vsub.s32 3, %v1197
  %v1199 = vrot.slane %v1182, %v1198
  %v1204 = vmul.f32 %v1179, %v1187
  %v1205 = vmul.f32 %v1177, %v1191
  %v1206 = vmul.f32 %v1175, %v1195
  %v1207 = vmul.f32 %v1173, %v1199
  %v1208 = vmul.f32 %v1180, %v1187
  %v1209 = vmul.f32 %v1178, %v1191
  %v1210 = vmul.f32 %v1176, %v1195
  %v1211 = vmul.f32 %v1174, %v1199
  %v1212 = vld [vmem:[%s6] sm:$0xff]
  %1214 = vset.pattern.permute.xlu0 9
  %1215 = vperm.xlu0 %1214, %v1212
  %v1216 = vpop.permute.xlu0 %1215
  %v1218 = vadd.f32 %v1204, %v1216
  %v1219 = vadd.f32 %v1205, %v1216
  %v1220 = vadd.f32 %v1206, %v1216
  %v1221 = vadd.f32 %v1207, %v1216
  %v1222 = vmul.f32 %v338, %v1218
  %v1223 = vmul.f32 %v340, %v1219
  %v1224 = vmul.f32 %v389, %v1220
  %v1225 = vmul.f32 %v391, %v1221
  %s1226 = scalar_lea.vmem [#allocation2], 288
  %1227 = vst [vmem:[%s1226] sm:$0xff] %v1222
  %1228 = vst [vmem:[%s1226 + $0x8] sm:$0xff] %v1223
  %1229 = vst [vmem:[%s1226 + $0x10] sm:$0xff] %v1224
  %1230 = vst [vmem:[%s1226 + $0x18] sm:$0xff] %v1225
  %s1231 = scalar_lea.vmem [#allocation3], 288
  %1232 = vst [vmem:[%s1231] sm:$0xff] %v1208
  %1233 = vst [vmem:[%s1231 + $0x8] sm:$0xff] %v1209
  %1234 = vst [vmem:[%s1231 + $0x10] sm:$0xff] %v1210
  %1235 = vst [vmem:[%s1231 + $0x18] sm:$0xff] %v1211
  %v1236 = vmax.f32 %v1152, %v1222
  %v1237 = vmax.f32 %v1153, %v1223
  %v1238 = vmax.f32 %v1154, %v1224
  %v1239 = vmax.f32 %v1155, %v1225
  %1240 = vrot.lane.b32.xlu0 %v342, 2
  %v1241 = vpop.permute.xlu0 %1240
  %1242 = vrot.lane.b32.xlu0 %v348, 2
  %v1243 = vpop.permute.xlu0 %1242
  %1244 = vrot.lane.b32.xlu0 %v344, 2
  %v1245 = vpop.permute.xlu0 %1244
  %1246 = vrot.lane.b32.xlu0 %v350, 2
  %v1247 = vpop.permute.xlu0 %1246
  %1248 = vrot.lane.b32.xlu0 %v393, 2
  %v1249 = vpop.permute.xlu0 %1248
  %1250 = vrot.lane.b32.xlu0 %v399, 2
  %v1251 = vpop.permute.xlu0 %1250
  %1252 = vrot.lane.b32.xlu0 %v395, 2
  %v1253 = vpop.permute.xlu0 %1252
  %1254 = vrot.lane.b32.xlu0 %v401, 2
  %v1255 = vpop.permute.xlu0 %1254
  %vm1256 = vcmp.lt.s32.totalorder %v422, 2
  %v1257 = vsel %vm1256, %v1249, %v1253
  %v1258 = vsel %vm1256, %v1251, %v1255
  %v1259 = vsel %vm1256, %v1245, %v1249
  %v1260 = vsel %vm1256, %v1247, %v1251
  %v1261 = vsel %vm1256, %v1241, %v1245
  %v1262 = vsel %vm1256, %v1243, %v1247
  %v1263 = vsel %vm1256, %v1253, %v1241
  %v1264 = vsel %vm1256, %v1255, %v1243
  %s1265 = scalar_lea.vmem %s1, 34
  %v1266 = vld [vmem:[%s1265] ss:$8 sm:$0xf]
  %v1268 = vlaneseq
  %v1269 = vshrl.u32 %v1268, 7
  %v1270 = vsub.s32 0, %v1269
  %v1271 = vrot.slane %v1266, %v1270
  %v1272 = vlaneseq
  %v1273 = vshrl.u32 %v1272, 7
  %v1274 = vsub.s32 1, %v1273
  %v1275 = vrot.slane %v1266, %v1274
  %v1276 = vlaneseq
  %v1277 = vshrl.u32 %v1276, 7
  %v1278 = vsub.s32 2, %v1277
  %v1279 = vrot.slane %v1266, %v1278
  %v1280 = vlaneseq
  %v1281 = vshrl.u32 %v1280, 7
  %v1282 = vsub.s32 3, %v1281
  %v1283 = vrot.slane %v1266, %v1282
  %v1288 = vmul.f32 %v1263, %v1271
  %v1289 = vmul.f32 %v1261, %v1275
  %v1290 = vmul.f32 %v1259, %v1279
  %v1291 = vmul.f32 %v1257, %v1283
  %v1292 = vmul.f32 %v1264, %v1271
  %v1293 = vmul.f32 %v1262, %v1275
  %v1294 = vmul.f32 %v1260, %v1279
  %v1295 = vmul.f32 %v1258, %v1283
  %v1296 = vld [vmem:[%s6] sm:$0xff]
  %1298 = vset.pattern.permute.xlu0 10
  %1299 = vperm.xlu0 %1298, %v1296
  %v1300 = vpop.permute.xlu0 %1299
  %v1302 = vadd.f32 %v1288, %v1300
  %v1303 = vadd.f32 %v1289, %v1300
  %v1304 = vadd.f32 %v1290, %v1300
  %v1305 = vadd.f32 %v1291, %v1300
  %v1306 = vmul.f32 %v338, %v1302
  %v1307 = vmul.f32 %v340, %v1303
  %v1308 = vmul.f32 %v389, %v1304
  %v1309 = vmul.f32 %v391, %v1305
  %s1310 = scalar_lea.vmem [#allocation2], 320
  %1311 = vst [vmem:[%s1310] sm:$0xff] %v1306
  %1312 = vst [vmem:[%s1310 + $0x8] sm:$0xff] %v1307
  %1313 = vst [vmem:[%s1310 + $0x10] sm:$0xff] %v1308
  %1314 = vst [vmem:[%s1310 + $0x18] sm:$0xff] %v1309
  %s1315 = scalar_lea.vmem [#allocation3], 320
  %1316 = vst [vmem:[%s1315] sm:$0xff] %v1292
  %1317 = vst [vmem:[%s1315 + $0x8] sm:$0xff] %v1293
  %1318 = vst [vmem:[%s1315 + $0x10] sm:$0xff] %v1294
  %1319 = vst [vmem:[%s1315 + $0x18] sm:$0xff] %v1295
  %v1320 = vmax.f32 %v1236, %v1306
  %v1321 = vmax.f32 %v1237, %v1307
  %v1322 = vmax.f32 %v1238, %v1308
  %v1323 = vmax.f32 %v1239, %v1309
  %1324 = vrot.lane.b32.xlu0 %v342, 1
  %v1325 = vpop.permute.xlu0 %1324
  %1326 = vrot.lane.b32.xlu0 %v348, 1
  %v1327 = vpop.permute.xlu0 %1326
  %1328 = vrot.lane.b32.xlu0 %v344, 1
  %v1329 = vpop.permute.xlu0 %1328
  %1330 = vrot.lane.b32.xlu0 %v350, 1
  %v1331 = vpop.permute.xlu0 %1330
  %1332 = vrot.lane.b32.xlu0 %v393, 1
  %v1333 = vpop.permute.xlu0 %1332
  %1334 = vrot.lane.b32.xlu0 %v399, 1
  %v1335 = vpop.permute.xlu0 %1334
  %1336 = vrot.lane.b32.xlu0 %v395, 1
  %v1337 = vpop.permute.xlu0 %1336
  %1338 = vrot.lane.b32.xlu0 %v401, 1
  %v1339 = vpop.permute.xlu0 %1338
  %vm1340 = vcmp.lt.s32.totalorder %v422, 1
  %v1341 = vsel %vm1340, %v1333, %v1337
  %v1342 = vsel %vm1340, %v1335, %v1339
  %v1343 = vsel %vm1340, %v1329, %v1333
  %v1344 = vsel %vm1340, %v1331, %v1335
  %v1345 = vsel %vm1340, %v1325, %v1329
  %v1346 = vsel %vm1340, %v1327, %v1331
  %v1347 = vsel %vm1340, %v1337, %v1325
  %v1348 = vsel %vm1340, %v1339, %v1327
  %s1349 = scalar_lea.vmem %s1, 35
  %v1350 = vld [vmem:[%s1349] ss:$8 sm:$0xf]
  %v1352 = vlaneseq
  %v1353 = vshrl.u32 %v1352, 7
  %v1354 = vsub.s32 0, %v1353
  %v1355 = vrot.slane %v1350, %v1354
  %v1356 = vlaneseq
  %v1357 = vshrl.u32 %v1356, 7
  %v1358 = vsub.s32 1, %v1357
  %v1359 = vrot.slane %v1350, %v1358
  %v1360 = vlaneseq
  %v1361 = vshrl.u32 %v1360, 7
  %v1362 = vsub.s32 2, %v1361
  %v1363 = vrot.slane %v1350, %v1362
  %v1364 = vlaneseq
  %v1365 = vshrl.u32 %v1364, 7
  %v1366 = vsub.s32 3, %v1365
  %v1367 = vrot.slane %v1350, %v1366
  %v1372 = vmul.f32 %v1347, %v1355
  %v1373 = vmul.f32 %v1345, %v1359
  %v1374 = vmul.f32 %v1343, %v1363
  %v1375 = vmul.f32 %v1341, %v1367
  %v1376 = vmul.f32 %v1348, %v1355
  %v1377 = vmul.f32 %v1346, %v1359
  %v1378 = vmul.f32 %v1344, %v1363
  %v1379 = vmul.f32 %v1342, %v1367
  %v1380 = vld [vmem:[%s6] sm:$0xff]
  %1382 = vset.pattern.permute.xlu0 11
  %1383 = vperm.xlu0 %1382, %v1380
  %v1384 = vpop.permute.xlu0 %1383
  %v1386 = vadd.f32 %v1372, %v1384
  %v1387 = vadd.f32 %v1373, %v1384
  %v1388 = vadd.f32 %v1374, %v1384
  %v1389 = vadd.f32 %v1375, %v1384
  %v1390 = vmul.f32 %v338, %v1386
  %v1391 = vmul.f32 %v340, %v1387
  %v1392 = vmul.f32 %v389, %v1388
  %v1393 = vmul.f32 %v391, %v1389
  %s1394 = scalar_lea.vmem [#allocation2], 352
  %1395 = vst [vmem:[%s1394] sm:$0xff] %v1390
  %1396 = vst [vmem:[%s1394 + $0x8] sm:$0xff] %v1391
  %1397 = vst [vmem:[%s1394 + $0x10] sm:$0xff] %v1392
  %1398 = vst [vmem:[%s1394 + $0x18] sm:$0xff] %v1393
  %s1399 = scalar_lea.vmem [#allocation3], 352
  %1400 = vst [vmem:[%s1399] sm:$0xff] %v1376
  %1401 = vst [vmem:[%s1399 + $0x8] sm:$0xff] %v1377
  %1402 = vst [vmem:[%s1399 + $0x10] sm:$0xff] %v1378
  %1403 = vst [vmem:[%s1399 + $0x18] sm:$0xff] %v1379
  %v1404 = vmax.f32 %v1320, %v1390
  %v1405 = vmax.f32 %v1321, %v1391
  %v1406 = vmax.f32 %v1322, %v1392
  %v1407 = vmax.f32 %v1323, %v1393
  %v1408 = vld [vmem:[%s6] sm:$0xff]
  %1410 = vset.pattern.permute.xlu0 12
  %1411 = vperm.xlu0 %1410, %v1408
  %v1412 = vpop.permute.xlu0 %1411
  %v1414 = vadd.f32 %v342, %v1412
  %v1415 = vadd.f32 %v344, %v1412
  %v1416 = vadd.f32 %v393, %v1412
  %v1417 = vadd.f32 %v395, %v1412
  %v1418 = vmul.f32 %v338, %v1414
  %v1419 = vmul.f32 %v340, %v1415
  %v1420 = vmul.f32 %v389, %v1416
  %v1421 = vmul.f32 %v391, %v1417
  %s1422 = scalar_lea.vmem [#allocation2], 384
  %1423 = vst [vmem:[%s1422] sm:$0xff] %v1418
  %1424 = vst [vmem:[%s1422 + $0x8] sm:$0xff] %v1419
  %1425 = vst [vmem:[%s1422 + $0x10] sm:$0xff] %v1420
  %1426 = vst [vmem:[%s1422 + $0x18] sm:$0xff] %v1421
  %s1427 = scalar_lea.vmem [#allocation3], 384
  %1428 = vst [vmem:[%s1427] sm:$0xff] %v348
  %1429 = vst [vmem:[%s1427 + $0x8] sm:$0xff] %v350
  %1430 = vst [vmem:[%s1427 + $0x10] sm:$0xff] %v399
  %1431 = vst [vmem:[%s1427 + $0x18] sm:$0xff] %v401
  %v1432 = vmax.f32 %v1404, %v1418
  %v1433 = vmax.f32 %v1405, %v1419
  %v1434 = vmax.f32 %v1406, %v1420
  %v1435 = vmax.f32 %v1407, %v1421
  %1436 = vrot.lane.b32.xlu0 %v342, 127
  %v1437 = vpop.permute.xlu0 %1436
  %1438 = vrot.lane.b32.xlu0 %v348, 127
  %v1439 = vpop.permute.xlu0 %1438
  %1440 = vrot.lane.b32.xlu0 %v344, 127
  %v1441 = vpop.permute.xlu0 %1440
  %1442 = vrot.lane.b32.xlu0 %v350, 127
  %v1443 = vpop.permute.xlu0 %1442
  %1444 = vrot.lane.b32.xlu0 %v393, 127
  %v1445 = vpop.permute.xlu0 %1444
  %1446 = vrot.lane.b32.xlu0 %v399, 127
  %v1447 = vpop.permute.xlu0 %1446
  %1448 = vrot.lane.b32.xlu0 %v395, 127
  %v1449 = vpop.permute.xlu0 %1448
  %1450 = vrot.lane.b32.xlu0 %v401, 127
  %v1451 = vpop.permute.xlu0 %1450
  %vm1452 = vcmp.lt.s32.totalorder %v422, 127
  %v1453 = vsel %vm1452, %v1445, %v1449
  %v1454 = vsel %vm1452, %v1447, %v1451
  %v1455 = vsel %vm1452, %v1441, %v1445
  %v1456 = vsel %vm1452, %v1443, %v1447
  %v1457 = vsel %vm1452, %v1437, %v1441
  %v1458 = vsel %vm1452, %v1439, %v1443
  %v1459 = vsel %vm1452, %v1449, %v1437
  %v1460 = vsel %vm1452, %v1451, %v1439
  %s1461 = scalar_lea.vmem %s1, 37
  %v1462 = vld [vmem:[%s1461] ss:$8 sm:$0xf]
  %v1464 = vlaneseq
  %v1465 = vshrl.u32 %v1464, 7
  %v1466 = vsub.s32 0, %v1465
  %v1467 = vrot.slane %v1462, %v1466
  %v1468 = vlaneseq
  %v1469 = vshrl.u32 %v1468, 7
  %v1470 = vsub.s32 1, %v1469
  %v1471 = vrot.slane %v1462, %v1470
  %v1472 = vlaneseq
  %v1473 = vshrl.u32 %v1472, 7
  %v1474 = vsub.s32 2, %v1473
  %v1475 = vrot.slane %v1462, %v1474
  %v1476 = vlaneseq
  %v1477 = vshrl.u32 %v1476, 7
  %v1478 = vsub.s32 3, %v1477
  %v1479 = vrot.slane %v1462, %v1478
  %v1484 = vmul.f32 %v1457, %v1467
  %v1485 = vmul.f32 %v1455, %v1471
  %v1486 = vmul.f32 %v1453, %v1475
  %v1487 = vmul.f32 %v1459, %v1479
  %v1488 = vmul.f32 %v1458, %v1467
  %v1489 = vmul.f32 %v1456, %v1471
  %v1490 = vmul.f32 %v1454, %v1475
  %v1491 = vmul.f32 %v1460, %v1479
  %v1492 = vld [vmem:[%s6] sm:$0xff]
  %1494 = vset.pattern.permute.xlu0 13
  %1495 = vperm.xlu0 %1494, %v1492
  %v1496 = vpop.permute.xlu0 %1495
  %v1498 = vadd.f32 %v1484, %v1496
  %v1499 = vadd.f32 %v1485, %v1496
  %v1500 = vadd.f32 %v1486, %v1496
  %v1501 = vadd.f32 %v1487, %v1496
  %v1502 = vmul.f32 %v338, %v1498
  %v1503 = vmul.f32 %v340, %v1499
  %v1504 = vmul.f32 %v389, %v1500
  %v1505 = vmul.f32 %v391, %v1501
  %s1506 = scalar_lea.vmem [#allocation2], 416
  %1507 = vst [vmem:[%s1506] sm:$0xff] %v1502
  %1508 = vst [vmem:[%s1506 + $0x8] sm:$0xff] %v1503
  %1509 = vst [vmem:[%s1506 + $0x10] sm:$0xff] %v1504
  %1510 = vst [vmem:[%s1506 + $0x18] sm:$0xff] %v1505
  %s1511 = scalar_lea.vmem [#allocation3], 416
  %1512 = vst [vmem:[%s1511] sm:$0xff] %v1488
  %1513 = vst [vmem:[%s1511 + $0x8] sm:$0xff] %v1489
  %1514 = vst [vmem:[%s1511 + $0x10] sm:$0xff] %v1490
  %1515 = vst [vmem:[%s1511 + $0x18] sm:$0xff] %v1491
  %v1516 = vmax.f32 %v1432, %v1502
  %v1517 = vmax.f32 %v1433, %v1503
  %v1518 = vmax.f32 %v1434, %v1504
  %v1519 = vmax.f32 %v1435, %v1505
  %1520 = vrot.lane.b32.xlu0 %v342, 126
  %v1521 = vpop.permute.xlu0 %1520
  %1522 = vrot.lane.b32.xlu0 %v348, 126
  %v1523 = vpop.permute.xlu0 %1522
  %1524 = vrot.lane.b32.xlu0 %v344, 126
  %v1525 = vpop.permute.xlu0 %1524
  %1526 = vrot.lane.b32.xlu0 %v350, 126
  %v1527 = vpop.permute.xlu0 %1526
  %1528 = vrot.lane.b32.xlu0 %v393, 126
  %v1529 = vpop.permute.xlu0 %1528
  %1530 = vrot.lane.b32.xlu0 %v399, 126
  %v1531 = vpop.permute.xlu0 %1530
  %1532 = vrot.lane.b32.xlu0 %v395, 126
  %v1533 = vpop.permute.xlu0 %1532
  %1534 = vrot.lane.b32.xlu0 %v401, 126
  %v1535 = vpop.permute.xlu0 %1534
  %vm1536 = vcmp.lt.s32.totalorder %v422, 126
  %v1537 = vsel %vm1536, %v1529, %v1533
  %v1538 = vsel %vm1536, %v1531, %v1535
  %v1539 = vsel %vm1536, %v1525, %v1529
  %v1540 = vsel %vm1536, %v1527, %v1531
  %v1541 = vsel %vm1536, %v1521, %v1525
  %v1542 = vsel %vm1536, %v1523, %v1527
  %v1543 = vsel %vm1536, %v1533, %v1521
  %v1544 = vsel %vm1536, %v1535, %v1523
  %s1545 = scalar_lea.vmem %s1, 38
  %v1546 = vld [vmem:[%s1545] ss:$8 sm:$0xf]
  %v1548 = vlaneseq
  %v1549 = vshrl.u32 %v1548, 7
  %v1550 = vsub.s32 0, %v1549
  %v1551 = vrot.slane %v1546, %v1550
  %v1552 = vlaneseq
  %v1553 = vshrl.u32 %v1552, 7
  %v1554 = vsub.s32 1, %v1553
  %v1555 = vrot.slane %v1546, %v1554
  %v1556 = vlaneseq
  %v1557 = vshrl.u32 %v1556, 7
  %v1558 = vsub.s32 2, %v1557
  %v1559 = vrot.slane %v1546, %v1558
  %v1560 = vlaneseq
  %v1561 = vshrl.u32 %v1560, 7
  %v1562 = vsub.s32 3, %v1561
  %v1563 = vrot.slane %v1546, %v1562
  %v1568 = vmul.f32 %v1541, %v1551
  %v1569 = vmul.f32 %v1539, %v1555
  %v1570 = vmul.f32 %v1537, %v1559
  %v1571 = vmul.f32 %v1543, %v1563
  %v1572 = vmul.f32 %v1542, %v1551
  %v1573 = vmul.f32 %v1540, %v1555
  %v1574 = vmul.f32 %v1538, %v1559
  %v1575 = vmul.f32 %v1544, %v1563
  %v1576 = vld [vmem:[%s6] sm:$0xff]
  %1578 = vset.pattern.permute.xlu0 14
  %1579 = vperm.xlu0 %1578, %v1576
  %v1580 = vpop.permute.xlu0 %1579
  %v1582 = vadd.f32 %v1568, %v1580
  %v1583 = vadd.f32 %v1569, %v1580
  %v1584 = vadd.f32 %v1570, %v1580
  %v1585 = vadd.f32 %v1571, %v1580
  %v1586 = vmul.f32 %v338, %v1582
  %v1587 = vmul.f32 %v340, %v1583
  %v1588 = vmul.f32 %v389, %v1584
  %v1589 = vmul.f32 %v391, %v1585
  %s1590 = scalar_lea.vmem [#allocation2], 448
  %1591 = vst [vmem:[%s1590] sm:$0xff] %v1586
  %1592 = vst [vmem:[%s1590 + $0x8] sm:$0xff] %v1587
  %1593 = vst [vmem:[%s1590 + $0x10] sm:$0xff] %v1588
  %1594 = vst [vmem:[%s1590 + $0x18] sm:$0xff] %v1589
  %s1595 = scalar_lea.vmem [#allocation3], 448
  %1596 = vst [vmem:[%s1595] sm:$0xff] %v1572
  %1597 = vst [vmem:[%s1595 + $0x8] sm:$0xff] %v1573
  %1598 = vst [vmem:[%s1595 + $0x10] sm:$0xff] %v1574
  %1599 = vst [vmem:[%s1595 + $0x18] sm:$0xff] %v1575
  %v1600 = vmax.f32 %v1516, %v1586
  %v1601 = vmax.f32 %v1517, %v1587
  %v1602 = vmax.f32 %v1518, %v1588
  %v1603 = vmax.f32 %v1519, %v1589
  %1604 = vrot.lane.b32.xlu0 %v342, 114
  %v1605 = vpop.permute.xlu0 %1604
  %1606 = vrot.lane.b32.xlu0 %v348, 114
  %v1607 = vpop.permute.xlu0 %1606
  %1608 = vrot.lane.b32.xlu0 %v344, 114
  %v1609 = vpop.permute.xlu0 %1608
  %1610 = vrot.lane.b32.xlu0 %v350, 114
  %v1611 = vpop.permute.xlu0 %1610
  %1612 = vrot.lane.b32.xlu0 %v393, 114
  %v1613 = vpop.permute.xlu0 %1612
  %1614 = vrot.lane.b32.xlu0 %v399, 114
  %v1615 = vpop.permute.xlu0 %1614
  %1616 = vrot.lane.b32.xlu0 %v395, 114
  %v1617 = vpop.permute.xlu0 %1616
  %1618 = vrot.lane.b32.xlu0 %v401, 114
  %v1619 = vpop.permute.xlu0 %1618
  %vm1620 = vcmp.lt.s32.totalorder %v422, 114
  %v1621 = vsel %vm1620, %v1613, %v1617
  %v1622 = vsel %vm1620, %v1615, %v1619
  %v1623 = vsel %vm1620, %v1609, %v1613
  %v1624 = vsel %vm1620, %v1611, %v1615
  %v1625 = vsel %vm1620, %v1605, %v1609
  %v1626 = vsel %vm1620, %v1607, %v1611
  %v1627 = vsel %vm1620, %v1617, %v1605
  %v1628 = vsel %vm1620, %v1619, %v1607
  %s1629 = scalar_lea.vmem %s1, 39
  %v1630 = vld [vmem:[%s1629] ss:$8 sm:$0xf]
  %v1632 = vlaneseq
  %v1633 = vshrl.u32 %v1632, 7
  %v1634 = vsub.s32 0, %v1633
  %v1635 = vrot.slane %v1630, %v1634
  %v1636 = vlaneseq
  %v1637 = vshrl.u32 %v1636, 7
  %v1638 = vsub.s32 1, %v1637
  %v1639 = vrot.slane %v1630, %v1638
  %v1640 = vlaneseq
  %v1641 = vshrl.u32 %v1640, 7
  %v1642 = vsub.s32 2, %v1641
  %v1643 = vrot.slane %v1630, %v1642
  %v1644 = vlaneseq
  %v1645 = vshrl.u32 %v1644, 7
  %v1646 = vsub.s32 3, %v1645
  %v1647 = vrot.slane %v1630, %v1646
  %v1652 = vmul.f32 %v1625, %v1635
  %v1653 = vmul.f32 %v1623, %v1639
  %v1654 = vmul.f32 %v1621, %v1643
  %v1655 = vmul.f32 %v1627, %v1647
  %v1656 = vmul.f32 %v1626, %v1635
  %v1657 = vmul.f32 %v1624, %v1639
  %v1658 = vmul.f32 %v1622, %v1643
  %v1659 = vmul.f32 %v1628, %v1647
  %v1660 = vld [vmem:[%s6] sm:$0xff]
  %1662 = vset.pattern.permute.xlu0 15
  %1663 = vperm.xlu0 %1662, %v1660
  %v1664 = vpop.permute.xlu0 %1663
  %v1666 = vadd.f32 %v1652, %v1664
  %v1667 = vadd.f32 %v1653, %v1664
  %v1668 = vadd.f32 %v1654, %v1664
  %v1669 = vadd.f32 %v1655, %v1664
  %v1670 = vmul.f32 %v338, %v1666
  %v1671 = vmul.f32 %v340, %v1667
  %v1672 = vmul.f32 %v389, %v1668
  %v1673 = vmul.f32 %v391, %v1669
  %s1674 = scalar_lea.vmem [#allocation2], 480
  %1675 = vst [vmem:[%s1674] sm:$0xff] %v1670
  %1676 = vst [vmem:[%s1674 + $0x8] sm:$0xff] %v1671
  %1677 = vst [vmem:[%s1674 + $0x10] sm:$0xff] %v1672
  %1678 = vst [vmem:[%s1674 + $0x18] sm:$0xff] %v1673
  %s1679 = scalar_lea.vmem [#allocation3], 480
  %1680 = vst [vmem:[%s1679] sm:$0xff] %v1656
  %1681 = vst [vmem:[%s1679 + $0x8] sm:$0xff] %v1657
  %1682 = vst [vmem:[%s1679 + $0x10] sm:$0xff] %v1658
  %1683 = vst [vmem:[%s1679 + $0x18] sm:$0xff] %v1659
  %v1684 = vmax.f32 %v1600, %v1670
  %v1685 = vmax.f32 %v1601, %v1671
  %v1686 = vmax.f32 %v1602, %v1672
  %v1687 = vmax.f32 %v1603, %v1673
  %1688 = vrot.lane.b32.xlu0 %v342, 113
  %v1689 = vpop.permute.xlu0 %1688
  %1690 = vrot.lane.b32.xlu0 %v348, 113
  %v1691 = vpop.permute.xlu0 %1690
  %1692 = vrot.lane.b32.xlu0 %v344, 113
  %v1693 = vpop.permute.xlu0 %1692
  %1694 = vrot.lane.b32.xlu0 %v350, 113
  %v1695 = vpop.permute.xlu0 %1694
  %1696 = vrot.lane.b32.xlu0 %v393, 113
  %v1697 = vpop.permute.xlu0 %1696
  %1698 = vrot.lane.b32.xlu0 %v399, 113
  %v1699 = vpop.permute.xlu0 %1698
  %1700 = vrot.lane.b32.xlu0 %v395, 113
  %v1701 = vpop.permute.xlu0 %1700
  %1702 = vrot.lane.b32.xlu0 %v401, 113
  %v1703 = vpop.permute.xlu0 %1702
  %vm1704 = vcmp.lt.s32.totalorder %v422, 113
  %v1705 = vsel %vm1704, %v1697, %v1701
  %v1706 = vsel %vm1704, %v1699, %v1703
  %v1707 = vsel %vm1704, %v1693, %v1697
  %v1708 = vsel %vm1704, %v1695, %v1699
  %v1709 = vsel %vm1704, %v1689, %v1693
  %v1710 = vsel %vm1704, %v1691, %v1695
  %v1711 = vsel %vm1704, %v1701, %v1689
  %v1712 = vsel %vm1704, %v1703, %v1691
  %s1713 = scalar_lea.vmem %s1, 64
  %v1714 = vld [vmem:[%s1713] ss:$8 sm:$0xf]
  %v1716 = vlaneseq
  %v1717 = vshrl.u32 %v1716, 7
  %v1718 = vsub.s32 0, %v1717
  %v1719 = vrot.slane %v1714, %v1718
  %v1720 = vlaneseq
  %v1721 = vshrl.u32 %v1720, 7
  %v1722 = vsub.s32 1, %v1721
  %v1723 = vrot.slane %v1714, %v1722
  %v1724 = vlaneseq
  %v1725 = vshrl.u32 %v1724, 7
  %v1726 = vsub.s32 2, %v1725
  %v1727 = vrot.slane %v1714, %v1726
  %v1728 = vlaneseq
  %v1729 = vshrl.u32 %v1728, 7
  %v1730 = vsub.s32 3, %v1729
  %v1731 = vrot.slane %v1714, %v1730
  %v1736 = vmul.f32 %v1709, %v1719
  %v1737 = vmul.f32 %v1707, %v1723
  %v1738 = vmul.f32 %v1705, %v1727
  %v1739 = vmul.f32 %v1711, %v1731
  %v1740 = vmul.f32 %v1710, %v1719
  %v1741 = vmul.f32 %v1708, %v1723
  %v1742 = vmul.f32 %v1706, %v1727
  %v1743 = vmul.f32 %v1712, %v1731
  %v1744 = vld [vmem:[%s6] sm:$0xff]
  %1746 = vset.pattern.permute.xlu0 16
  %1747 = vperm.xlu0 %1746, %v1744
  %v1748 = vpop.permute.xlu0 %1747
  %v1750 = vadd.f32 %v1736, %v1748
  %v1751 = vadd.f32 %v1737, %v1748
  %v1752 = vadd.f32 %v1738, %v1748
  %v1753 = vadd.f32 %v1739, %v1748
  %v1754 = vmul.f32 %v338, %v1750
  %v1755 = vmul.f32 %v340, %v1751
  %v1756 = vmul.f32 %v389, %v1752
  %v1757 = vmul.f32 %v391, %v1753
  %s1758 = scalar_lea.vmem [#allocation2], 512
  %1759 = vst [vmem:[%s1758] sm:$0xff] %v1754
  %1760 = vst [vmem:[%s1758 + $0x8] sm:$0xff] %v1755
  %1761 = vst [vmem:[%s1758 + $0x10] sm:$0xff] %v1756
  %1762 = vst [vmem:[%s1758 + $0x18] sm:$0xff] %v1757
  %s1763 = scalar_lea.vmem [#allocation3], 512
  %1764 = vst [vmem:[%s1763] sm:$0xff] %v1740
  %1765 = vst [vmem:[%s1763 + $0x8] sm:$0xff] %v1741
  %1766 = vst [vmem:[%s1763 + $0x10] sm:$0xff] %v1742
  %1767 = vst [vmem:[%s1763 + $0x18] sm:$0xff] %v1743
  %v1768 = vmax.f32 %v1684, %v1754
  %v1769 = vmax.f32 %v1685, %v1755
  %v1770 = vmax.f32 %v1686, %v1756
  %v1771 = vmax.f32 %v1687, %v1757
  %1772 = vrot.lane.b32.xlu0 %v342, 112
  %v1773 = vpop.permute.xlu0 %1772
  %1774 = vrot.lane.b32.xlu0 %v348, 112
  %v1775 = vpop.permute.xlu0 %1774
  %1776 = vrot.lane.b32.xlu0 %v344, 112
  %v1777 = vpop.permute.xlu0 %1776
  %1778 = vrot.lane.b32.xlu0 %v350, 112
  %v1779 = vpop.permute.xlu0 %1778
  %1780 = vrot.lane.b32.xlu0 %v393, 112
  %v1781 = vpop.permute.xlu0 %1780
  %1782 = vrot.lane.b32.xlu0 %v399, 112
  %v1783 = vpop.permute.xlu0 %1782
  %1784 = vrot.lane.b32.xlu0 %v395, 112
  %v1785 = vpop.permute.xlu0 %1784
  %1786 = vrot.lane.b32.xlu0 %v401, 112
  %v1787 = vpop.permute.xlu0 %1786
  %vm1788 = vcmp.lt.s32.totalorder %v422, 112
  %v1789 = vsel %vm1788, %v1781, %v1785
  %v1790 = vsel %vm1788, %v1783, %v1787
  %v1791 = vsel %vm1788, %v1777, %v1781
  %v1792 = vsel %vm1788, %v1779, %v1783
  %v1793 = vsel %vm1788, %v1773, %v1777
  %v1794 = vsel %vm1788, %v1775, %v1779
  %v1795 = vsel %vm1788, %v1785, %v1773
  %v1796 = vsel %vm1788, %v1787, %v1775
  %s1797 = scalar_lea.vmem %s1, 65
  %v1798 = vld [vmem:[%s1797] ss:$8 sm:$0xf]
  %v1800 = vlaneseq
  %v1801 = vshrl.u32 %v1800, 7
  %v1802 = vsub.s32 0, %v1801
  %v1803 = vrot.slane %v1798, %v1802
  %v1804 = vlaneseq
  %v1805 = vshrl.u32 %v1804, 7
  %v1806 = vsub.s32 1, %v1805
  %v1807 = vrot.slane %v1798, %v1806
  %v1808 = vlaneseq
  %v1809 = vshrl.u32 %v1808, 7
  %v1810 = vsub.s32 2, %v1809
  %v1811 = vrot.slane %v1798, %v1810
  %v1812 = vlaneseq
  %v1813 = vshrl.u32 %v1812, 7
  %v1814 = vsub.s32 3, %v1813
  %v1815 = vrot.slane %v1798, %v1814
  %v1820 = vmul.f32 %v1793, %v1803
  %v1821 = vmul.f32 %v1791, %v1807
  %v1822 = vmul.f32 %v1789, %v1811
  %v1823 = vmul.f32 %v1795, %v1815
  %v1824 = vmul.f32 %v1794, %v1803
  %v1825 = vmul.f32 %v1792, %v1807
  %v1826 = vmul.f32 %v1790, %v1811
  %v1827 = vmul.f32 %v1796, %v1815
  %v1828 = vld [vmem:[%s6] sm:$0xff]
  %1830 = vset.pattern.permute.xlu0 17
  %1831 = vperm.xlu0 %1830, %v1828
  %v1832 = vpop.permute.xlu0 %1831
  %v1834 = vadd.f32 %v1820, %v1832
  %v1835 = vadd.f32 %v1821, %v1832
  %v1836 = vadd.f32 %v1822, %v1832
  %v1837 = vadd.f32 %v1823, %v1832
  %v1838 = vmul.f32 %v338, %v1834
  %v1839 = vmul.f32 %v340, %v1835
  %v1840 = vmul.f32 %v389, %v1836
  %v1841 = vmul.f32 %v391, %v1837
  %s1842 = scalar_lea.vmem [#allocation2], 544
  %1843 = vst [vmem:[%s1842] sm:$0xff] %v1838
  %1844 = vst [vmem:[%s1842 + $0x8] sm:$0xff] %v1839
  %1845 = vst [vmem:[%s1842 + $0x10] sm:$0xff] %v1840
  %1846 = vst [vmem:[%s1842 + $0x18] sm:$0xff] %v1841
  %s1847 = scalar_lea.vmem [#allocation3], 544
  %1848 = vst [vmem:[%s1847] sm:$0xff] %v1824
  %1849 = vst [vmem:[%s1847 + $0x8] sm:$0xff] %v1825
  %1850 = vst [vmem:[%s1847 + $0x10] sm:$0xff] %v1826
  %1851 = vst [vmem:[%s1847 + $0x18] sm:$0xff] %v1827
  %v1852 = vmax.f32 %v1768, %v1838
  %v1853 = vmax.f32 %v1769, %v1839
  %v1854 = vmax.f32 %v1770, %v1840
  %v1855 = vmax.f32 %v1771, %v1841
  %1856 = vrot.lane.b32.xlu0 %v342, 111
  %v1857 = vpop.permute.xlu0 %1856
  %1858 = vrot.lane.b32.xlu0 %v348, 111
  %v1859 = vpop.permute.xlu0 %1858
  %1860 = vrot.lane.b32.xlu0 %v344, 111
  %v1861 = vpop.permute.xlu0 %1860
  %1862 = vrot.lane.b32.xlu0 %v350, 111
  %v1863 = vpop.permute.xlu0 %1862
  %1864 = vrot.lane.b32.xlu0 %v393, 111
  %v1865 = vpop.permute.xlu0 %1864
  %1866 = vrot.lane.b32.xlu0 %v399, 111
  %v1867 = vpop.permute.xlu0 %1866
  %1868 = vrot.lane.b32.xlu0 %v395, 111
  %v1869 = vpop.permute.xlu0 %1868
  %1870 = vrot.lane.b32.xlu0 %v401, 111
  %v1871 = vpop.permute.xlu0 %1870
  %vm1872 = vcmp.lt.s32.totalorder %v422, 111
  %v1873 = vsel %vm1872, %v1865, %v1869
  %v1874 = vsel %vm1872, %v1867, %v1871
  %v1875 = vsel %vm1872, %v1861, %v1865
  %v1876 = vsel %vm1872, %v1863, %v1867
  %v1877 = vsel %vm1872, %v1857, %v1861
  %v1878 = vsel %vm1872, %v1859, %v1863
  %v1879 = vsel %vm1872, %v1869, %v1857
  %v1880 = vsel %vm1872, %v1871, %v1859
  %s1881 = scalar_lea.vmem %s1, 66
  %v1882 = vld [vmem:[%s1881] ss:$8 sm:$0xf]
  %v1884 = vlaneseq
  %v1885 = vshrl.u32 %v1884, 7
  %v1886 = vsub.s32 0, %v1885
  %v1887 = vrot.slane %v1882, %v1886
  %v1888 = vlaneseq
  %v1889 = vshrl.u32 %v1888, 7
  %v1890 = vsub.s32 1, %v1889
  %v1891 = vrot.slane %v1882, %v1890
  %v1892 = vlaneseq
  %v1893 = vshrl.u32 %v1892, 7
  %v1894 = vsub.s32 2, %v1893
  %v1895 = vrot.slane %v1882, %v1894
  %v1896 = vlaneseq
  %v1897 = vshrl.u32 %v1896, 7
  %v1898 = vsub.s32 3, %v1897
  %v1899 = vrot.slane %v1882, %v1898
  %v1904 = vmul.f32 %v1877, %v1887
  %v1905 = vmul.f32 %v1875, %v1891
  %v1906 = vmul.f32 %v1873, %v1895
  %v1907 = vmul.f32 %v1879, %v1899
  %v1908 = vmul.f32 %v1878, %v1887
  %v1909 = vmul.f32 %v1876, %v1891
  %v1910 = vmul.f32 %v1874, %v1895
  %v1911 = vmul.f32 %v1880, %v1899
  %v1912 = vld [vmem:[%s6] sm:$0xff]
  %1914 = vset.pattern.permute.xlu0 18
  %1915 = vperm.xlu0 %1914, %v1912
  %v1916 = vpop.permute.xlu0 %1915
  %v1918 = vadd.f32 %v1904, %v1916
  %v1919 = vadd.f32 %v1905, %v1916
  %v1920 = vadd.f32 %v1906, %v1916
  %v1921 = vadd.f32 %v1907, %v1916
  %v1922 = vmul.f32 %v338, %v1918
  %v1923 = vmul.f32 %v340, %v1919
  %v1924 = vmul.f32 %v389, %v1920
  %v1925 = vmul.f32 %v391, %v1921
  %s1926 = scalar_lea.vmem [#allocation2], 576
  %1927 = vst [vmem:[%s1926] sm:$0xff] %v1922
  %1928 = vst [vmem:[%s1926 + $0x8] sm:$0xff] %v1923
  %1929 = vst [vmem:[%s1926 + $0x10] sm:$0xff] %v1924
  %1930 = vst [vmem:[%s1926 + $0x18] sm:$0xff] %v1925
  %s1931 = scalar_lea.vmem [#allocation3], 576
  %1932 = vst [vmem:[%s1931] sm:$0xff] %v1908
  %1933 = vst [vmem:[%s1931 + $0x8] sm:$0xff] %v1909
  %1934 = vst [vmem:[%s1931 + $0x10] sm:$0xff] %v1910
  %1935 = vst [vmem:[%s1931 + $0x18] sm:$0xff] %v1911
  %v1936 = vmax.f32 %v1852, %v1922
  %v1937 = vmax.f32 %v1853, %v1923
  %v1938 = vmax.f32 %v1854, %v1924
  %v1939 = vmax.f32 %v1855, %v1925
  %1940 = vrot.lane.b32.xlu0 %v342, 110
  %v1941 = vpop.permute.xlu0 %1940
  %1942 = vrot.lane.b32.xlu0 %v348, 110
  %v1943 = vpop.permute.xlu0 %1942
  %1944 = vrot.lane.b32.xlu0 %v344, 110
  %v1945 = vpop.permute.xlu0 %1944
  %1946 = vrot.lane.b32.xlu0 %v350, 110
  %v1947 = vpop.permute.xlu0 %1946
  %1948 = vrot.lane.b32.xlu0 %v393, 110
  %v1949 = vpop.permute.xlu0 %1948
  %1950 = vrot.lane.b32.xlu0 %v399, 110
  %v1951 = vpop.permute.xlu0 %1950
  %1952 = vrot.lane.b32.xlu0 %v395, 110
  %v1953 = vpop.permute.xlu0 %1952
  %1954 = vrot.lane.b32.xlu0 %v401, 110
  %v1955 = vpop.permute.xlu0 %1954
  %vm1956 = vcmp.lt.s32.totalorder %v422, 110
  %v1957 = vsel %vm1956, %v1949, %v1953
  %v1958 = vsel %vm1956, %v1951, %v1955
  %v1959 = vsel %vm1956, %v1945, %v1949
  %v1960 = vsel %vm1956, %v1947, %v1951
  %v1961 = vsel %vm1956, %v1941, %v1945
  %v1962 = vsel %vm1956, %v1943, %v1947
  %v1963 = vsel %vm1956, %v1953, %v1941
  %v1964 = vsel %vm1956, %v1955, %v1943
  %s1965 = scalar_lea.vmem %s1, 67
  %v1966 = vld [vmem:[%s1965] ss:$8 sm:$0xf]
  %v1968 = vlaneseq
  %v1969 = vshrl.u32 %v1968, 7
  %v1970 = vsub.s32 0, %v1969
  %v1971 = vrot.slane %v1966, %v1970
  %v1972 = vlaneseq
  %v1973 = vshrl.u32 %v1972, 7
  %v1974 = vsub.s32 1, %v1973
  %v1975 = vrot.slane %v1966, %v1974
  %v1976 = vlaneseq
  %v1977 = vshrl.u32 %v1976, 7
  %v1978 = vsub.s32 2, %v1977
  %v1979 = vrot.slane %v1966, %v1978
  %v1980 = vlaneseq
  %v1981 = vshrl.u32 %v1980, 7
  %v1982 = vsub.s32 3, %v1981
  %v1983 = vrot.slane %v1966, %v1982
  %v1988 = vmul.f32 %v1961, %v1971
  %v1989 = vmul.f32 %v1959, %v1975
  %v1990 = vmul.f32 %v1957, %v1979
  %v1991 = vmul.f32 %v1963, %v1983
  %v1992 = vmul.f32 %v1962, %v1971
  %v1993 = vmul.f32 %v1960, %v1975
  %v1994 = vmul.f32 %v1958, %v1979
  %v1995 = vmul.f32 %v1964, %v1983
  %v1996 = vld [vmem:[%s6] sm:$0xff]
  %1998 = vset.pattern.permute.xlu0 19
  %1999 = vperm.xlu0 %1998, %v1996
  %v2000 = vpop.permute.xlu0 %1999
  %v2002 = vadd.f32 %v1988, %v2000
  %v2003 = vadd.f32 %v1989, %v2000
  %v2004 = vadd.f32 %v1990, %v2000
  %v2005 = vadd.f32 %v1991, %v2000
  %v2006 = vmul.f32 %v338, %v2002
  %v2007 = vmul.f32 %v340, %v2003
  %v2008 = vmul.f32 %v389, %v2004
  %v2009 = vmul.f32 %v391, %v2005
  %s2010 = scalar_lea.vmem [#allocation2], 608
  %2011 = vst [vmem:[%s2010] sm:$0xff] %v2006
  %2012 = vst [vmem:[%s2010 + $0x8] sm:$0xff] %v2007
  %2013 = vst [vmem:[%s2010 + $0x10] sm:$0xff] %v2008
  %2014 = vst [vmem:[%s2010 + $0x18] sm:$0xff] %v2009
  %s2015 = scalar_lea.vmem [#allocation3], 608
  %2016 = vst [vmem:[%s2015] sm:$0xff] %v1992
  %2017 = vst [vmem:[%s2015 + $0x8] sm:$0xff] %v1993
  %2018 = vst [vmem:[%s2015 + $0x10] sm:$0xff] %v1994
  %2019 = vst [vmem:[%s2015 + $0x18] sm:$0xff] %v1995
  %v2020 = vmax.f32 %v1936, %v2006
  %v2021 = vmax.f32 %v1937, %v2007
  %v2022 = vmax.f32 %v1938, %v2008
  %v2023 = vmax.f32 %v1939, %v2009
  %2024 = vrot.lane.b32.xlu0 %v342, 98
  %v2025 = vpop.permute.xlu0 %2024
  %2026 = vrot.lane.b32.xlu0 %v348, 98
  %v2027 = vpop.permute.xlu0 %2026
  %2028 = vrot.lane.b32.xlu0 %v344, 98
  %v2029 = vpop.permute.xlu0 %2028
  %2030 = vrot.lane.b32.xlu0 %v350, 98
  %v2031 = vpop.permute.xlu0 %2030
  %2032 = vrot.lane.b32.xlu0 %v393, 98
  %v2033 = vpop.permute.xlu0 %2032
  %2034 = vrot.lane.b32.xlu0 %v399, 98
  %v2035 = vpop.permute.xlu0 %2034
  %2036 = vrot.lane.b32.xlu0 %v395, 98
  %v2037 = vpop.permute.xlu0 %2036
  %2038 = vrot.lane.b32.xlu0 %v401, 98
  %v2039 = vpop.permute.xlu0 %2038
  %vm2040 = vcmp.lt.s32.totalorder %v422, 98
  %v2041 = vsel %vm2040, %v2033, %v2037
  %v2042 = vsel %vm2040, %v2035, %v2039
  %v2043 = vsel %vm2040, %v2029, %v2033
  %v2044 = vsel %vm2040, %v2031, %v2035
  %v2045 = vsel %vm2040, %v2025, %v2029
  %v2046 = vsel %vm2040, %v2027, %v2031
  %v2047 = vsel %vm2040, %v2037, %v2025
  %v2048 = vsel %vm2040, %v2039, %v2027
  %s2049 = scalar_lea.vmem %s1, 68
  %v2050 = vld [vmem:[%s2049] ss:$8 sm:$0xf]
  %v2052 = vlaneseq
  %v2053 = vshrl.u32 %v2052, 7
  %v2054 = vsub.s32 0, %v2053
  %v2055 = vrot.slane %v2050, %v2054
  %v2056 = vlaneseq
  %v2057 = vshrl.u32 %v2056, 7
  %v2058 = vsub.s32 1, %v2057
  %v2059 = vrot.slane %v2050, %v2058
  %v2060 = vlaneseq
  %v2061 = vshrl.u32 %v2060, 7
  %v2062 = vsub.s32 2, %v2061
  %v2063 = vrot.slane %v2050, %v2062
  %v2064 = vlaneseq
  %v2065 = vshrl.u32 %v2064, 7
  %v2066 = vsub.s32 3, %v2065
  %v2067 = vrot.slane %v2050, %v2066
  %v2072 = vmul.f32 %v2045, %v2055
  %v2073 = vmul.f32 %v2043, %v2059
  %v2074 = vmul.f32 %v2041, %v2063
  %v2075 = vmul.f32 %v2047, %v2067
  %v2076 = vmul.f32 %v2046, %v2055
  %v2077 = vmul.f32 %v2044, %v2059
  %v2078 = vmul.f32 %v2042, %v2063
  %v2079 = vmul.f32 %v2048, %v2067
  %v2080 = vld [vmem:[%s6] sm:$0xff]
  %2082 = vset.pattern.permute.xlu0 20
  %2083 = vperm.xlu0 %2082, %v2080
  %v2084 = vpop.permute.xlu0 %2083
  %v2086 = vadd.f32 %v2072, %v2084
  %v2087 = vadd.f32 %v2073, %v2084
  %v2088 = vadd.f32 %v2074, %v2084
  %v2089 = vadd.f32 %v2075, %v2084
  %v2090 = vmul.f32 %v338, %v2086
  %v2091 = vmul.f32 %v340, %v2087
  %v2092 = vmul.f32 %v389, %v2088
  %v2093 = vmul.f32 %v391, %v2089
  %s2094 = scalar_lea.vmem [#allocation2], 640
  %2095 = vst [vmem:[%s2094] sm:$0xff] %v2090
  %2096 = vst [vmem:[%s2094 + $0x8] sm:$0xff] %v2091
  %2097 = vst [vmem:[%s2094 + $0x10] sm:$0xff] %v2092
  %2098 = vst [vmem:[%s2094 + $0x18] sm:$0xff] %v2093
  %s2099 = scalar_lea.vmem [#allocation3], 640
  %2100 = vst [vmem:[%s2099] sm:$0xff] %v2076
  %2101 = vst [vmem:[%s2099 + $0x8] sm:$0xff] %v2077
  %2102 = vst [vmem:[%s2099 + $0x10] sm:$0xff] %v2078
  %2103 = vst [vmem:[%s2099 + $0x18] sm:$0xff] %v2079
  %v2104 = vmax.f32 %v2020, %v2090
  %v2105 = vmax.f32 %v2021, %v2091
  %v2106 = vmax.f32 %v2022, %v2092
  %v2107 = vmax.f32 %v2023, %v2093
  %2108 = vrot.lane.b32.xlu0 %v342, 97
  %v2109 = vpop.permute.xlu0 %2108
  %2110 = vrot.lane.b32.xlu0 %v348, 97
  %v2111 = vpop.permute.xlu0 %2110
  %2112 = vrot.lane.b32.xlu0 %v344, 97
  %v2113 = vpop.permute.xlu0 %2112
  %2114 = vrot.lane.b32.xlu0 %v350, 97
  %v2115 = vpop.permute.xlu0 %2114
  %2116 = vrot.lane.b32.xlu0 %v393, 97
  %v2117 = vpop.permute.xlu0 %2116
  %2118 = vrot.lane.b32.xlu0 %v399, 97
  %v2119 = vpop.permute.xlu0 %2118
  %2120 = vrot.lane.b32.xlu0 %v395, 97
  %v2121 = vpop.permute.xlu0 %2120
  %2122 = vrot.lane.b32.xlu0 %v401, 97
  %v2123 = vpop.permute.xlu0 %2122
  %vm2124 = vcmp.lt.s32.totalorder %v422, 97
  %v2125 = vsel %vm2124, %v2117, %v2121
  %v2126 = vsel %vm2124, %v2119, %v2123
  %v2127 = vsel %vm2124, %v2113, %v2117
  %v2128 = vsel %vm2124, %v2115, %v2119
  %v2129 = vsel %vm2124, %v2109, %v2113
  %v2130 = vsel %vm2124, %v2111, %v2115
  %v2131 = vsel %vm2124, %v2121, %v2109
  %v2132 = vsel %vm2124, %v2123, %v2111
  %s2133 = scalar_lea.vmem %s1, 69
  %v2134 = vld [vmem:[%s2133] ss:$8 sm:$0xf]
  %v2136 = vlaneseq
  %v2137 = vshrl.u32 %v2136, 7
  %v2138 = vsub.s32 0, %v2137
  %v2139 = vrot.slane %v2134, %v2138
  %v2140 = vlaneseq
  %v2141 = vshrl.u32 %v2140, 7
  %v2142 = vsub.s32 1, %v2141
  %v2143 = vrot.slane %v2134, %v2142
  %v2144 = vlaneseq
  %v2145 = vshrl.u32 %v2144, 7
  %v2146 = vsub.s32 2, %v2145
  %v2147 = vrot.slane %v2134, %v2146
  %v2148 = vlaneseq
  %v2149 = vshrl.u32 %v2148, 7
  %v2150 = vsub.s32 3, %v2149
  %v2151 = vrot.slane %v2134, %v2150
  %v2156 = vmul.f32 %v2129, %v2139
  %v2157 = vmul.f32 %v2127, %v2143
  %v2158 = vmul.f32 %v2125, %v2147
  %v2159 = vmul.f32 %v2131, %v2151
  %v2160 = vmul.f32 %v2130, %v2139
  %v2161 = vmul.f32 %v2128, %v2143
  %v2162 = vmul.f32 %v2126, %v2147
  %v2163 = vmul.f32 %v2132, %v2151
  %v2164 = vld [vmem:[%s6] sm:$0xff]
  %2166 = vset.pattern.permute.xlu0 21
  %2167 = vperm.xlu0 %2166, %v2164
  %v2168 = vpop.permute.xlu0 %2167
  %v2170 = vadd.f32 %v2156, %v2168
  %v2171 = vadd.f32 %v2157, %v2168
  %v2172 = vadd.f32 %v2158, %v2168
  %v2173 = vadd.f32 %v2159, %v2168
  %v2174 = vmul.f32 %v338, %v2170
  %v2175 = vmul.f32 %v340, %v2171
  %v2176 = vmul.f32 %v389, %v2172
  %v2177 = vmul.f32 %v391, %v2173
  %s2178 = scalar_lea.vmem [#allocation2], 672
  %2179 = vst [vmem:[%s2178] sm:$0xff] %v2174
  %2180 = vst [vmem:[%s2178 + $0x8] sm:$0xff] %v2175
  %2181 = vst [vmem:[%s2178 + $0x10] sm:$0xff] %v2176
  %2182 = vst [vmem:[%s2178 + $0x18] sm:$0xff] %v2177
  %s2183 = scalar_lea.vmem [#allocation3], 672
  %2184 = vst [vmem:[%s2183] sm:$0xff] %v2160
  %2185 = vst [vmem:[%s2183 + $0x8] sm:$0xff] %v2161
  %2186 = vst [vmem:[%s2183 + $0x10] sm:$0xff] %v2162
  %2187 = vst [vmem:[%s2183 + $0x18] sm:$0xff] %v2163
  %v2188 = vmax.f32 %v2104, %v2174
  %v2189 = vmax.f32 %v2105, %v2175
  %v2190 = vmax.f32 %v2106, %v2176
  %v2191 = vmax.f32 %v2107, %v2177
  %2192 = vrot.lane.b32.xlu0 %v342, 96
  %v2193 = vpop.permute.xlu0 %2192
  %2194 = vrot.lane.b32.xlu0 %v348, 96
  %v2195 = vpop.permute.xlu0 %2194
  %2196 = vrot.lane.b32.xlu0 %v344, 96
  %v2197 = vpop.permute.xlu0 %2196
  %2198 = vrot.lane.b32.xlu0 %v350, 96
  %v2199 = vpop.permute.xlu0 %2198
  %2200 = vrot.lane.b32.xlu0 %v393, 96
  %v2201 = vpop.permute.xlu0 %2200
  %2202 = vrot.lane.b32.xlu0 %v399, 96
  %v2203 = vpop.permute.xlu0 %2202
  %2204 = vrot.lane.b32.xlu0 %v395, 96
  %v2205 = vpop.permute.xlu0 %2204
  %2206 = vrot.lane.b32.xlu0 %v401, 96
  %v2207 = vpop.permute.xlu0 %2206
  %vm2208 = vcmp.lt.s32.totalorder %v422, 96
  %v2209 = vsel %vm2208, %v2201, %v2205
  %v2210 = vsel %vm2208, %v2203, %v2207
  %v2211 = vsel %vm2208, %v2197, %v2201
  %v2212 = vsel %vm2208, %v2199, %v2203
  %v2213 = vsel %vm2208, %v2193, %v2197
  %v2214 = vsel %vm2208, %v2195, %v2199
  %v2215 = vsel %vm2208, %v2205, %v2193
  %v2216 = vsel %vm2208, %v2207, %v2195
  %s2217 = scalar_lea.vmem %s1, 70
  %v2218 = vld [vmem:[%s2217] ss:$8 sm:$0xf]
  %v2220 = vlaneseq
  %v2221 = vshrl.u32 %v2220, 7
  %v2222 = vsub.s32 0, %v2221
  %v2223 = vrot.slane %v2218, %v2222
  %v2224 = vlaneseq
  %v2225 = vshrl.u32 %v2224, 7
  %v2226 = vsub.s32 1, %v2225
  %v2227 = vrot.slane %v2218, %v2226
  %v2228 = vlaneseq
  %v2229 = vshrl.u32 %v2228, 7
  %v2230 = vsub.s32 2, %v2229
  %v2231 = vrot.slane %v2218, %v2230
  %v2232 = vlaneseq
  %v2233 = vshrl.u32 %v2232, 7
  %v2234 = vsub.s32 3, %v2233
  %v2235 = vrot.slane %v2218, %v2234
  %v2240 = vmul.f32 %v2213, %v2223
  %v2241 = vmul.f32 %v2211, %v2227
  %v2242 = vmul.f32 %v2209, %v2231
  %v2243 = vmul.f32 %v2215, %v2235
  %v2244 = vmul.f32 %v2214, %v2223
  %v2245 = vmul.f32 %v2212, %v2227
  %v2246 = vmul.f32 %v2210, %v2231
  %v2247 = vmul.f32 %v2216, %v2235
  %v2248 = vld [vmem:[%s6] sm:$0xff]
  %2250 = vset.pattern.permute.xlu0 22
  %2251 = vperm.xlu0 %2250, %v2248
  %v2252 = vpop.permute.xlu0 %2251
  %v2254 = vadd.f32 %v2240, %v2252
  %v2255 = vadd.f32 %v2241, %v2252
  %v2256 = vadd.f32 %v2242, %v2252
  %v2257 = vadd.f32 %v2243, %v2252
  %v2258 = vmul.f32 %v338, %v2254
  %v2259 = vmul.f32 %v340, %v2255
  %v2260 = vmul.f32 %v389, %v2256
  %v2261 = vmul.f32 %v391, %v2257
  %s2262 = scalar_lea.vmem [#allocation2], 704
  %2263 = vst [vmem:[%s2262] sm:$0xff] %v2258
  %2264 = vst [vmem:[%s2262 + $0x8] sm:$0xff] %v2259
  %2265 = vst [vmem:[%s2262 + $0x10] sm:$0xff] %v2260
  %2266 = vst [vmem:[%s2262 + $0x18] sm:$0xff] %v2261
  %s2267 = scalar_lea.vmem [#allocation3], 704
  %2268 = vst [vmem:[%s2267] sm:$0xff] %v2244
  %2269 = vst [vmem:[%s2267 + $0x8] sm:$0xff] %v2245
  %2270 = vst [vmem:[%s2267 + $0x10] sm:$0xff] %v2246
  %2271 = vst [vmem:[%s2267 + $0x18] sm:$0xff] %v2247
  %v2272 = vmax.f32 %v2188, %v2258
  %v2273 = vmax.f32 %v2189, %v2259
  %v2274 = vmax.f32 %v2190, %v2260
  %v2275 = vmax.f32 %v2191, %v2261
  %2276 = vrot.lane.b32.xlu0 %v342, 95
  %v2277 = vpop.permute.xlu0 %2276
  %2278 = vrot.lane.b32.xlu0 %v348, 95
  %v2279 = vpop.permute.xlu0 %2278
  %2280 = vrot.lane.b32.xlu0 %v344, 95
  %v2281 = vpop.permute.xlu0 %2280
  %2282 = vrot.lane.b32.xlu0 %v350, 95
  %v2283 = vpop.permute.xlu0 %2282
  %2284 = vrot.lane.b32.xlu0 %v393, 95
  %v2285 = vpop.permute.xlu0 %2284
  %2286 = vrot.lane.b32.xlu0 %v399, 95
  %v2287 = vpop.permute.xlu0 %2286
  %2288 = vrot.lane.b32.xlu0 %v395, 95
  %v2289 = vpop.permute.xlu0 %2288
  %2290 = vrot.lane.b32.xlu0 %v401, 95
  %v2291 = vpop.permute.xlu0 %2290
  %vm2292 = vcmp.lt.s32.totalorder %v422, 95
  %v2293 = vsel %vm2292, %v2285, %v2289
  %v2294 = vsel %vm2292, %v2287, %v2291
  %v2295 = vsel %vm2292, %v2281, %v2285
  %v2296 = vsel %vm2292, %v2283, %v2287
  %v2297 = vsel %vm2292, %v2277, %v2281
  %v2298 = vsel %vm2292, %v2279, %v2283
  %v2299 = vsel %vm2292, %v2289, %v2277
  %v2300 = vsel %vm2292, %v2291, %v2279
  %s2301 = scalar_lea.vmem %s1, 71
  %v2302 = vld [vmem:[%s2301] ss:$8 sm:$0xf]
  %v2304 = vlaneseq
  %v2305 = vshrl.u32 %v2304, 7
  %v2306 = vsub.s32 0, %v2305
  %v2307 = vrot.slane %v2302, %v2306
  %v2308 = vlaneseq
  %v2309 = vshrl.u32 %v2308, 7
  %v2310 = vsub.s32 1, %v2309
  %v2311 = vrot.slane %v2302, %v2310
  %v2312 = vlaneseq
  %v2313 = vshrl.u32 %v2312, 7
  %v2314 = vsub.s32 2, %v2313
  %v2315 = vrot.slane %v2302, %v2314
  %v2316 = vlaneseq
  %v2317 = vshrl.u32 %v2316, 7
  %v2318 = vsub.s32 3, %v2317
  %v2319 = vrot.slane %v2302, %v2318
  %v2324 = vmul.f32 %v2297, %v2307
  %v2325 = vmul.f32 %v2295, %v2311
  %v2326 = vmul.f32 %v2293, %v2315
  %v2327 = vmul.f32 %v2299, %v2319
  %v2328 = vmul.f32 %v2298, %v2307
  %v2329 = vmul.f32 %v2296, %v2311
  %v2330 = vmul.f32 %v2294, %v2315
  %v2331 = vmul.f32 %v2300, %v2319
  %v2332 = vld [vmem:[%s6] sm:$0xff]
  %2334 = vset.pattern.permute.xlu0 23
  %2335 = vperm.xlu0 %2334, %v2332
  %v2336 = vpop.permute.xlu0 %2335
  %v2338 = vadd.f32 %v2324, %v2336
  %v2339 = vadd.f32 %v2325, %v2336
  %v2340 = vadd.f32 %v2326, %v2336
  %v2341 = vadd.f32 %v2327, %v2336
  %v2342 = vmul.f32 %v338, %v2338
  %v2343 = vmul.f32 %v340, %v2339
  %v2344 = vmul.f32 %v389, %v2340
  %v2345 = vmul.f32 %v391, %v2341
  %s2346 = scalar_lea.vmem [#allocation2], 736
  %2347 = vst [vmem:[%s2346] sm:$0xff] %v2342
  %2348 = vst [vmem:[%s2346 + $0x8] sm:$0xff] %v2343
  %2349 = vst [vmem:[%s2346 + $0x10] sm:$0xff] %v2344
  %2350 = vst [vmem:[%s2346 + $0x18] sm:$0xff] %v2345
  %s2351 = scalar_lea.vmem [#allocation3], 736
  %2352 = vst [vmem:[%s2351] sm:$0xff] %v2328
  %2353 = vst [vmem:[%s2351 + $0x8] sm:$0xff] %v2329
  %2354 = vst [vmem:[%s2351 + $0x10] sm:$0xff] %v2330
  %2355 = vst [vmem:[%s2351 + $0x18] sm:$0xff] %v2331
  %v2356 = vmax.f32 %v2272, %v2342
  %v2357 = vmax.f32 %v2273, %v2343
  %v2358 = vmax.f32 %v2274, %v2344
  %v2359 = vmax.f32 %v2275, %v2345
  %2360 = vrot.lane.b32.xlu0 %v342, 94
  %v2361 = vpop.permute.xlu0 %2360
  %2362 = vrot.lane.b32.xlu0 %v348, 94
  %v2363 = vpop.permute.xlu0 %2362
  %2364 = vrot.lane.b32.xlu0 %v344, 94
  %v2365 = vpop.permute.xlu0 %2364
  %2366 = vrot.lane.b32.xlu0 %v350, 94
  %v2367 = vpop.permute.xlu0 %2366
  %2368 = vrot.lane.b32.xlu0 %v393, 94
  %v2369 = vpop.permute.xlu0 %2368
  %2370 = vrot.lane.b32.xlu0 %v399, 94
  %v2371 = vpop.permute.xlu0 %2370
  %2372 = vrot.lane.b32.xlu0 %v395, 94
  %v2373 = vpop.permute.xlu0 %2372
  %2374 = vrot.lane.b32.xlu0 %v401, 94
  %v2375 = vpop.permute.xlu0 %2374
  %vm2376 = vcmp.lt.s32.totalorder %v422, 94
  %v2377 = vsel %vm2376, %v2369, %v2373
  %v2378 = vsel %vm2376, %v2371, %v2375
  %v2379 = vsel %vm2376, %v2365, %v2369
  %v2380 = vsel %vm2376, %v2367, %v2371
  %v2381 = vsel %vm2376, %v2361, %v2365
  %v2382 = vsel %vm2376, %v2363, %v2367
  %v2383 = vsel %vm2376, %v2373, %v2361
  %v2384 = vsel %vm2376, %v2375, %v2363
  %s2385 = scalar_lea.vmem %s1, 96
  %v2386 = vld [vmem:[%s2385] ss:$8 sm:$0xf]
  %v2388 = vlaneseq
  %v2389 = vshrl.u32 %v2388, 7
  %v2390 = vsub.s32 0, %v2389
  %v2391 = vrot.slane %v2386, %v2390
  %v2392 = vlaneseq
  %v2393 = vshrl.u32 %v2392, 7
  %v2394 = vsub.s32 1, %v2393
  %v2395 = vrot.slane %v2386, %v2394
  %v2396 = vlaneseq
  %v2397 = vshrl.u32 %v2396, 7
  %v2398 = vsub.s32 2, %v2397
  %v2399 = vrot.slane %v2386, %v2398
  %v2400 = vlaneseq
  %v2401 = vshrl.u32 %v2400, 7
  %v2402 = vsub.s32 3, %v2401
  %v2403 = vrot.slane %v2386, %v2402
  %v2408 = vmul.f32 %v2381, %v2391
  %v2409 = vmul.f32 %v2379, %v2395
  %v2410 = vmul.f32 %v2377, %v2399
  %v2411 = vmul.f32 %v2383, %v2403
  %v2412 = vmul.f32 %v2382, %v2391
  %v2413 = vmul.f32 %v2380, %v2395
  %v2414 = vmul.f32 %v2378, %v2399
  %v2415 = vmul.f32 %v2384, %v2403
  %v2416 = vld [vmem:[%s6] sm:$0xff]
  %2418 = vset.pattern.permute.xlu0 24
  %2419 = vperm.xlu0 %2418, %v2416
  %v2420 = vpop.permute.xlu0 %2419
  %v2422 = vadd.f32 %v2408, %v2420
  %v2423 = vadd.f32 %v2409, %v2420
  %v2424 = vadd.f32 %v2410, %v2420
  %v2425 = vadd.f32 %v2411, %v2420
  %v2426 = vmul.f32 %v338, %v2422
  %v2427 = vmul.f32 %v340, %v2423
  %v2428 = vmul.f32 %v389, %v2424
  %v2429 = vmul.f32 %v391, %v2425
  %s2430 = scalar_lea.vmem [#allocation2], 768
  %2431 = vst [vmem:[%s2430] sm:$0xff] %v2426
  %2432 = vst [vmem:[%s2430 + $0x8] sm:$0xff] %v2427
  %2433 = vst [vmem:[%s2430 + $0x10] sm:$0xff] %v2428
  %2434 = vst [vmem:[%s2430 + $0x18] sm:$0xff] %v2429
  %s2435 = scalar_lea.vmem [#allocation3], 768
  %2436 = vst [vmem:[%s2435] sm:$0xff] %v2412
  %2437 = vst [vmem:[%s2435 + $0x8] sm:$0xff] %v2413
  %2438 = vst [vmem:[%s2435 + $0x10] sm:$0xff] %v2414
  %2439 = vst [vmem:[%s2435 + $0x18] sm:$0xff] %v2415
  %v2440 = vmax.f32 %v2356, %v2426
  %v2441 = vmax.f32 %v2357, %v2427
  %v2442 = vmax.f32 %v2358, %v2428
  %v2443 = vmax.f32 %v2359, %v2429
  %v2444 = vld [vmem:[#allocation2] sm:$0xff]
  %v2445 = vld [vmem:[#allocation2 + $0x8] sm:$0xff]
  %v2446 = vld [vmem:[#allocation2 + $0x10] sm:$0xff]
  %v2447 = vld [vmem:[#allocation2 + $0x18] sm:$0xff]
  %v2448 = vsub.f32 %v2444, %v2440
  %v2449 = vsub.f32 %v2445, %v2441
  %v2450 = vsub.f32 %v2446, %v2442
  %v2451 = vsub.f32 %v2447, %v2443
  %v2452 = vmul.f32 %v2448, 1.442695
  %v2453 = vpow.pop %v2452
  %v2454 = vmul.f32 %v2449, 1.442695
  %v2455 = vpow.pop %v2454
  %v2456 = vmul.f32 %v2450, 1.442695
  %v2457 = vpow.pop %v2456
  %v2458 = vmul.f32 %v2451, 1.442695
  %v2459 = vpow.pop %v2458
  %v2460 = vadd.f32 %v2453, 0.0
  %v2461 = vadd.f32 %v2455, 0.0
  %v2462 = vadd.f32 %v2457, 0.0
  %v2463 = vadd.f32 %v2459, 0.0
  %v2464 = vld [vmem:[#allocation3] sm:$0xff]
  %v2465 = vld [vmem:[#allocation3 + $0x8] sm:$0xff]
  %v2466 = vld [vmem:[#allocation3 + $0x10] sm:$0xff]
  %v2467 = vld [vmem:[#allocation3 + $0x18] sm:$0xff]
  %v2468 = vmul.f32 %v2453, %v2464
  %v2469 = vmul.f32 %v2455, %v2465
  %v2470 = vmul.f32 %v2457, %v2466
  %v2471 = vmul.f32 %v2459, %v2467
  %v2472 = vadd.f32 %v2468, 0.0
  %v2473 = vadd.f32 %v2469, 0.0
  %v2474 = vadd.f32 %v2470, 0.0
  %v2475 = vadd.f32 %v2471, 0.0
  %v2476 = vld [vmem:[%s554] sm:$0xff]
  %v2477 = vld [vmem:[%s554 + $0x8] sm:$0xff]
  %v2478 = vld [vmem:[%s554 + $0x10] sm:$0xff]
  %v2479 = vld [vmem:[%s554 + $0x18] sm:$0xff]
  %v2480 = vsub.f32 %v2476, %v2440
  %v2481 = vsub.f32 %v2477, %v2441
  %v2482 = vsub.f32 %v2478, %v2442
  %v2483 = vsub.f32 %v2479, %v2443
  %v2484 = vmul.f32 %v2480, 1.442695
  %v2485 = vpow.pop %v2484
  %v2486 = vmul.f32 %v2481, 1.442695
  %v2487 = vpow.pop %v2486
  %v2488 = vmul.f32 %v2482, 1.442695
  %v2489 = vpow.pop %v2488
  %v2490 = vmul.f32 %v2483, 1.442695
  %v2491 = vpow.pop %v2490
  %v2492 = vadd.f32 %v2460, %v2485
  %v2493 = vadd.f32 %v2461, %v2487
  %v2494 = vadd.f32 %v2462, %v2489
  %v2495 = vadd.f32 %v2463, %v2491
  %v2496 = vld [vmem:[%s559] sm:$0xff]
  %v2497 = vld [vmem:[%s559 + $0x8] sm:$0xff]
  %v2498 = vld [vmem:[%s559 + $0x10] sm:$0xff]
  %v2499 = vld [vmem:[%s559 + $0x18] sm:$0xff]
  %v2500 = vmul.f32 %v2485, %v2496
  %v2501 = vmul.f32 %v2487, %v2497
  %v2502 = vmul.f32 %v2489, %v2498
  %v2503 = vmul.f32 %v2491, %v2499
  %v2504 = vadd.f32 %v2472, %v2500
  %v2505 = vadd.f32 %v2473, %v2501
  %v2506 = vadd.f32 %v2474, %v2502
  %v2507 = vadd.f32 %v2475, %v2503
  %v2508 = vld [vmem:[%s638] sm:$0xff]
  %v2509 = vld [vmem:[%s638 + $0x8] sm:$0xff]
  %v2510 = vld [vmem:[%s638 + $0x10] sm:$0xff]
  %v2511 = vld [vmem:[%s638 + $0x18] sm:$0xff]
  %v2512 = vsub.f32 %v2508, %v2440
  %v2513 = vsub.f32 %v2509, %v2441
  %v2514 = vsub.f32 %v2510, %v2442
  %v2515 = vsub.f32 %v2511, %v2443
  %v2516 = vmul.f32 %v2512, 1.442695
  %v2517 = vpow.pop %v2516
  %v2518 = vmul.f32 %v2513, 1.442695
  %v2519 = vpow.pop %v2518
  %v2520 = vmul.f32 %v2514, 1.442695
  %v2521 = vpow.pop %v2520
  %v2522 = vmul.f32 %v2515, 1.442695
  %v2523 = vpow.pop %v2522
  %v2524 = vadd.f32 %v2492, %v2517
  %v2525 = vadd.f32 %v2493, %v2519
  %v2526 = vadd.f32 %v2494, %v2521
  %v2527 = vadd.f32 %v2495, %v2523
  %v2528 = vld [vmem:[%s643] sm:$0xff]
  %v2529 = vld [vmem:[%s643 + $0x8] sm:$0xff]
  %v2530 = vld [vmem:[%s643 + $0x10] sm:$0xff]
  %v2531 = vld [vmem:[%s643 + $0x18] sm:$0xff]
  %v2532 = vmul.f32 %v2517, %v2528
  %v2533 = vmul.f32 %v2519, %v2529
  %v2534 = vmul.f32 %v2521, %v2530
  %v2535 = vmul.f32 %v2523, %v2531
  %v2536 = vadd.f32 %v2504, %v2532
  %v2537 = vadd.f32 %v2505, %v2533
  %v2538 = vadd.f32 %v2506, %v2534
  %v2539 = vadd.f32 %v2507, %v2535
  %v2540 = vld [vmem:[%s722] sm:$0xff]
  %v2541 = vld [vmem:[%s722 + $0x8] sm:$0xff]
  %v2542 = vld [vmem:[%s722 + $0x10] sm:$0xff]
  %v2543 = vld [vmem:[%s722 + $0x18] sm:$0xff]
  %v2544 = vsub.f32 %v2540, %v2440
  %v2545 = vsub.f32 %v2541, %v2441
  %v2546 = vsub.f32 %v2542, %v2442
  %v2547 = vsub.f32 %v2543, %v2443
  %v2548 = vmul.f32 %v2544, 1.442695
  %v2549 = vpow.pop %v2548
  %v2550 = vmul.f32 %v2545, 1.442695
  %v2551 = vpow.pop %v2550
  %v2552 = vmul.f32 %v2546, 1.442695
  %v2553 = vpow.pop %v2552
  %v2554 = vmul.f32 %v2547, 1.442695
  %v2555 = vpow.pop %v2554
  %v2556 = vadd.f32 %v2524, %v2549
  %v2557 = vadd.f32 %v2525, %v2551
  %v2558 = vadd.f32 %v2526, %v2553
  %v2559 = vadd.f32 %v2527, %v2555
  %v2560 = vld [vmem:[%s727] sm:$0xff]
  %v2561 = vld [vmem:[%s727 + $0x8] sm:$0xff]
  %v2562 = vld [vmem:[%s727 + $0x10] sm:$0xff]
  %v2563 = vld [vmem:[%s727 + $0x18] sm:$0xff]
  %v2564 = vmul.f32 %v2549, %v2560
  %v2565 = vmul.f32 %v2551, %v2561
  %v2566 = vmul.f32 %v2553, %v2562
  %v2567 = vmul.f32 %v2555, %v2563
  %v2568 = vadd.f32 %v2536, %v2564
  %v2569 = vadd.f32 %v2537, %v2565
  %v2570 = vadd.f32 %v2538, %v2566
  %v2571 = vadd.f32 %v2539, %v2567
  %v2572 = vld [vmem:[%s806] sm:$0xff]
  %v2573 = vld [vmem:[%s806 + $0x8] sm:$0xff]
  %v2574 = vld [vmem:[%s806 + $0x10] sm:$0xff]
  %v2575 = vld [vmem:[%s806 + $0x18] sm:$0xff]
  %v2576 = vsub.f32 %v2572, %v2440
  %v2577 = vsub.f32 %v2573, %v2441
  %v2578 = vsub.f32 %v2574, %v2442
  %v2579 = vsub.f32 %v2575, %v2443
  %v2580 = vmul.f32 %v2576, 1.442695
  %v2581 = vpow.pop %v2580
  %v2582 = vmul.f32 %v2577, 1.442695
  %v2583 = vpow.pop %v2582
  %v2584 = vmul.f32 %v2578, 1.442695
  %v2585 = vpow.pop %v2584
  %v2586 = vmul.f32 %v2579, 1.442695
  %v2587 = vpow.pop %v2586
  %v2588 = vadd.f32 %v2556, %v2581
  %v2589 = vadd.f32 %v2557, %v2583
  %v2590 = vadd.f32 %v2558, %v2585
  %v2591 = vadd.f32 %v2559, %v2587
  %v2592 = vld [vmem:[%s811] sm:$0xff]
  %v2593 = vld [vmem:[%s811 + $0x8] sm:$0xff]
  %v2594 = vld [vmem:[%s811 + $0x10] sm:$0xff]
  %v2595 = vld [vmem:[%s811 + $0x18] sm:$0xff]
  %v2596 = vmul.f32 %v2581, %v2592
  %v2597 = vmul.f32 %v2583, %v2593
  %v2598 = vmul.f32 %v2585, %v2594
  %v2599 = vmul.f32 %v2587, %v2595
  %v2600 = vadd.f32 %v2568, %v2596
  %v2601 = vadd.f32 %v2569, %v2597
  %v2602 = vadd.f32 %v2570, %v2598
  %v2603 = vadd.f32 %v2571, %v2599
  %v2604 = vld [vmem:[%s890] sm:$0xff]
  %v2605 = vld [vmem:[%s890 + $0x8] sm:$0xff]
  %v2606 = vld [vmem:[%s890 + $0x10] sm:$0xff]
  %v2607 = vld [vmem:[%s890 + $0x18] sm:$0xff]
  %v2608 = vsub.f32 %v2604, %v2440
  %v2609 = vsub.f32 %v2605, %v2441
  %v2610 = vsub.f32 %v2606, %v2442
  %v2611 = vsub.f32 %v2607, %v2443
  %v2612 = vmul.f32 %v2608, 1.442695
  %v2613 = vpow.pop %v2612
  %v2614 = vmul.f32 %v2609, 1.442695
  %v2615 = vpow.pop %v2614
  %v2616 = vmul.f32 %v2610, 1.442695
  %v2617 = vpow.pop %v2616
  %v2618 = vmul.f32 %v2611, 1.442695
  %v2619 = vpow.pop %v2618
  %v2620 = vadd.f32 %v2588, %v2613
  %v2621 = vadd.f32 %v2589, %v2615
  %v2622 = vadd.f32 %v2590, %v2617
  %v2623 = vadd.f32 %v2591, %v2619
  %v2624 = vld [vmem:[%s895] sm:$0xff]
  %v2625 = vld [vmem:[%s895 + $0x8] sm:$0xff]
  %v2626 = vld [vmem:[%s895 + $0x10] sm:$0xff]
  %v2627 = vld [vmem:[%s895 + $0x18] sm:$0xff]
  %v2628 = vmul.f32 %v2613, %v2624
  %v2629 = vmul.f32 %v2615, %v2625
  %v2630 = vmul.f32 %v2617, %v2626
  %v2631 = vmul.f32 %v2619, %v2627
  %v2632 = vadd.f32 %v2600, %v2628
  %v2633 = vadd.f32 %v2601, %v2629
  %v2634 = vadd.f32 %v2602, %v2630
  %v2635 = vadd.f32 %v2603, %v2631
  %v2636 = vld [vmem:[%s974] sm:$0xff]
  %v2637 = vld [vmem:[%s974 + $0x8] sm:$0xff]
  %v2638 = vld [vmem:[%s974 + $0x10] sm:$0xff]
  %v2639 = vld [vmem:[%s974 + $0x18] sm:$0xff]
  %v2640 = vsub.f32 %v2636, %v2440
  %v2641 = vsub.f32 %v2637, %v2441
  %v2642 = vsub.f32 %v2638, %v2442
  %v2643 = vsub.f32 %v2639, %v2443
  %v2644 = vmul.f32 %v2640, 1.442695
  %v2645 = vpow.pop %v2644
  %v2646 = vmul.f32 %v2641, 1.442695
  %v2647 = vpow.pop %v2646
  %v2648 = vmul.f32 %v2642, 1.442695
  %v2649 = vpow.pop %v2648
  %v2650 = vmul.f32 %v2643, 1.442695
  %v2651 = vpow.pop %v2650
  %v2652 = vadd.f32 %v2620, %v2645
  %v2653 = vadd.f32 %v2621, %v2647
  %v2654 = vadd.f32 %v2622, %v2649
  %v2655 = vadd.f32 %v2623, %v2651
  %v2656 = vld [vmem:[%s979] sm:$0xff]
  %v2657 = vld [vmem:[%s979 + $0x8] sm:$0xff]
  %v2658 = vld [vmem:[%s979 + $0x10] sm:$0xff]
  %v2659 = vld [vmem:[%s979 + $0x18] sm:$0xff]
  %v2660 = vmul.f32 %v2645, %v2656
  %v2661 = vmul.f32 %v2647, %v2657
  %v2662 = vmul.f32 %v2649, %v2658
  %v2663 = vmul.f32 %v2651, %v2659
  %v2664 = vadd.f32 %v2632, %v2660
  %v2665 = vadd.f32 %v2633, %v2661
  %v2666 = vadd.f32 %v2634, %v2662
  %v2667 = vadd.f32 %v2635, %v2663
  %v2668 = vld [vmem:[%s1058] sm:$0xff]
  %v2669 = vld [vmem:[%s1058 + $0x8] sm:$0xff]
  %v2670 = vld [vmem:[%s1058 + $0x10] sm:$0xff]
  %v2671 = vld [vmem:[%s1058 + $0x18] sm:$0xff]
  %v2672 = vsub.f32 %v2668, %v2440
  %v2673 = vsub.f32 %v2669, %v2441
  %v2674 = vsub.f32 %v2670, %v2442
  %v2675 = vsub.f32 %v2671, %v2443
  %v2676 = vmul.f32 %v2672, 1.442695
  %v2677 = vpow.pop %v2676
  %v2678 = vmul.f32 %v2673, 1.442695
  %v2679 = vpow.pop %v2678
  %v2680 = vmul.f32 %v2674, 1.442695
  %v2681 = vpow.pop %v2680
  %v2682 = vmul.f32 %v2675, 1.442695
  %v2683 = vpow.pop %v2682
  %v2684 = vadd.f32 %v2652, %v2677
  %v2685 = vadd.f32 %v2653, %v2679
  %v2686 = vadd.f32 %v2654, %v2681
  %v2687 = vadd.f32 %v2655, %v2683
  %v2688 = vld [vmem:[%s1063] sm:$0xff]
  %v2689 = vld [vmem:[%s1063 + $0x8] sm:$0xff]
  %v2690 = vld [vmem:[%s1063 + $0x10] sm:$0xff]
  %v2691 = vld [vmem:[%s1063 + $0x18] sm:$0xff]
  %v2692 = vmul.f32 %v2677, %v2688
  %v2693 = vmul.f32 %v2679, %v2689
  %v2694 = vmul.f32 %v2681, %v2690
  %v2695 = vmul.f32 %v2683, %v2691
  %v2696 = vadd.f32 %v2664, %v2692
  %v2697 = vadd.f32 %v2665, %v2693
  %v2698 = vadd.f32 %v2666, %v2694
  %v2699 = vadd.f32 %v2667, %v2695
  %v2700 = vld [vmem:[%s1142] sm:$0xff]
  %v2701 = vld [vmem:[%s1142 + $0x8] sm:$0xff]
  %v2702 = vld [vmem:[%s1142 + $0x10] sm:$0xff]
  %v2703 = vld [vmem:[%s1142 + $0x18] sm:$0xff]
  %v2704 = vsub.f32 %v2700, %v2440
  %v2705 = vsub.f32 %v2701, %v2441
  %v2706 = vsub.f32 %v2702, %v2442
  %v2707 = vsub.f32 %v2703, %v2443
  %v2708 = vmul.f32 %v2704, 1.442695
  %v2709 = vpow.pop %v2708
  %v2710 = vmul.f32 %v2705, 1.442695
  %v2711 = vpow.pop %v2710
  %v2712 = vmul.f32 %v2706, 1.442695
  %v2713 = vpow.pop %v2712
  %v2714 = vmul.f32 %v2707, 1.442695
  %v2715 = vpow.pop %v2714
  %v2716 = vadd.f32 %v2684, %v2709
  %v2717 = vadd.f32 %v2685, %v2711
  %v2718 = vadd.f32 %v2686, %v2713
  %v2719 = vadd.f32 %v2687, %v2715
  %v2720 = vld [vmem:[%s1147] sm:$0xff]
  %v2721 = vld [vmem:[%s1147 + $0x8] sm:$0xff]
  %v2722 = vld [vmem:[%s1147 + $0x10] sm:$0xff]
  %v2723 = vld [vmem:[%s1147 + $0x18] sm:$0xff]
  %v2724 = vmul.f32 %v2709, %v2720
  %v2725 = vmul.f32 %v2711, %v2721
  %v2726 = vmul.f32 %v2713, %v2722
  %v2727 = vmul.f32 %v2715, %v2723
  %v2728 = vadd.f32 %v2696, %v2724
  %v2729 = vadd.f32 %v2697, %v2725
  %v2730 = vadd.f32 %v2698, %v2726
  %v2731 = vadd.f32 %v2699, %v2727
  %v2732 = vld [vmem:[%s1226] sm:$0xff]
  %v2733 = vld [vmem:[%s1226 + $0x8] sm:$0xff]
  %v2734 = vld [vmem:[%s1226 + $0x10] sm:$0xff]
  %v2735 = vld [vmem:[%s1226 + $0x18] sm:$0xff]
  %v2736 = vsub.f32 %v2732, %v2440
  %v2737 = vsub.f32 %v2733, %v2441
  %v2738 = vsub.f32 %v2734, %v2442
  %v2739 = vsub.f32 %v2735, %v2443
  %v2740 = vmul.f32 %v2736, 1.442695
  %v2741 = vpow.pop %v2740
  %v2742 = vmul.f32 %v2737, 1.442695
  %v2743 = vpow.pop %v2742
  %v2744 = vmul.f32 %v2738, 1.442695
  %v2745 = vpow.pop %v2744
  %v2746 = vmul.f32 %v2739, 1.442695
  %v2747 = vpow.pop %v2746
  %v2748 = vadd.f32 %v2716, %v2741
  %v2749 = vadd.f32 %v2717, %v2743
  %v2750 = vadd.f32 %v2718, %v2745
  %v2751 = vadd.f32 %v2719, %v2747
  %v2752 = vld [vmem:[%s1231] sm:$0xff]
  %v2753 = vld [vmem:[%s1231 + $0x8] sm:$0xff]
  %v2754 = vld [vmem:[%s1231 + $0x10] sm:$0xff]
  %v2755 = vld [vmem:[%s1231 + $0x18] sm:$0xff]
  %v2756 = vmul.f32 %v2741, %v2752
  %v2757 = vmul.f32 %v2743, %v2753
  %v2758 = vmul.f32 %v2745, %v2754
  %v2759 = vmul.f32 %v2747, %v2755
  %v2760 = vadd.f32 %v2728, %v2756
  %v2761 = vadd.f32 %v2729, %v2757
  %v2762 = vadd.f32 %v2730, %v2758
  %v2763 = vadd.f32 %v2731, %v2759
  %v2764 = vld [vmem:[%s1310] sm:$0xff]
  %v2765 = vld [vmem:[%s1310 + $0x8] sm:$0xff]
  %v2766 = vld [vmem:[%s1310 + $0x10] sm:$0xff]
  %v2767 = vld [vmem:[%s1310 + $0x18] sm:$0xff]
  %v2768 = vsub.f32 %v2764, %v2440
  %v2769 = vsub.f32 %v2765, %v2441
  %v2770 = vsub.f32 %v2766, %v2442
  %v2771 = vsub.f32 %v2767, %v2443
  %v2772 = vmul.f32 %v2768, 1.442695
  %v2773 = vpow.pop %v2772
  %v2774 = vmul.f32 %v2769, 1.442695
  %v2775 = vpow.pop %v2774
  %v2776 = vmul.f32 %v2770, 1.442695
  %v2777 = vpow.pop %v2776
  %v2778 = vmul.f32 %v2771, 1.442695
  %v2779 = vpow.pop %v2778
  %v2780 = vadd.f32 %v2748, %v2773
  %v2781 = vadd.f32 %v2749, %v2775
  %v2782 = vadd.f32 %v2750, %v2777
  %v2783 = vadd.f32 %v2751, %v2779
  %v2784 = vld [vmem:[%s1315] sm:$0xff]
  %v2785 = vld [vmem:[%s1315 + $0x8] sm:$0xff]
  %v2786 = vld [vmem:[%s1315 + $0x10] sm:$0xff]
  %v2787 = vld [vmem:[%s1315 + $0x18] sm:$0xff]
  %v2788 = vmul.f32 %v2773, %v2784
  %v2789 = vmul.f32 %v2775, %v2785
  %v2790 = vmul.f32 %v2777, %v2786
  %v2791 = vmul.f32 %v2779, %v2787
  %v2792 = vadd.f32 %v2760, %v2788
  %v2793 = vadd.f32 %v2761, %v2789
  %v2794 = vadd.f32 %v2762, %v2790
  %v2795 = vadd.f32 %v2763, %v2791
  %v2796 = vld [vmem:[%s1394] sm:$0xff]
  %v2797 = vld [vmem:[%s1394 + $0x8] sm:$0xff]
  %v2798 = vld [vmem:[%s1394 + $0x10] sm:$0xff]
  %v2799 = vld [vmem:[%s1394 + $0x18] sm:$0xff]
  %v2800 = vsub.f32 %v2796, %v2440
  %v2801 = vsub.f32 %v2797, %v2441
  %v2802 = vsub.f32 %v2798, %v2442
  %v2803 = vsub.f32 %v2799, %v2443
  %v2804 = vmul.f32 %v2800, 1.442695
  %v2805 = vpow.pop %v2804
  %v2806 = vmul.f32 %v2801, 1.442695
  %v2807 = vpow.pop %v2806
  %v2808 = vmul.f32 %v2802, 1.442695
  %v2809 = vpow.pop %v2808
  %v2810 = vmul.f32 %v2803, 1.442695
  %v2811 = vpow.pop %v2810
  %v2812 = vadd.f32 %v2780, %v2805
  %v2813 = vadd.f32 %v2781, %v2807
  %v2814 = vadd.f32 %v2782, %v2809
  %v2815 = vadd.f32 %v2783, %v2811
  %v2816 = vld [vmem:[%s1399] sm:$0xff]
  %v2817 = vld [vmem:[%s1399 + $0x8] sm:$0xff]
  %v2818 = vld [vmem:[%s1399 + $0x10] sm:$0xff]
  %v2819 = vld [vmem:[%s1399 + $0x18] sm:$0xff]
  %v2820 = vmul.f32 %v2805, %v2816
  %v2821 = vmul.f32 %v2807, %v2817
  %v2822 = vmul.f32 %v2809, %v2818
  %v2823 = vmul.f32 %v2811, %v2819
  %v2824 = vadd.f32 %v2792, %v2820
  %v2825 = vadd.f32 %v2793, %v2821
  %v2826 = vadd.f32 %v2794, %v2822
  %v2827 = vadd.f32 %v2795, %v2823
  %v2828 = vld [vmem:[%s1422] sm:$0xff]
  %v2829 = vld [vmem:[%s1422 + $0x8] sm:$0xff]
  %v2830 = vld [vmem:[%s1422 + $0x10] sm:$0xff]
  %v2831 = vld [vmem:[%s1422 + $0x18] sm:$0xff]
  %v2832 = vsub.f32 %v2828, %v2440
  %v2833 = vsub.f32 %v2829, %v2441
  %v2834 = vsub.f32 %v2830, %v2442
  %v2835 = vsub.f32 %v2831, %v2443
  %v2836 = vmul.f32 %v2832, 1.442695
  %v2837 = vpow.pop %v2836
  %v2838 = vmul.f32 %v2833, 1.442695
  %v2839 = vpow.pop %v2838
  %v2840 = vmul.f32 %v2834, 1.442695
  %v2841 = vpow.pop %v2840
  %v2842 = vmul.f32 %v2835, 1.442695
  %v2843 = vpow.pop %v2842
  %v2844 = vadd.f32 %v2812, %v2837
  %v2845 = vadd.f32 %v2813, %v2839
  %v2846 = vadd.f32 %v2814, %v2841
  %v2847 = vadd.f32 %v2815, %v2843
  %v2848 = vld [vmem:[%s1427] sm:$0xff]
  %v2849 = vld [vmem:[%s1427 + $0x8] sm:$0xff]
  %v2850 = vld [vmem:[%s1427 + $0x10] sm:$0xff]
  %v2851 = vld [vmem:[%s1427 + $0x18] sm:$0xff]
  %v2852 = vmul.f32 %v2837, %v2848
  %v2853 = vmul.f32 %v2839, %v2849
  %v2854 = vmul.f32 %v2841, %v2850
  %v2855 = vmul.f32 %v2843, %v2851
  %v2856 = vadd.f32 %v2824, %v2852
  %v2857 = vadd.f32 %v2825, %v2853
  %v2858 = vadd.f32 %v2826, %v2854
  %v2859 = vadd.f32 %v2827, %v2855
  %v2860 = vld [vmem:[%s1506] sm:$0xff]
  %v2861 = vld [vmem:[%s1506 + $0x8] sm:$0xff]
  %v2862 = vld [vmem:[%s1506 + $0x10] sm:$0xff]
  %v2863 = vld [vmem:[%s1506 + $0x18] sm:$0xff]
  %v2864 = vsub.f32 %v2860, %v2440
  %v2865 = vsub.f32 %v2861, %v2441
  %v2866 = vsub.f32 %v2862, %v2442
  %v2867 = vsub.f32 %v2863, %v2443
  %v2868 = vmul.f32 %v2864, 1.442695
  %v2869 = vpow.pop %v2868
  %v2870 = vmul.f32 %v2865, 1.442695
  %v2871 = vpow.pop %v2870
  %v2872 = vmul.f32 %v2866, 1.442695
  %v2873 = vpow.pop %v2872
  %v2874 = vmul.f32 %v2867, 1.442695
  %v2875 = vpow.pop %v2874
  %v2876 = vadd.f32 %v2844, %v2869
  %v2877 = vadd.f32 %v2845, %v2871
  %v2878 = vadd.f32 %v2846, %v2873
  %v2879 = vadd.f32 %v2847, %v2875
  %v2880 = vld [vmem:[%s1511] sm:$0xff]
  %v2881 = vld [vmem:[%s1511 + $0x8] sm:$0xff]
  %v2882 = vld [vmem:[%s1511 + $0x10] sm:$0xff]
  %v2883 = vld [vmem:[%s1511 + $0x18] sm:$0xff]
  %v2884 = vmul.f32 %v2869, %v2880
  %v2885 = vmul.f32 %v2871, %v2881
  %v2886 = vmul.f32 %v2873, %v2882
  %v2887 = vmul.f32 %v2875, %v2883
  %v2888 = vadd.f32 %v2856, %v2884
  %v2889 = vadd.f32 %v2857, %v2885
  %v2890 = vadd.f32 %v2858, %v2886
  %v2891 = vadd.f32 %v2859, %v2887
  %v2892 = vld [vmem:[%s1590] sm:$0xff]
  %v2893 = vld [vmem:[%s1590 + $0x8] sm:$0xff]
  %v2894 = vld [vmem:[%s1590 + $0x10] sm:$0xff]
  %v2895 = vld [vmem:[%s1590 + $0x18] sm:$0xff]
  %v2896 = vsub.f32 %v2892, %v2440
  %v2897 = vsub.f32 %v2893, %v2441
  %v2898 = vsub.f32 %v2894, %v2442
  %v2899 = vsub.f32 %v2895, %v2443
  %v2900 = vmul.f32 %v2896, 1.442695
  %v2901 = vpow.pop %v2900
  %v2902 = vmul.f32 %v2897, 1.442695
  %v2903 = vpow.pop %v2902
  %v2904 = vmul.f32 %v2898, 1.442695
  %v2905 = vpow.pop %v2904
  %v2906 = vmul.f32 %v2899, 1.442695
  %v2907 = vpow.pop %v2906
  %v2908 = vadd.f32 %v2876, %v2901
  %v2909 = vadd.f32 %v2877, %v2903
  %v2910 = vadd.f32 %v2878, %v2905
  %v2911 = vadd.f32 %v2879, %v2907
  %v2912 = vld [vmem:[%s1595] sm:$0xff]
  %v2913 = vld [vmem:[%s1595 + $0x8] sm:$0xff]
  %v2914 = vld [vmem:[%s1595 + $0x10] sm:$0xff]
  %v2915 = vld [vmem:[%s1595 + $0x18] sm:$0xff]
  %v2916 = vmul.f32 %v2901, %v2912
  %v2917 = vmul.f32 %v2903, %v2913
  %v2918 = vmul.f32 %v2905, %v2914
  %v2919 = vmul.f32 %v2907, %v2915
  %v2920 = vadd.f32 %v2888, %v2916
  %v2921 = vadd.f32 %v2889, %v2917
  %v2922 = vadd.f32 %v2890, %v2918
  %v2923 = vadd.f32 %v2891, %v2919
  %v2924 = vld [vmem:[%s1674] sm:$0xff]
  %v2925 = vld [vmem:[%s1674 + $0x8] sm:$0xff]
  %v2926 = vld [vmem:[%s1674 + $0x10] sm:$0xff]
  %v2927 = vld [vmem:[%s1674 + $0x18] sm:$0xff]
  %v2928 = vsub.f32 %v2924, %v2440
  %v2929 = vsub.f32 %v2925, %v2441
  %v2930 = vsub.f32 %v2926, %v2442
  %v2931 = vsub.f32 %v2927, %v2443
  %v2932 = vmul.f32 %v2928, 1.442695
  %v2933 = vpow.pop %v2932
  %v2934 = vmul.f32 %v2929, 1.442695
  %v2935 = vpow.pop %v2934
  %v2936 = vmul.f32 %v2930, 1.442695
  %v2937 = vpow.pop %v2936
  %v2938 = vmul.f32 %v2931, 1.442695
  %v2939 = vpow.pop %v2938
  %v2940 = vadd.f32 %v2908, %v2933
  %v2941 = vadd.f32 %v2909, %v2935
  %v2942 = vadd.f32 %v2910, %v2937
  %v2943 = vadd.f32 %v2911, %v2939
  %v2944 = vld [vmem:[%s1679] sm:$0xff]
  %v2945 = vld [vmem:[%s1679 + $0x8] sm:$0xff]
  %v2946 = vld [vmem:[%s1679 + $0x10] sm:$0xff]
  %v2947 = vld [vmem:[%s1679 + $0x18] sm:$0xff]
  %v2948 = vmul.f32 %v2933, %v2944
  %v2949 = vmul.f32 %v2935, %v2945
  %v2950 = vmul.f32 %v2937, %v2946
  %v2951 = vmul.f32 %v2939, %v2947
  %v2952 = vadd.f32 %v2920, %v2948
  %v2953 = vadd.f32 %v2921, %v2949
  %v2954 = vadd.f32 %v2922, %v2950
  %v2955 = vadd.f32 %v2923, %v2951
  %v2956 = vld [vmem:[%s1758] sm:$0xff]
  %v2957 = vld [vmem:[%s1758 + $0x8] sm:$0xff]
  %v2958 = vld [vmem:[%s1758 + $0x10] sm:$0xff]
  %v2959 = vld [vmem:[%s1758 + $0x18] sm:$0xff]
  %v2960 = vsub.f32 %v2956, %v2440
  %v2961 = vsub.f32 %v2957, %v2441
  %v2962 = vsub.f32 %v2958, %v2442
  %v2963 = vsub.f32 %v2959, %v2443
  %v2964 = vmul.f32 %v2960, 1.442695
  %v2965 = vpow.pop %v2964
  %v2966 = vmul.f32 %v2961, 1.442695
  %v2967 = vpow.pop %v2966
  %v2968 = vmul.f32 %v2962, 1.442695
  %v2969 = vpow.pop %v2968
  %v2970 = vmul.f32 %v2963, 1.442695
  %v2971 = vpow.pop %v2970
  %v2972 = vadd.f32 %v2940, %v2965
  %v2973 = vadd.f32 %v2941, %v2967
  %v2974 = vadd.f32 %v2942, %v2969
  %v2975 = vadd.f32 %v2943, %v2971
  %v2976 = vld [vmem:[%s1763] sm:$0xff]
  %v2977 = vld [vmem:[%s1763 + $0x8] sm:$0xff]
  %v2978 = vld [vmem:[%s1763 + $0x10] sm:$0xff]
  %v2979 = vld [vmem:[%s1763 + $0x18] sm:$0xff]
  %v2980 = vmul.f32 %v2965, %v2976
  %v2981 = vmul.f32 %v2967, %v2977
  %v2982 = vmul.f32 %v2969, %v2978
  %v2983 = vmul.f32 %v2971, %v2979
  %v2984 = vadd.f32 %v2952, %v2980
  %v2985 = vadd.f32 %v2953, %v2981
  %v2986 = vadd.f32 %v2954, %v2982
  %v2987 = vadd.f32 %v2955, %v2983
  %v2988 = vld [vmem:[%s1842] sm:$0xff]
  %v2989 = vld [vmem:[%s1842 + $0x8] sm:$0xff]
  %v2990 = vld [vmem:[%s1842 + $0x10] sm:$0xff]
  %v2991 = vld [vmem:[%s1842 + $0x18] sm:$0xff]
  %v2992 = vsub.f32 %v2988, %v2440
  %v2993 = vsub.f32 %v2989, %v2441
  %v2994 = vsub.f32 %v2990, %v2442
  %v2995 = vsub.f32 %v2991, %v2443
  %v2996 = vmul.f32 %v2992, 1.442695
  %v2997 = vpow.pop %v2996
  %v2998 = vmul.f32 %v2993, 1.442695
  %v2999 = vpow.pop %v2998
  %v3000 = vmul.f32 %v2994, 1.442695
  %v3001 = vpow.pop %v3000
  %v3002 = vmul.f32 %v2995, 1.442695
  %v3003 = vpow.pop %v3002
  %v3004 = vadd.f32 %v2972, %v2997
  %v3005 = vadd.f32 %v2973, %v2999
  %v3006 = vadd.f32 %v2974, %v3001
  %v3007 = vadd.f32 %v2975, %v3003
  %v3008 = vld [vmem:[%s1847] sm:$0xff]
  %v3009 = vld [vmem:[%s1847 + $0x8] sm:$0xff]
  %v3010 = vld [vmem:[%s1847 + $0x10] sm:$0xff]
  %v3011 = vld [vmem:[%s1847 + $0x18] sm:$0xff]
  %v3012 = vmul.f32 %v2997, %v3008
  %v3013 = vmul.f32 %v2999, %v3009
  %v3014 = vmul.f32 %v3001, %v3010
  %v3015 = vmul.f32 %v3003, %v3011
  %v3016 = vadd.f32 %v2984, %v3012
  %v3017 = vadd.f32 %v2985, %v3013
  %v3018 = vadd.f32 %v2986, %v3014
  %v3019 = vadd.f32 %v2987, %v3015
  %v3020 = vld [vmem:[%s1926] sm:$0xff]
  %v3021 = vld [vmem:[%s1926 + $0x8] sm:$0xff]
  %v3022 = vld [vmem:[%s1926 + $0x10] sm:$0xff]
  %v3023 = vld [vmem:[%s1926 + $0x18] sm:$0xff]
  %v3024 = vsub.f32 %v3020, %v2440
  %v3025 = vsub.f32 %v3021, %v2441
  %v3026 = vsub.f32 %v3022, %v2442
  %v3027 = vsub.f32 %v3023, %v2443
  %v3028 = vmul.f32 %v3024, 1.442695
  %v3029 = vpow.pop %v3028
  %v3030 = vmul.f32 %v3025, 1.442695
  %v3031 = vpow.pop %v3030
  %v3032 = vmul.f32 %v3026, 1.442695
  %v3033 = vpow.pop %v3032
  %v3034 = vmul.f32 %v3027, 1.442695
  %v3035 = vpow.pop %v3034
  %v3036 = vadd.f32 %v3004, %v3029
  %v3037 = vadd.f32 %v3005, %v3031
  %v3038 = vadd.f32 %v3006, %v3033
  %v3039 = vadd.f32 %v3007, %v3035
  %v3040 = vld [vmem:[%s1931] sm:$0xff]
  %v3041 = vld [vmem:[%s1931 + $0x8] sm:$0xff]
  %v3042 = vld [vmem:[%s1931 + $0x10] sm:$0xff]
  %v3043 = vld [vmem:[%s1931 + $0x18] sm:$0xff]
  %v3044 = vmul.f32 %v3029, %v3040
  %v3045 = vmul.f32 %v3031, %v3041
  %v3046 = vmul.f32 %v3033, %v3042
  %v3047 = vmul.f32 %v3035, %v3043
  %v3048 = vadd.f32 %v3016, %v3044
  %v3049 = vadd.f32 %v3017, %v3045
  %v3050 = vadd.f32 %v3018, %v3046
  %v3051 = vadd.f32 %v3019, %v3047
  %v3052 = vld [vmem:[%s2010] sm:$0xff]
  %v3053 = vld [vmem:[%s2010 + $0x8] sm:$0xff]
  %v3054 = vld [vmem:[%s2010 + $0x10] sm:$0xff]
  %v3055 = vld [vmem:[%s2010 + $0x18] sm:$0xff]
  %v3056 = vsub.f32 %v3052, %v2440
  %v3057 = vsub.f32 %v3053, %v2441
  %v3058 = vsub.f32 %v3054, %v2442
  %v3059 = vsub.f32 %v3055, %v2443
  %v3060 = vmul.f32 %v3056, 1.442695
  %v3061 = vpow.pop %v3060
  %v3062 = vmul.f32 %v3057, 1.442695
  %v3063 = vpow.pop %v3062
  %v3064 = vmul.f32 %v3058, 1.442695
  %v3065 = vpow.pop %v3064
  %v3066 = vmul.f32 %v3059, 1.442695
  %v3067 = vpow.pop %v3066
  %v3068 = vadd.f32 %v3036, %v3061
  %v3069 = vadd.f32 %v3037, %v3063
  %v3070 = vadd.f32 %v3038, %v3065
  %v3071 = vadd.f32 %v3039, %v3067
  %v3072 = vld [vmem:[%s2015] sm:$0xff]
  %v3073 = vld [vmem:[%s2015 + $0x8] sm:$0xff]
  %v3074 = vld [vmem:[%s2015 + $0x10] sm:$0xff]
  %v3075 = vld [vmem:[%s2015 + $0x18] sm:$0xff]
  %v3076 = vmul.f32 %v3061, %v3072
  %v3077 = vmul.f32 %v3063, %v3073
  %v3078 = vmul.f32 %v3065, %v3074
  %v3079 = vmul.f32 %v3067, %v3075
  %v3080 = vadd.f32 %v3048, %v3076
  %v3081 = vadd.f32 %v3049, %v3077
  %v3082 = vadd.f32 %v3050, %v3078
  %v3083 = vadd.f32 %v3051, %v3079
  %v3084 = vld [vmem:[%s2094] sm:$0xff]
  %v3085 = vld [vmem:[%s2094 + $0x8] sm:$0xff]
  %v3086 = vld [vmem:[%s2094 + $0x10] sm:$0xff]
  %v3087 = vld [vmem:[%s2094 + $0x18] sm:$0xff]
  %v3088 = vsub.f32 %v3084, %v2440
  %v3089 = vsub.f32 %v3085, %v2441
  %v3090 = vsub.f32 %v3086, %v2442
  %v3091 = vsub.f32 %v3087, %v2443
  %v3092 = vmul.f32 %v3088, 1.442695
  %v3093 = vpow.pop %v3092
  %v3094 = vmul.f32 %v3089, 1.442695
  %v3095 = vpow.pop %v3094
  %v3096 = vmul.f32 %v3090, 1.442695
  %v3097 = vpow.pop %v3096
  %v3098 = vmul.f32 %v3091, 1.442695
  %v3099 = vpow.pop %v3098
  %v3100 = vadd.f32 %v3068, %v3093
  %v3101 = vadd.f32 %v3069, %v3095
  %v3102 = vadd.f32 %v3070, %v3097
  %v3103 = vadd.f32 %v3071, %v3099
  %v3104 = vld [vmem:[%s2099] sm:$0xff]
  %v3105 = vld [vmem:[%s2099 + $0x8] sm:$0xff]
  %v3106 = vld [vmem:[%s2099 + $0x10] sm:$0xff]
  %v3107 = vld [vmem:[%s2099 + $0x18] sm:$0xff]
  %v3108 = vmul.f32 %v3093, %v3104
  %v3109 = vmul.f32 %v3095, %v3105
  %v3110 = vmul.f32 %v3097, %v3106
  %v3111 = vmul.f32 %v3099, %v3107
  %v3112 = vadd.f32 %v3080, %v3108
  %v3113 = vadd.f32 %v3081, %v3109
  %v3114 = vadd.f32 %v3082, %v3110
  %v3115 = vadd.f32 %v3083, %v3111
  %v3116 = vld [vmem:[%s2178] sm:$0xff]
  %v3117 = vld [vmem:[%s2178 + $0x8] sm:$0xff]
  %v3118 = vld [vmem:[%s2178 + $0x10] sm:$0xff]
  %v3119 = vld [vmem:[%s2178 + $0x18] sm:$0xff]
  %v3120 = vsub.f32 %v3116, %v2440
  %v3121 = vsub.f32 %v3117, %v2441
  %v3122 = vsub.f32 %v3118, %v2442
  %v3123 = vsub.f32 %v3119, %v2443
  %v3124 = vmul.f32 %v3120, 1.442695
  %v3125 = vpow.pop %v3124
  %v3126 = vmul.f32 %v3121, 1.442695
  %v3127 = vpow.pop %v3126
  %v3128 = vmul.f32 %v3122, 1.442695
  %v3129 = vpow.pop %v3128
  %v3130 = vmul.f32 %v3123, 1.442695
  %v3131 = vpow.pop %v3130
  %v3132 = vadd.f32 %v3100, %v3125
  %v3133 = vadd.f32 %v3101, %v3127
  %v3134 = vadd.f32 %v3102, %v3129
  %v3135 = vadd.f32 %v3103, %v3131
  %v3136 = vld [vmem:[%s2183] sm:$0xff]
  %v3137 = vld [vmem:[%s2183 + $0x8] sm:$0xff]
  %v3138 = vld [vmem:[%s2183 + $0x10] sm:$0xff]
  %v3139 = vld [vmem:[%s2183 + $0x18] sm:$0xff]
  %v3140 = vmul.f32 %v3125, %v3136
  %v3141 = vmul.f32 %v3127, %v3137
  %v3142 = vmul.f32 %v3129, %v3138
  %v3143 = vmul.f32 %v3131, %v3139
  %v3144 = vadd.f32 %v3112, %v3140
  %v3145 = vadd.f32 %v3113, %v3141
  %v3146 = vadd.f32 %v3114, %v3142
  %v3147 = vadd.f32 %v3115, %v3143
  %v3148 = vld [vmem:[%s2262] sm:$0xff]
  %v3149 = vld [vmem:[%s2262 + $0x8] sm:$0xff]
  %v3150 = vld [vmem:[%s2262 + $0x10] sm:$0xff]
  %v3151 = vld [vmem:[%s2262 + $0x18] sm:$0xff]
  %v3152 = vsub.f32 %v3148, %v2440
  %v3153 = vsub.f32 %v3149, %v2441
  %v3154 = vsub.f32 %v3150, %v2442
  %v3155 = vsub.f32 %v3151, %v2443
  %v3156 = vmul.f32 %v3152, 1.442695
  %v3157 = vpow.pop %v3156
  %v3158 = vmul.f32 %v3153, 1.442695
  %v3159 = vpow.pop %v3158
  %v3160 = vmul.f32 %v3154, 1.442695
  %v3161 = vpow.pop %v3160
  %v3162 = vmul.f32 %v3155, 1.442695
  %v3163 = vpow.pop %v3162
  %v3164 = vadd.f32 %v3132, %v3157
  %v3165 = vadd.f32 %v3133, %v3159
  %v3166 = vadd.f32 %v3134, %v3161
  %v3167 = vadd.f32 %v3135, %v3163
  %v3168 = vld [vmem:[%s2267] sm:$0xff]
  %v3169 = vld [vmem:[%s2267 + $0x8] sm:$0xff]
  %v3170 = vld [vmem:[%s2267 + $0x10] sm:$0xff]
  %v3171 = vld [vmem:[%s2267 + $0x18] sm:$0xff]
  %v3172 = vmul.f32 %v3157, %v3168
  %v3173 = vmul.f32 %v3159, %v3169
  %v3174 = vmul.f32 %v3161, %v3170
  %v3175 = vmul.f32 %v3163, %v3171
  %v3176 = vadd.f32 %v3144, %v3172
  %v3177 = vadd.f32 %v3145, %v3173
  %v3178 = vadd.f32 %v3146, %v3174
  %v3179 = vadd.f32 %v3147, %v3175
  %v3180 = vld [vmem:[%s2346] sm:$0xff]
  %v3181 = vld [vmem:[%s2346 + $0x8] sm:$0xff]
  %v3182 = vld [vmem:[%s2346 + $0x10] sm:$0xff]
  %v3183 = vld [vmem:[%s2346 + $0x18] sm:$0xff]
  %v3184 = vsub.f32 %v3180, %v2440
  %v3185 = vsub.f32 %v3181, %v2441
  %v3186 = vsub.f32 %v3182, %v2442
  %v3187 = vsub.f32 %v3183, %v2443
  %v3188 = vmul.f32 %v3184, 1.442695
  %v3189 = vpow.pop %v3188
  %v3190 = vmul.f32 %v3185, 1.442695
  %v3191 = vpow.pop %v3190
  %v3192 = vmul.f32 %v3186, 1.442695
  %v3193 = vpow.pop %v3192
  %v3194 = vmul.f32 %v3187, 1.442695
  %v3195 = vpow.pop %v3194
  %v3196 = vadd.f32 %v3164, %v3189
  %v3197 = vadd.f32 %v3165, %v3191
  %v3198 = vadd.f32 %v3166, %v3193
  %v3199 = vadd.f32 %v3167, %v3195
  %v3200 = vld [vmem:[%s2351] sm:$0xff]
  %v3201 = vld [vmem:[%s2351 + $0x8] sm:$0xff]
  %v3202 = vld [vmem:[%s2351 + $0x10] sm:$0xff]
  %v3203 = vld [vmem:[%s2351 + $0x18] sm:$0xff]
  %v3204 = vmul.f32 %v3189, %v3200
  %v3205 = vmul.f32 %v3191, %v3201
  %v3206 = vmul.f32 %v3193, %v3202
  %v3207 = vmul.f32 %v3195, %v3203
  %v3208 = vadd.f32 %v3176, %v3204
  %v3209 = vadd.f32 %v3177, %v3205
  %v3210 = vadd.f32 %v3178, %v3206
  %v3211 = vadd.f32 %v3179, %v3207
  %v3212 = vld [vmem:[%s2430] sm:$0xff]
  %v3213 = vld [vmem:[%s2430 + $0x8] sm:$0xff]
  %v3214 = vld [vmem:[%s2430 + $0x10] sm:$0xff]
  %v3215 = vld [vmem:[%s2430 + $0x18] sm:$0xff]
  %v3216 = vsub.f32 %v3212, %v2440
  %v3217 = vsub.f32 %v3213, %v2441
  %v3218 = vsub.f32 %v3214, %v2442
  %v3219 = vsub.f32 %v3215, %v2443
  %v3220 = vmul.f32 %v3216, 1.442695
  %v3221 = vpow.pop %v3220
  %v3222 = vmul.f32 %v3217, 1.442695
  %v3223 = vpow.pop %v3222
  %v3224 = vmul.f32 %v3218, 1.442695
  %v3225 = vpow.pop %v3224
  %v3226 = vmul.f32 %v3219, 1.442695
  %v3227 = vpow.pop %v3226
  %v3228 = vadd.f32 %v3196, %v3221
  %v3229 = vadd.f32 %v3197, %v3223
  %v3230 = vadd.f32 %v3198, %v3225
  %v3231 = vadd.f32 %v3199, %v3227
  %v3232 = vld [vmem:[%s2435] sm:$0xff]
  %v3233 = vld [vmem:[%s2435 + $0x8] sm:$0xff]
  %v3234 = vld [vmem:[%s2435 + $0x10] sm:$0xff]
  %v3235 = vld [vmem:[%s2435 + $0x18] sm:$0xff]
  %v3236 = vmul.f32 %v3221, %v3232
  %v3237 = vmul.f32 %v3223, %v3233
  %v3238 = vmul.f32 %v3225, %v3234
  %v3239 = vmul.f32 %v3227, %v3235
  %v3240 = vadd.f32 %v3208, %v3236
  %v3241 = vadd.f32 %v3209, %v3237
  %v3242 = vadd.f32 %v3210, %v3238
  %v3243 = vadd.f32 %v3211, %v3239
  %v3244 = vrcp.pop %v3228
  %v3245 = vmul.f32 %v3240, %v3244
  %v3246 = vrcp.pop %v3229
  %v3247 = vmul.f32 %v3241, %v3246
  %v3248 = vrcp.pop %v3230
  %v3249 = vmul.f32 %v3242, %v3248
  %v3250 = vrcp.pop %v3231
  %v3251 = vmul.f32 %v3243, %v3250
  %3252 = vset.pattern.permute.xlu0 3
  %3253 = vperm.xlu0 %3252, %v32
  %v3254 = vpop.permute.xlu0 %3253
  %v3256 = vmul.f32 %v3245, %v3254
  %v3257 = vmul.f32 %v3247, %v3254
  %v3258 = vmul.f32 %v3249, %v3254
  %v3259 = vmul.f32 %v3251, %v3254
  %3260 = vset.pattern.permute.xlu0 4
  %3261 = vperm.xlu0 %3260, %v32
  %v3262 = vpop.permute.xlu0 %3261
  %v3264 = vadd.f32 %v3256, %v3262
  %v3265 = vadd.f32 %v3257, %v3262
  %v3266 = vadd.f32 %v3258, %v3262
  %v3267 = vadd.f32 %v3259, %v3262
  %v3268 = vmax.f32 %v3264, 0.0
  %v3269 = vmax.f32 %v3265, 0.0
  %v3270 = vmax.f32 %v3266, 0.0
  %v3271 = vmax.f32 %v3267, 0.0
  %v3272 = vld [vmem:[%s4] sm:$0xf]
  %v3273 = vld [vmem:[%s4 + $0x4] sm:$0xf]
  %v3274 = vld [vmem:[%s4 + $0x8] sm:$0xf]
  %v3275 = vld [vmem:[%s4 + $0xc] sm:$0xf]
  %v3276 = vpack.c.bf16 %v3268, %v3268
  %v3277 = vpack.c.bf16 %v3269, %v3269
  %v3278 = vpack.c.bf16 %v3270, %v3270
  %v3279 = vpack.c.bf16 %v3271, %v3271
  %3280 = vset.pattern.permute.xlu0 2
  %3281 = vperm.xlu0 %3280, %v32
  %v3282 = vpop.permute.xlu0 %3281
  %3284 = vset.pattern.permute.xlu0 2
  %3285 = vperm.xlu0 %3284, %v33
  %v3286 = vpop.permute.xlu0 %3285
  %3288 = vset.pattern.permute.xlu0 2
  %3289 = vperm.xlu0 %3288, %v34
  %v3290 = vpop.permute.xlu0 %3289
  %3292 = vset.pattern.permute.xlu0 2
  %3293 = vperm.xlu0 %3292, %v35
  %v3294 = vpop.permute.xlu0 %3293
  %v3300 = vunpack.c.l.b16 %v3272
  %v3301 = vunpack.c.l.b16 %v3273
  %v3302 = vunpack.c.l.b16 %v3274
  %v3303 = vunpack.c.l.b16 %v3275
  %v3304 = vpack.c.b16 %v3301, %v3300
  %v3305 = vpack.c.b16 %v3303, %v3302
  %vm3306 = vcmask 64512
  %v3308 = vsel %vm3306, %v3304, 0
  %v3311 = vsel %vm3306, %v3305, 0
  %v3314 = vsel %vm235, %v3276, 0
  %v3317 = vsel %vm235, %v3277, 0
  %v3320 = vsel %vm235, %v3278, 0
  %v3323 = vsel %vm235, %v3279, 0
  %3325 = vmatprep.subr.bf16.mxu0 %v3317
  %3326 = vmatpush1.bf16.msra.mxu0 %v3314
  %3327 = vmatprep.subr.bf16.mxu0 0
  %3328 = vmatpush1.bf16.msra.mxu0 0
  %3329 = vmatprep.subr.bf16.mxu0 0
  %3330 = vmatpush1.bf16.msra.mxu0 0
  %3331 = vmatprep.subr.bf16.mxu0 0
  %3332 = vmatpush1.bf16.msra.mxu0 0
  %3333 = vmatprep.subr.bf16.mxu0 0
  %3334 = vmatpush1.bf16.msra.mxu0 0
  %3335 = vmatprep.subr.bf16.mxu0 0
  %3336 = vmatpush1.bf16.msra.mxu0 0
  %3337 = vmatprep.subr.bf16.mxu0 0
  %3338 = vmatpush1.bf16.msra.mxu0 0
  %3339 = vmatprep.subr.bf16.mxu0 0
  %3340 = vmatpush1.bf16.msra.mxu0 0
  %3341 = vmatprep.subr.bf16.mxu0 0
  %3342 = vmatpush1.bf16.msra.mxu0 0
  %3343 = vmatprep.subr.bf16.mxu0 0
  %3344 = vmatpush1.bf16.msra.mxu0 0
  %3345 = vmatprep.subr.bf16.mxu0 0
  %3346 = vmatpush1.bf16.msra.mxu0 0
  %3347 = vmatprep.subr.bf16.mxu0 0
  %3348 = vmatpush1.bf16.msra.mxu0 0
  %3349 = vmatprep.subr.bf16.mxu0 0
  %3350 = vmatpush1.bf16.msra.mxu0 0
  %3351 = vmatprep.subr.bf16.mxu0 0
  %3352 = vmatpush1.bf16.msra.mxu0 0
  %3353 = vmatprep.subr.bf16.mxu0 0
  %3354 = vmatpush1.bf16.msra.mxu0 0
  %3355 = vmatprep.subr.bf16.mxu0 0
  %3356 = vmatpush1.bf16.msra.mxu0 0
  %3357 = vmatprep.mubr.bf16.mxu0 0
  %3358 = vmatmul.mubr.bf16.gmra.mrb[0].mxu0 %v3308
  %v3359 = vpop.f32.mrb[0].mxu0
  %v3360 = vadd.f32 %v3282, %v3359
  %v3361 = vpop.f32.mrb[0].mxu0
  %v3362 = vadd.f32 %v3282, %v3361
  %v3363 = vpop.f32.mrb[0].mxu0
  %v3364 = vadd.f32 %v3286, %v3363
  %v3365 = vpop.f32.mrb[0].mxu0
  %v3366 = vadd.f32 %v3286, %v3365
  %3367 = vmatprep.mubr.bf16.mxu0 0
  %3368 = vmatmul.mubr.bf16.gmra.mrb[0].mxu0 %v3311
  %v3369 = vpop.f32.mrb[0].mxu0
  %v3370 = vadd.f32 %v3290, %v3369
  %v3371 = vpop.f32.mrb[0].mxu0
  %v3372 = vadd.f32 %v3290, %v3371
  %v3373 = vpop.f32.mrb[0].mxu0
  %v3374 = vadd.f32 %v3294, %v3373
  %v3375 = vpop.f32.mrb[0].mxu0
  %v3376 = vadd.f32 %v3294, %v3375
  %3377 = vdwg.mxu0
  %3378 = vmatprep.subr.bf16.mxu0 %v3323
  %3379 = vmatpush1.bf16.msra.mxu0 %v3320
  %3380 = vmatprep.subr.bf16.mxu0 0
  %3381 = vmatpush1.bf16.msra.mxu0 0
  %3382 = vmatprep.subr.bf16.mxu0 0
  %3383 = vmatpush1.bf16.msra.mxu0 0
  %3384 = vmatprep.subr.bf16.mxu0 0
  %3385 = vmatpush1.bf16.msra.mxu0 0
  %3386 = vmatprep.subr.bf16.mxu0 0
  %3387 = vmatpush1.bf16.msra.mxu0 0
  %3388 = vmatprep.subr.bf16.mxu0 0
  %3389 = vmatpush1.bf16.msra.mxu0 0
  %3390 = vmatprep.subr.bf16.mxu0 0
  %3391 = vmatpush1.bf16.msra.mxu0 0
  %3392 = vmatprep.subr.bf16.mxu0 0
  %3393 = vmatpush1.bf16.msra.mxu0 0
  %3394 = vmatprep.subr.bf16.mxu0 0
  %3395 = vmatpush1.bf16.msra.mxu0 0
  %3396 = vmatprep.subr.bf16.mxu0 0
  %3397 = vmatpush1.bf16.msra.mxu0 0
  %3398 = vmatprep.subr.bf16.mxu0 0
  %3399 = vmatpush1.bf16.msra.mxu0 0
  %3400 = vmatprep.subr.bf16.mxu0 0
  %3401 = vmatpush1.bf16.msra.mxu0 0
  %3402 = vmatprep.subr.bf16.mxu0 0
  %3403 = vmatpush1.bf16.msra.mxu0 0
  %3404 = vmatprep.subr.bf16.mxu0 0
  %3405 = vmatpush1.bf16.msra.mxu0 0
  %3406 = vmatprep.subr.bf16.mxu0 0
  %3407 = vmatpush1.bf16.msra.mxu0 0
  %3408 = vmatprep.subr.bf16.mxu0 0
  %3409 = vmatpush1.bf16.msra.mxu0 0
  %3410 = vmatprep.mubr.bf16.mxu0 0
  %3411 = vmatmul.mubr.bf16.gmra.mrb[0].mxu0 %v3308
  %v3412 = vpop.f32.mrb[0].mxu0
  %v3413 = vadd.f32 %v3282, %v3412
  %v3414 = vpop.f32.mrb[0].mxu0
  %v3415 = vadd.f32 %v3282, %v3414
  %v3416 = vpop.f32.mrb[0].mxu0
  %v3417 = vadd.f32 %v3286, %v3416
  %v3418 = vpop.f32.mrb[0].mxu0
  %v3419 = vadd.f32 %v3286, %v3418
  %3420 = vmatprep.mubr.bf16.mxu0 0
  %3421 = vmatmul.mubr.bf16.gmra.mrb[0].mxu0 %v3311
  %v3422 = vpop.f32.mrb[0].mxu0
  %v3423 = vadd.f32 %v3290, %v3422
  %v3424 = vpop.f32.mrb[0].mxu0
  %v3425 = vadd.f32 %v3290, %v3424
  %v3426 = vpop.f32.mrb[0].mxu0
  %v3427 = vadd.f32 %v3294, %v3426
  %v3428 = vpop.f32.mrb[0].mxu0
  %v3429 = vadd.f32 %v3294, %v3428
  %3430 = vdwg.mxu0
  %v3431 = vmax.f32 %v3360, 0.0
  %v3432 = vmax.f32 %v3362, 0.0
  %v3433 = vmax.f32 %v3413, 0.0
  %v3434 = vmax.f32 %v3415, 0.0
  %v3435 = vmax.f32 %v3364, 0.0
  %v3436 = vmax.f32 %v3366, 0.0
  %v3437 = vmax.f32 %v3417, 0.0
  %v3438 = vmax.f32 %v3419, 0.0
  %v3439 = vmax.f32 %v3370, 0.0
  %v3440 = vmax.f32 %v3372, 0.0
  %v3441 = vmax.f32 %v3423, 0.0
  %v3442 = vmax.f32 %v3425, 0.0
  %v3443 = vmax.f32 %v3374, 0.0
  %v3444 = vmax.f32 %v3376, 0.0
  %v3445 = vmax.f32 %v3427, 0.0
  %v3446 = vmax.f32 %v3429, 0.0
  %v3467 = vrot.slane %v248, 4
  %v3468 = vrot.slane %v252, 4
  %v3469 = vsel %vm235, %v3467, %v3468
  %v3470 = vrot.slane %v249, 4
  %v3471 = vrot.slane %v253, 4
  %v3472 = vsel %vm235, %v3470, %v3471
  %v3473 = vrot.slane %v250, 4
  %v3474 = vrot.slane %v254, 4
  %v3475 = vsel %vm235, %v3473, %v3474
  %v3476 = vrot.slane %v251, 4
  %v3477 = vrot.slane %v255, 4
  %v3478 = vsel %vm235, %v3476, %v3477
  %v3479 = vrot.slane %v256, 4
  %v3480 = vsel %vm235, %v3468, %v3479
  %v3481 = vrot.slane %v257, 4
  %v3482 = vsel %vm235, %v3471, %v3481
  %v3483 = vrot.slane %v258, 4
  %v3484 = vsel %vm235, %v3474, %v3483
  %v3485 = vrot.slane %v259, 4
  %v3486 = vsel %vm235, %v3477, %v3485
  %v3487 = vrot.slane %v260, 4
  %v3488 = vsel %vm235, %v3479, %v3487
  %v3489 = vrot.slane %v261, 4
  %v3490 = vsel %vm235, %v3481, %v3489
  %v3491 = vrot.slane %v262, 4
  %v3492 = vsel %vm235, %v3483, %v3491
  %v3493 = vrot.slane %v263, 4
  %v3494 = vsel %vm235, %v3485, %v3493
  %v3495 = vrot.slane %v264, 4
  %v3496 = vsel %vm235, %v3487, %v3495
  %v3497 = vrot.slane %v265, 4
  %v3498 = vsel %vm235, %v3489, %v3497
  %v3499 = vrot.slane %v266, 4
  %v3500 = vsel %vm235, %v3491, %v3499
  %v3501 = vrot.slane %v267, 4
  %v3502 = vsel %vm235, %v3493, %v3501
  %v3519 = vadd.f32 %v3431, %v3469
  %v3520 = vadd.f32 %v3432, %v3472
  %v3521 = vadd.f32 %v3433, %v3475
  %v3522 = vadd.f32 %v3434, %v3478
  %v3523 = vadd.f32 %v3435, %v3480
  %v3524 = vadd.f32 %v3436, %v3482
  %v3525 = vadd.f32 %v3437, %v3484
  %v3526 = vadd.f32 %v3438, %v3486
  %v3527 = vadd.f32 %v3439, %v3488
  %v3528 = vadd.f32 %v3440, %v3490
  %v3529 = vadd.f32 %v3441, %v3492
  %v3530 = vadd.f32 %v3442, %v3494
  %v3531 = vadd.f32 %v3443, %v3496
  %v3532 = vadd.f32 %v3444, %v3498
  %v3533 = vadd.f32 %v3445, %v3500
  %v3534 = vadd.f32 %v3446, %v3502
  %3535 = vst [vmem:[%s7] sm:$0xff] %v3519
  %3536 = vst [vmem:[%s7 + $0x8] sm:$0xff] %v3520
  %3537 = vst [vmem:[%s7 + $0x10] sm:$0xff] %v3521
  %3538 = vst [vmem:[%s7 + $0x18] sm:$0xff] %v3522
  %3539 = vst [vmem:[%s7 + $0x20] sm:$0xff] %v3523
  %3540 = vst [vmem:[%s7 + $0x28] sm:$0xff] %v3524
  %3541 = vst [vmem:[%s7 + $0x30] sm:$0xff] %v3525
  %3542 = vst [vmem:[%s7 + $0x38] sm:$0xff] %v3526
  %3543 = vst [vmem:[%s7 + $0x40] sm:$0xff] %v3527
  %3544 = vst [vmem:[%s7 + $0x48] sm:$0xff] %v3528
  %3545 = vst [vmem:[%s7 + $0x50] sm:$0xff] %v3529
  %3546 = vst [vmem:[%s7 + $0x58] sm:$0xff] %v3530
  %3547 = vst [vmem:[%s7 + $0x60] sm:$0xff] %v3531
  %3548 = vst [vmem:[%s7 + $0x68] sm:$0xff] %v3532
  %3549 = vst [vmem:[%s7 + $0x70] sm:$0xff] %v3533
  %3550 = vst [vmem:[%s7 + $0x78] sm:$0xff] %v3534
  // Predicated region
  $region30: #{attention_with_skip_forward.1} parent=0 // pred_check
    _
  $region31: #{attention_with_skip_forward.1} parent=0 // pred_check_branch
    %3552 = sbr.rel (0) target = $region33
  $region32: #{attention_with_skip_forward.1} parent=0 // pred_region
    _
  $region33: #{attention_with_skip_forward.1} parent=0 // pred_fallthru
    _
  // Predicated region
  $region34: #{attention_with_skip_forward.1} parent=0 // pred_check
    _
  $region35: #{attention_with_skip_forward.1} parent=0 // pred_check_branch
    %3554 = sbr.rel (0) target = $region37
  $region36: #{attention_with_skip_forward.1} parent=0 // pred_region
    _
  $region37: #{attention_with_skip_forward.1} parent=0 // pred_fallthru
    _

</llo_original>
